<compile_context>
chip_gen: v7x
topology: tpu7x:2x2x1
jax: 0.10.0
libtpu: 0.0.40
codegen_flags: <defaults>
</compile_context>

<pallas_src>
import numpy as np
import jax
import jax.numpy as jnp
from jax import lax
from jax.experimental import pallas as pl
from jax.experimental.pallas import tpu as pltpu


K1_PAD = 128   # im2col K for conv1: 5*5*3  = 75  -> 128 lanes
K2_PAD = 768   # im2col K for conv2: 5*5*30 = 750 -> 768 lanes (6*128)


# ---------------------------------------------------------------------------
# Pallas kernels
# ---------------------------------------------------------------------------
def _conv_relu_pool_kernel(p_ref, w_ref, b_ref, o_ref):
    """Fused conv (im2col matmul) + bias + ReLU + 2x2 max-pool, one image.

    p_ref: (4, Mp, K) bf16 -- patch matrices for the 4 positions of each 2x2
                              pooling window (Mp = pooled H*W)
    w_ref: (K, N)     bf16 -- weights of all 5 columns fused along N
    b_ref: (1, N)     f32
    o_ref: (Mp, N)    bf16 -- pooled activations
    """
    w = w_ref[...]
    m = jnp.dot(p_ref[0], w, preferred_element_type=jnp.float32)
    for k in range(1, 4):
        m = jnp.maximum(m, jnp.dot(p_ref[k], w,
                                   preferred_element_type=jnp.float32))
    # pool(relu(conv + b)) == relu(max_k(conv_k) + b) since bias is shared.
    y = jnp.maximum(m + b_ref[...], 0.0)
    o_ref[...] = y.astype(o_ref.dtype)


def conv_relu_pool(p, w, b):
    """p: (B, 4, Mp, K) bf16; w: (K, N) bf16; b: (1, N) f32 -> (B, Mp, N) bf16."""
    B, _, Mp, K = p.shape
    N = w.shape[1]
    return pl.pallas_call(
        _conv_relu_pool_kernel,
        out_shape=jax.ShapeDtypeStruct((B, Mp, N), jnp.bfloat16),
        grid=(B,),
        in_specs=[
            pl.BlockSpec((None, 4, Mp, K), lambda i: (i, 0, 0, 0)),
            pl.BlockSpec((K, N), lambda i: (0, 0)),
            pl.BlockSpec((1, N), lambda i: (0, 0)),
        ],
        out_specs=pl.BlockSpec((None, Mp, N), lambda i: (i, 0, 0)),
        compiler_params=pltpu.CompilerParams(
            dimension_semantics=("parallel",),
            vmem_limit_bytes=32 * 1024 * 1024),
    )(p, w, b)


def _mlp_head_kernel(z_ref, w1_ref, b1_ref, w2_ref, b2_ref, w3_ref, b3_ref,
                     o_ref):
    """All 5 columns' fc1->fc2->fc3 and the final 5-way sum, one invocation.

    z_ref:  (5, TB, 400) bf16   w1_ref: (5, 400, 120) bf16  b1_ref: (5, 1, 120) f32
    w2_ref: (5, 120, 84) bf16   b2_ref: (5, 1, 84) f32
    w3_ref: (5, 84, 19)  bf16   b3_ref: (1, 19) f32 (fc3 biases pre-summed)
    o_ref:  (TB, 19) f32
    """
    acc = jnp.zeros(o_ref.shape, jnp.float32)
    for c in range(5):
        h = jnp.dot(z_ref[c], w1_ref[c],
                    preferred_element_type=jnp.float32) + b1_ref[c]
        h = jnp.maximum(h, 0.0).astype(jnp.bfloat16)
        h = jnp.dot(h, w2_ref[c],
                    preferred_element_type=jnp.float32) + b2_ref[c]
        h = jnp.maximum(h, 0.0).astype(jnp.bfloat16)
        acc = acc + jnp.dot(h, w3_ref[c], preferred_element_type=jnp.float32)
    o_ref[...] = acc + b3_ref[...]


def mlp_head(z, w1, b1, w2, b2, w3, b3):
    """z: (5, B, 400) -> (B, 19); whole 5-column MLP head fused."""
    _, B, K1 = z.shape
    N = w3.shape[2]
    TB = B if B <= 512 else 512
    nb = pl.cdiv(B, TB)
    return pl.pallas_call(
        _mlp_head_kernel,
        out_shape=jax.ShapeDtypeStruct((B, N), jnp.float32),
        grid=(nb,),
        in_specs=[
            pl.BlockSpec((5, TB, K1), lambda i: (0, i, 0)),
            pl.BlockSpec(w1.shape, lambda i: (0, 0, 0)),
            pl.BlockSpec(b1.shape, lambda i: (0, 0, 0)),
            pl.BlockSpec(w2.shape, lambda i: (0, 0, 0)),
            pl.BlockSpec(b2.shape, lambda i: (0, 0, 0)),
            pl.BlockSpec(w3.shape, lambda i: (0, 0, 0)),
            pl.BlockSpec(b3.shape, lambda i: (0, 0)),
        ],
        out_specs=pl.BlockSpec((TB, N), lambda i: (i, 0)),
        compiler_params=pltpu.CompilerParams(
            dimension_semantics=("parallel",),
            vmem_limit_bytes=32 * 1024 * 1024),
    )(z, w1, b1, w2, b2, w3, b3)


# ---------------------------------------------------------------------------
# Wrapper glue (im2col patch extraction, pool grouping, parameter fusion)
# ---------------------------------------------------------------------------
def im2col(x, k):
    """x: (B, H, W, C) -> (B, H-k+1, W-k+1, k*k*C), patch order (kh, kw, c)."""
    Ho = x.shape[1] - k + 1
    Wo = x.shape[2] - k + 1
    cols = []
    for kh in range(k):
        for kw in range(k):
            cols.append(x[:, kh:kh + Ho, kw:kw + Wo, :])
    return jnp.concatenate(cols, axis=-1)


def pool_grouped_patches(x, k, k_pad):
    """im2col + regroup so axis 1 enumerates the 4 positions of each 2x2 pool
    window; zero-pad the patch (K) dim to k_pad lanes. -> (B, 4, Mp, k_pad)."""
    p = im2col(x, k)                                           # (B, Ho, Wo, K)
    g = jnp.stack([p[:, dh::2, dw::2, :]
                   for dh in (0, 1) for dw in (0, 1)], axis=1)  # (B,4,Hp,Wp,K)
    B, _, Hp, Wp, K = g.shape
    g = g.reshape(B, 4, Hp * Wp, K)
    if k_pad > K:
        g = jnp.pad(g, ((0, 0), (0, 0), (0, 0), (0, k_pad - K)))
    return g.astype(jnp.bfloat16)


def pack_params(cols):
    """Fuse the 5 columns' PyTorch-shaped params into TPU-friendly operands."""
    nc = len(cols)
    # conv1: columns fused along the output-channel axis (shared input).
    w1 = jnp.concatenate(
        [p["conv1_w"].transpose(2, 3, 1, 0).reshape(75, 6) for p in cols],
        axis=1)
    w1 = jnp.pad(w1, ((0, K1_PAD - 75), (0, 0))).astype(jnp.bfloat16)
    b1 = jnp.concatenate([p["conv1_b"] for p in cols]).reshape(1, 6 * nc)

    # conv2: block-diagonal weight (cross-column blocks are exact zeros).
    w2 = jnp.zeros((25, nc, 6, nc, 16), jnp.float32)
    for j, p in enumerate(cols):
        blk = p["conv2_w"].transpose(2, 3, 1, 0).reshape(25, 6, 16)
        w2 = w2.at[:, j, :, j, :].set(blk)
    w2 = w2.reshape(25 * nc * 6, nc * 16)
    w2 = jnp.pad(w2, ((0, K2_PAD - 25 * nc * 6), (0, 0))).astype(jnp.bfloat16)
    b2 = jnp.concatenate([p["conv2_b"] for p in cols]).reshape(1, 16 * nc)

    # fc1: permute torch's NCHW flatten (c*25+hw) to our NHWC flatten (hw*16+c)
    wf1 = jnp.stack([p["fc1_w"].reshape(120, 16, 25).transpose(2, 1, 0)
                     .reshape(400, 120) for p in cols]).astype(jnp.bfloat16)
    bf1 = jnp.stack([p["fc1_b"].reshape(1, 120) for p in cols])
    wf2 = jnp.stack([p["fc2_w"].T for p in cols]).astype(jnp.bfloat16)
    bf2 = jnp.stack([p["fc2_b"].reshape(1, 84) for p in cols])
    wf3 = jnp.stack([p["fc3_w"].T for p in cols]).astype(jnp.bfloat16)
    bf3 = sum(p["fc3_b"] for p in cols).reshape(1, 19)
    return dict(w1=w1, b1=b1, w2=w2, b2=b2,
                wf1=wf1, bf1=bf1, wf2=wf2, bf2=bf2, wf3=wf3, bf3=bf3)


@jax.jit
def mcdnn_forward(x_nchw, cols):
    nc = len(cols)
    x = jnp.transpose(x_nchw.astype(jnp.float32), (0, 2, 3, 1))  # (B,32,32,3)
    B = x.shape[0]
    w = pack_params(cols)

    # conv1 + ReLU + 2x2 pool, all 5 columns fused along N
    p1 = pool_grouped_patches(x, 5, K1_PAD)                      # (B,4,196,128)
    h1 = conv_relu_pool(p1, w["w1"], w["b1"])                    # (B,196,30)
    h1 = h1.reshape(B, 14, 14, 6 * nc)

    # conv2 + ReLU + 2x2 pool, block-diagonal column fusion
    p2 = pool_grouped_patches(h1, 5, K2_PAD)                     # (B,4,25,768)
    h2 = conv_relu_pool(p2, w["w2"], w["b2"])                    # (B,25,80)

    # per-column flatten (hw*16 + c ordering, matched by the fc1 weight permute)
    z = h2.reshape(B, 25, nc, 16).transpose(2, 0, 1, 3).reshape(nc, B, 400)
    return mlp_head(z, w["wf1"], w["bf1"], w["wf2"], w["bf2"],
                    w["wf3"], w["bf3"])                          # (B, 19)


# ---------------------------------------------------------------------------
# Params + pure-JAX reference (mirrors the PyTorch forward exactly, f32 NCHW)
# ---------------------------------------------------------------------------
def init_params(key):
    """Deterministic synthetic params, PyTorch shapes (5 independent columns)."""
    def uniform(k, shape, fan_in):
        bound = 1.0 / (fan_in ** 0.5)
        return jax.random.uniform(k, shape, jnp.float32, -bound, bound)

    cols = []
    for c in range(5):
        ks = jax.random.split(jax.random.fold_in(key, c), 10)
        cols.append(dict(
            conv1_w=uniform(ks[0], (6, 3, 5, 5), 3 * 25),
            conv1_b=uniform(ks[1], (6,), 3 * 25),
            conv2_w=uniform(ks[2], (16, 6, 5, 5), 6 * 25),
            conv2_b=uniform(ks[3], (16,), 6 * 25),
            fc1_w=uniform(ks[4], (120, 400), 400),
            fc1_b=uniform(ks[5], (120,), 400),
            fc2_w=uniform(ks[6], (84, 120), 120),
            fc2_b=uniform(ks[7], (84,), 120),
            fc3_w=uniform(ks[8], (19, 84), 84),
            fc3_b=uniform(ks[9], (19,), 84),
        ))
    return cols


def reference_forward(x_nchw, cols):
    x = x_nchw.astype(jnp.float32)
    B = x.shape[0]
    dn = ("NCHW", "OIHW", "NCHW")
    out = jnp.zeros((B, 19), jnp.float32)
    for p in cols:
        h = lax.conv_general_dilated(x, p["conv1_w"], (1, 1), "VALID",
                                     dimension_numbers=dn)
        h = jnp.maximum(h + p["conv1_b"][None, :, None, None], 0.0)
        h = lax.reduce_window(h, -jnp.inf, lax.max, (1, 1, 2, 2), (1, 1, 2, 2),
                              "VALID")
        h = lax.conv_general_dilated(h, p["conv2_w"], (1, 1), "VALID",
                                     dimension_numbers=dn)
        h = jnp.maximum(h + p["conv2_b"][None, :, None, None], 0.0)
        h = lax.reduce_window(h, -jnp.inf, lax.max, (1, 1, 2, 2), (1, 1, 2, 2),
                              "VALID")
        f = h.reshape(B, 400)
        f = jnp.maximum(f @ p["fc1_w"].T + p["fc1_b"], 0.0)
        f = jnp.maximum(f @ p["fc2_w"].T + p["fc2_b"], 0.0)
        out = out + f @ p["fc3_w"].T + p["fc3_b"]
    return out


if __name__ == "__main__":
    key = jax.random.PRNGKey(0)
    xkey, pkey = jax.random.split(key)
    # LeNet-style architecture needs 32x32 spatial input: 32->28->14->10->5
    x = jax.random.normal(xkey, (2, 3, 32, 32), jnp.float32)
    params = init_params(pkey)

    out = jax.block_until_ready(mcdnn_forward(x, params))
    ref = jax.block_until_ready(reference_forward(x, params))

    assert out.shape == (2, 19) and out.dtype == jnp.float32
    # Tolerance accounts for bf16 matmul operands (accumulation is f32).
    np.testing.assert_allclose(np.asarray(out), np.asarray(ref),
                               rtol=5e-2, atol=5e-2)
    print("KERNEL_OK")
</pallas_src>

<mosaic_0001>
module attributes {stable_mosaic.version = 11 : i64} {
  func.func @_conv_relu_pool_kernel(%arg0: i32, %arg1: memref<1x4x196x128xbf16, #tpu.memory_space<vmem>>, %arg2: memref<128x30xbf16, #tpu.memory_space<vmem>>, %arg3: memref<1x30xf32, #tpu.memory_space<vmem>>, %arg4: memref<1x196x30xbf16, #tpu.memory_space<vmem>>) attributes {dimension_semantics = [#tpu.dimension_semantics<parallel>], iteration_bounds = array<i64: 2>, scalar_prefetch = 0 : i64, scratch_operands = 0 : i64, tpu.core_type = #tpu.core_type<tc>, window_params = [{transform_indices = @transform_0, window_bounds = array<i64: 1, 4, 196, 128>}, {pipeline_mode = #tpu.pipeline_mode<synchronous>, transform_indices = @transform_1, window_bounds = array<i64: 128, 30>}, {pipeline_mode = #tpu.pipeline_mode<synchronous>, transform_indices = @transform_2, window_bounds = array<i64: 1, 30>}, {transform_indices = @transform_3, window_bounds = array<i64: 1, 196, 30>}]} {
    %c0 = arith.constant 0 : index
    %c0_0 = arith.constant 0 : index
    %0 = vector.load %arg2[%c0, %c0_0] : memref<128x30xbf16, #tpu.memory_space<vmem>>, vector<128x30xbf16>
    %c0_1 = arith.constant 0 : index
    %c0_2 = arith.constant 0 : index
    %c0_3 = arith.constant 0 : index
    %c0_4 = arith.constant 0 : index
    %1 = vector.load %arg1[%c0_1, %c0_2, %c0_3, %c0_4] : memref<1x4x196x128xbf16, #tpu.memory_space<vmem>>, vector<1x1x196x128xbf16>
    %2 = vector.shape_cast %1 : vector<1x1x196x128xbf16> to vector<196x128xbf16>
    %cst = arith.constant dense<0.000000e+00> : vector<196x30xf32>
    %3 = tpu.matmul %2, %0, %cst {dimension_numbers = #tpu.dot_dimension_numbers<[1], [0], [0], [1], [0, 0, 1, 1], [], []>} : vector<196x128xbf16>, vector<128x30xbf16>, vector<196x30xf32> -> vector<196x30xf32>
    %c0_5 = arith.constant 0 : index
    %c1 = arith.constant 1 : index
    %c0_6 = arith.constant 0 : index
    %c0_7 = arith.constant 0 : index
    %4 = vector.load %arg1[%c0_5, %c1, %c0_6, %c0_7] : memref<1x4x196x128xbf16, #tpu.memory_space<vmem>>, vector<1x1x196x128xbf16>
    %5 = vector.shape_cast %4 : vector<1x1x196x128xbf16> to vector<196x128xbf16>
    %cst_8 = arith.constant dense<0.000000e+00> : vector<196x30xf32>
    %6 = tpu.matmul %5, %0, %cst_8 {dimension_numbers = #tpu.dot_dimension_numbers<[1], [0], [0], [1], [0, 0, 1, 1], [], []>} : vector<196x128xbf16>, vector<128x30xbf16>, vector<196x30xf32> -> vector<196x30xf32>
    %7 = arith.maximumf %3, %6 : vector<196x30xf32>
    %c0_9 = arith.constant 0 : index
    %c2 = arith.constant 2 : index
    %c0_10 = arith.constant 0 : index
    %c0_11 = arith.constant 0 : index
    %8 = vector.load %arg1[%c0_9, %c2, %c0_10, %c0_11] : memref<1x4x196x128xbf16, #tpu.memory_space<vmem>>, vector<1x1x196x128xbf16>
    %9 = vector.shape_cast %8 : vector<1x1x196x128xbf16> to vector<196x128xbf16>
    %cst_12 = arith.constant dense<0.000000e+00> : vector<196x30xf32>
    %10 = tpu.matmul %9, %0, %cst_12 {dimension_numbers = #tpu.dot_dimension_numbers<[1], [0], [0], [1], [0, 0, 1, 1], [], []>} : vector<196x128xbf16>, vector<128x30xbf16>, vector<196x30xf32> -> vector<196x30xf32>
    %11 = arith.maximumf %7, %10 : vector<196x30xf32>
    %c0_13 = arith.constant 0 : index
    %c3 = arith.constant 3 : index
    %c0_14 = arith.constant 0 : index
    %c0_15 = arith.constant 0 : index
    %12 = vector.load %arg1[%c0_13, %c3, %c0_14, %c0_15] : memref<1x4x196x128xbf16, #tpu.memory_space<vmem>>, vector<1x1x196x128xbf16>
    %13 = vector.shape_cast %12 : vector<1x1x196x128xbf16> to vector<196x128xbf16>
    %cst_16 = arith.constant dense<0.000000e+00> : vector<196x30xf32>
    %14 = tpu.matmul %13, %0, %cst_16 {dimension_numbers = #tpu.dot_dimension_numbers<[1], [0], [0], [1], [0, 0, 1, 1], [], []>} : vector<196x128xbf16>, vector<128x30xbf16>, vector<196x30xf32> -> vector<196x30xf32>
    %15 = arith.maximumf %11, %14 : vector<196x30xf32>
    %c0_17 = arith.constant 0 : index
    %c0_18 = arith.constant 0 : index
    %16 = vector.load %arg3[%c0_17, %c0_18] : memref<1x30xf32, #tpu.memory_space<vmem>>, vector<1x30xf32>
    %17 = vector.broadcast %16 : vector<1x30xf32> to vector<196x30xf32>
    %18 = arith.addf %15, %17 : vector<196x30xf32>
    %cst_19 = arith.constant 0.000000e+00 : f32
    %19 = vector.broadcast %cst_19 : f32 to vector<196x30xf32>
    %20 = arith.maximumf %18, %19 : vector<196x30xf32>
    %21 = arith.truncf %20 : vector<196x30xf32> to vector<196x30xbf16>
    %c0_20 = arith.constant 0 : index
    %c0_21 = arith.constant 0 : index
    %c0_22 = arith.constant 0 : index
    %22 = vector.load %arg4[%c0_20, %c0_21, %c0_22] : memref<1x196x30xbf16, #tpu.memory_space<vmem>>, vector<1x196x30xbf16>
    %23 = vector.shape_cast %22 : vector<1x196x30xbf16> to vector<196x30xbf16>
    %24 = vector.shape_cast %21 : vector<196x30xbf16> to vector<1x196x30xbf16>
    tpu.vector_store %arg4[%c0_20, %c0_21, %c0_22], %24 {strides = array<i32>} : memref<1x196x30xbf16, #tpu.memory_space<vmem>>, vector<1x196x30xbf16>,
    return
  }
  func.func @transform_0(%arg0: i32) -> (i32, i32, i32, i32) {
    %c0_i32 = arith.constant 0 : i32
    %c0_i32_0 = arith.constant 0 : i32
    %c0_i32_1 = arith.constant 0 : i32
    %c0_i32_2 = arith.constant 0 : i32
    return %arg0, %c0_i32, %c0_i32_0, %c0_i32_1 : i32, i32, i32, i32
  }
  func.func @transform_1(%arg0: i32) -> (i32, i32) {
    %c0_i32 = arith.constant 0 : i32
    %c0_i32_0 = arith.constant 0 : i32
    %c0_i32_1 = arith.constant 0 : i32
    return %c0_i32, %c0_i32_0 : i32, i32
  }
  func.func @transform_2(%arg0: i32) -> (i32, i32) {
    %c0_i32 = arith.constant 0 : i32
    %c0_i32_0 = arith.constant 0 : i32
    %c0_i32_1 = arith.constant 0 : i32
    return %c0_i32, %c0_i32_0 : i32, i32
  }
  func.func @transform_3(%arg0: i32) -> (i32, i32, i32) {
    %c0_i32 = arith.constant 0 : i32
    %c0_i32_0 = arith.constant 0 : i32
    %c0_i32_1 = arith.constant 0 : i32
    return %arg0, %c0_i32, %c0_i32_0 : i32, i32, i32
  }
}

module attributes {stable_mosaic.version = 11 : i64} {
  func.func @_conv_relu_pool_kernel(%arg0: i32, %arg1: memref<1x4x25x768xbf16, #tpu.memory_space<vmem>>, %arg2: memref<768x80xbf16, #tpu.memory_space<vmem>>, %arg3: memref<1x80xf32, #tpu.memory_space<vmem>>, %arg4: memref<1x25x80xbf16, #tpu.memory_space<vmem>>) attributes {dimension_semantics = [#tpu.dimension_semantics<parallel>], iteration_bounds = array<i64: 2>, scalar_prefetch = 0 : i64, scratch_operands = 0 : i64, tpu.core_type = #tpu.core_type<tc>, window_params = [{transform_indices = @transform_0, window_bounds = array<i64: 1, 4, 25, 768>}, {pipeline_mode = #tpu.pipeline_mode<synchronous>, transform_indices = @transform_1, window_bounds = array<i64: 768, 80>}, {pipeline_mode = #tpu.pipeline_mode<synchronous>, transform_indices = @transform_2, window_bounds = array<i64: 1, 80>}, {transform_indices = @transform_3, window_bounds = array<i64: 1, 25, 80>}]} {
    %c0 = arith.constant 0 : index
    %c0_0 = arith.constant 0 : index
    %0 = vector.load %arg2[%c0, %c0_0] : memref<768x80xbf16, #tpu.memory_space<vmem>>, vector<768x80xbf16>
    %c0_1 = arith.constant 0 : index
    %c0_2 = arith.constant 0 : index
    %c0_3 = arith.constant 0 : index
    %c0_4 = arith.constant 0 : index
    %1 = vector.load %arg1[%c0_1, %c0_2, %c0_3, %c0_4] : memref<1x4x25x768xbf16, #tpu.memory_space<vmem>>, vector<1x1x25x768xbf16>
    %2 = vector.shape_cast %1 : vector<1x1x25x768xbf16> to vector<25x768xbf16>
    %cst = arith.constant dense<0.000000e+00> : vector<25x80xf32>
    %3 = tpu.matmul %2, %0, %cst {dimension_numbers = #tpu.dot_dimension_numbers<[1], [0], [0], [1], [0, 0, 1, 1], [], []>} : vector<25x768xbf16>, vector<768x80xbf16>, vector<25x80xf32> -> vector<25x80xf32>
    %c0_5 = arith.constant 0 : index
    %c1 = arith.constant 1 : index
    %c0_6 = arith.constant 0 : index
    %c0_7 = arith.constant 0 : index
    %4 = vector.load %arg1[%c0_5, %c1, %c0_6, %c0_7] : memref<1x4x25x768xbf16, #tpu.memory_space<vmem>>, vector<1x1x25x768xbf16>
    %5 = vector.shape_cast %4 : vector<1x1x25x768xbf16> to vector<25x768xbf16>
    %cst_8 = arith.constant dense<0.000000e+00> : vector<25x80xf32>
    %6 = tpu.matmul %5, %0, %cst_8 {dimension_numbers = #tpu.dot_dimension_numbers<[1], [0], [0], [1], [0, 0, 1, 1], [], []>} : vector<25x768xbf16>, vector<768x80xbf16>, vector<25x80xf32> -> vector<25x80xf32>
    %7 = arith.maximumf %3, %6 : vector<25x80xf32>
    %c0_9 = arith.constant 0 : index
    %c2 = arith.constant 2 : index
    %c0_10 = arith.constant 0 : index
    %c0_11 = arith.constant 0 : index
    %8 = vector.load %arg1[%c0_9, %c2, %c0_10, %c0_11] : memref<1x4x25x768xbf16, #tpu.memory_space<vmem>>, vector<1x1x25x768xbf16>
    %9 = vector.shape_cast %8 : vector<1x1x25x768xbf16> to vector<25x768xbf16>
    %cst_12 = arith.constant dense<0.000000e+00> : vector<25x80xf32>
    %10 = tpu.matmul %9, %0, %cst_12 {dimension_numbers = #tpu.dot_dimension_numbers<[1], [0], [0], [1], [0, 0, 1, 1], [], []>} : vector<25x768xbf16>, vector<768x80xbf16>, vector<25x80xf32> -> vector<25x80xf32>
    %11 = arith.maximumf %7, %10 : vector<25x80xf32>
    %c0_13 = arith.constant 0 : index
    %c3 = arith.constant 3 : index
    %c0_14 = arith.constant 0 : index
    %c0_15 = arith.constant 0 : index
    %12 = vector.load %arg1[%c0_13, %c3, %c0_14, %c0_15] : memref<1x4x25x768xbf16, #tpu.memory_space<vmem>>, vector<1x1x25x768xbf16>
    %13 = vector.shape_cast %12 : vector<1x1x25x768xbf16> to vector<25x768xbf16>
    %cst_16 = arith.constant dense<0.000000e+00> : vector<25x80xf32>
    %14 = tpu.matmul %13, %0, %cst_16 {dimension_numbers = #tpu.dot_dimension_numbers<[1], [0], [0], [1], [0, 0, 1, 1], [], []>} : vector<25x768xbf16>, vector<768x80xbf16>, vector<25x80xf32> -> vector<25x80xf32>
    %15 = arith.maximumf %11, %14 : vector<25x80xf32>
    %c0_17 = arith.constant 0 : index
    %c0_18 = arith.constant 0 : index
    %16 = vector.load %arg3[%c0_17, %c0_18] : memref<1x80xf32, #tpu.memory_space<vmem>>, vector<1x80xf32>
    %17 = vector.broadcast %16 : vector<1x80xf32> to vector<25x80xf32>
    %18 = arith.addf %15, %17 : vector<25x80xf32>
    %cst_19 = arith.constant 0.000000e+00 : f32
    %19 = vector.broadcast %cst_19 : f32 to vector<25x80xf32>
    %20 = arith.maximumf %18, %19 : vector<25x80xf32>
    %21 = arith.truncf %20 : vector<25x80xf32> to vector<25x80xbf16>
    %c0_20 = arith.constant 0 : index
    %c0_21 = arith.constant 0 : index
    %c0_22 = arith.constant 0 : index
    %22 = vector.load %arg4[%c0_20, %c0_21, %c0_22] : memref<1x25x80xbf16, #tpu.memory_space<vmem>>, vector<1x25x80xbf16>
    %23 = vector.shape_cast %22 : vector<1x25x80xbf16> to vector<25x80xbf16>
    %24 = vector.shape_cast %21 : vector<25x80xbf16> to vector<1x25x80xbf16>
    tpu.vector_store %arg4[%c0_20, %c0_21, %c0_22], %24 {strides = array<i32>} : memref<1x25x80xbf16, #tpu.memory_space<vmem>>, vector<1x25x80xbf16>,
    return
  }
  func.func @transform_0(%arg0: i32) -> (i32, i32, i32, i32) {
    %c0_i32 = arith.constant 0 : i32
    %c0_i32_0 = arith.constant 0 : i32
    %c0_i32_1 = arith.constant 0 : i32
    %c0_i32_2 = arith.constant 0 : i32
    return %arg0, %c0_i32, %c0_i32_0, %c0_i32_1 : i32, i32, i32, i32
  }
  func.func @transform_1(%arg0: i32) -> (i32, i32) {
    %c0_i32 = arith.constant 0 : i32
    %c0_i32_0 = arith.constant 0 : i32
    %c0_i32_1 = arith.constant 0 : i32
    return %c0_i32, %c0_i32_0 : i32, i32
  }
  func.func @transform_2(%arg0: i32) -> (i32, i32) {
    %c0_i32 = arith.constant 0 : i32
    %c0_i32_0 = arith.constant 0 : i32
    %c0_i32_1 = arith.constant 0 : i32
    return %c0_i32, %c0_i32_0 : i32, i32
  }
  func.func @transform_3(%arg0: i32) -> (i32, i32, i32) {
    %c0_i32 = arith.constant 0 : i32
    %c0_i32_0 = arith.constant 0 : i32
    %c0_i32_1 = arith.constant 0 : i32
    return %arg0, %c0_i32, %c0_i32_0 : i32, i32, i32
  }
}

module attributes {stable_mosaic.version = 11 : i64} {
  func.func @_mlp_head_kernel(%arg0: i32, %arg1: memref<5x2x400xbf16, #tpu.memory_space<vmem>>, %arg2: memref<5x400x120xbf16, #tpu.memory_space<vmem>>, %arg3: memref<5x1x120xf32, #tpu.memory_space<vmem>>, %arg4: memref<5x120x84xbf16, #tpu.memory_space<vmem>>, %arg5: memref<5x1x84xf32, #tpu.memory_space<vmem>>, %arg6: memref<5x84x19xbf16, #tpu.memory_space<vmem>>, %arg7: memref<1x19xf32, #tpu.memory_space<vmem>>, %arg8: memref<2x19xf32, #tpu.memory_space<vmem>>) attributes {dimension_semantics = [#tpu.dimension_semantics<parallel>], iteration_bounds = array<i64: 1>, scalar_prefetch = 0 : i64, scratch_operands = 0 : i64, tpu.core_type = #tpu.core_type<tc>, window_params = [{transform_indices = @transform_0, window_bounds = array<i64: 5, 2, 400>}, {pipeline_mode = #tpu.pipeline_mode<synchronous>, transform_indices = @transform_1, window_bounds = array<i64: 5, 400, 120>}, {pipeline_mode = #tpu.pipeline_mode<synchronous>, transform_indices = @transform_2, window_bounds = array<i64: 5, 1, 120>}, {pipeline_mode = #tpu.pipeline_mode<synchronous>, transform_indices = @transform_3, window_bounds = array<i64: 5, 120, 84>}, {pipeline_mode = #tpu.pipeline_mode<synchronous>, transform_indices = @transform_4, window_bounds = array<i64: 5, 1, 84>}, {pipeline_mode = #tpu.pipeline_mode<synchronous>, transform_indices = @transform_5, window_bounds = array<i64: 5, 84, 19>}, {pipeline_mode = #tpu.pipeline_mode<synchronous>, transform_indices = @transform_6, window_bounds = array<i64: 1, 19>}, {transform_indices = @transform_7, window_bounds = array<i64: 2, 19>}]} {
    %cst = arith.constant 0.000000e+00 : f32
    %0 = vector.broadcast %cst : f32 to vector<2x19xf32>
    %c0 = arith.constant 0 : index
    %c0_0 = arith.constant 0 : index
    %c0_1 = arith.constant 0 : index
    %1 = vector.load %arg1[%c0, %c0_0, %c0_1] : memref<5x2x400xbf16, #tpu.memory_space<vmem>>, vector<1x2x400xbf16>
    %2 = vector.shape_cast %1 : vector<1x2x400xbf16> to vector<2x400xbf16>
    %c0_2 = arith.constant 0 : index
    %c0_3 = arith.constant 0 : index
    %c0_4 = arith.constant 0 : index
    %3 = vector.load %arg2[%c0_2, %c0_3, %c0_4] : memref<5x400x120xbf16, #tpu.memory_space<vmem>>, vector<1x400x120xbf16>
    %4 = vector.shape_cast %3 : vector<1x400x120xbf16> to vector<400x120xbf16>
    %cst_5 = arith.constant dense<0.000000e+00> : vector<2x120xf32>
    %5 = tpu.matmul %2, %4, %cst_5 {dimension_numbers = #tpu.dot_dimension_numbers<[1], [0], [0], [1], [0, 0, 1, 1], [], []>} : vector<2x400xbf16>, vector<400x120xbf16>, vector<2x120xf32> -> vector<2x120xf32>
    %c0_6 = arith.constant 0 : index
    %c0_7 = arith.constant 0 : index
    %c0_8 = arith.constant 0 : index
    %6 = vector.load %arg3[%c0_6, %c0_7, %c0_8] : memref<5x1x120xf32, #tpu.memory_space<vmem>>, vector<1x1x120xf32>
    %7 = vector.shape_cast %6 : vector<1x1x120xf32> to vector<1x120xf32>
    %8 = vector.broadcast %7 : vector<1x120xf32> to vector<2x120xf32>
    %9 = arith.addf %5, %8 : vector<2x120xf32>
    %cst_9 = arith.constant 0.000000e+00 : f32
    %10 = vector.broadcast %cst_9 : f32 to vector<2x120xf32>
    %11 = arith.maximumf %9, %10 : vector<2x120xf32>
    %12 = arith.truncf %11 : vector<2x120xf32> to vector<2x120xbf16>
    %c0_10 = arith.constant 0 : index
    %c0_11 = arith.constant 0 : index
    %c0_12 = arith.constant 0 : index
    %13 = vector.load %arg4[%c0_10, %c0_11, %c0_12] : memref<5x120x84xbf16, #tpu.memory_space<vmem>>, vector<1x120x84xbf16>
    %14 = vector.shape_cast %13 : vector<1x120x84xbf16> to vector<120x84xbf16>
    %cst_13 = arith.constant dense<0.000000e+00> : vector<2x84xf32>
    %15 = tpu.matmul %12, %14, %cst_13 {dimension_numbers = #tpu.dot_dimension_numbers<[1], [0], [0], [1], [0, 0, 1, 1], [], []>} : vector<2x120xbf16>, vector<120x84xbf16>, vector<2x84xf32> -> vector<2x84xf32>
    %c0_14 = arith.constant 0 : index
    %c0_15 = arith.constant 0 : index
    %c0_16 = arith.constant 0 : index
    %16 = vector.load %arg5[%c0_14, %c0_15, %c0_16] : memref<5x1x84xf32, #tpu.memory_space<vmem>>, vector<1x1x84xf32>
    %17 = vector.shape_cast %16 : vector<1x1x84xf32> to vector<1x84xf32>
    %18 = vector.broadcast %17 : vector<1x84xf32> to vector<2x84xf32>
    %19 = arith.addf %15, %18 : vector<2x84xf32>
    %cst_17 = arith.constant 0.000000e+00 : f32
    %20 = vector.broadcast %cst_17 : f32 to vector<2x84xf32>
    %21 = arith.maximumf %19, %20 : vector<2x84xf32>
    %22 = arith.truncf %21 : vector<2x84xf32> to vector<2x84xbf16>
    %c0_18 = arith.constant 0 : index
    %c0_19 = arith.constant 0 : index
    %c0_20 = arith.constant 0 : index
    %23 = vector.load %arg6[%c0_18, %c0_19, %c0_20] : memref<5x84x19xbf16, #tpu.memory_space<vmem>>, vector<1x84x19xbf16>
    %24 = vector.shape_cast %23 : vector<1x84x19xbf16> to vector<84x19xbf16>
    %cst_21 = arith.constant dense<0.000000e+00> : vector<2x19xf32>
    %25 = tpu.matmul %22, %24, %cst_21 {dimension_numbers = #tpu.dot_dimension_numbers<[1], [0], [0], [1], [0, 0, 1, 1], [], []>} : vector<2x84xbf16>, vector<84x19xbf16>, vector<2x19xf32> -> vector<2x19xf32>
    %26 = arith.addf %0, %25 : vector<2x19xf32>
    %c1 = arith.constant 1 : index
    %c0_22 = arith.constant 0 : index
    %c0_23 = arith.constant 0 : index
    %27 = vector.load %arg1[%c1, %c0_22, %c0_23] : memref<5x2x400xbf16, #tpu.memory_space<vmem>>, vector<1x2x400xbf16>
    %28 = vector.shape_cast %27 : vector<1x2x400xbf16> to vector<2x400xbf16>
    %c1_24 = arith.constant 1 : index
    %c0_25 = arith.constant 0 : index
    %c0_26 = arith.constant 0 : index
    %29 = vector.load %arg2[%c1_24, %c0_25, %c0_26] : memref<5x400x120xbf16, #tpu.memory_space<vmem>>, vector<1x400x120xbf16>
    %30 = vector.shape_cast %29 : vector<1x400x120xbf16> to vector<400x120xbf16>
    %cst_27 = arith.constant dense<0.000000e+00> : vector<2x120xf32>
    %31 = tpu.matmul %28, %30, %cst_27 {dimension_numbers = #tpu.dot_dimension_numbers<[1], [0], [0], [1], [0, 0, 1, 1], [], []>} : vector<2x400xbf16>, vector<400x120xbf16>, vector<2x120xf32> -> vector<2x120xf32>
    %c1_28 = arith.constant 1 : index
    %c0_29 = arith.constant 0 : index
    %c0_30 = arith.constant 0 : index
    %32 = vector.load %arg3[%c1_28, %c0_29, %c0_30] : memref<5x1x120xf32, #tpu.memory_space<vmem>>, vector<1x1x120xf32>
    %33 = vector.shape_cast %32 : vector<1x1x120xf32> to vector<1x120xf32>
    %34 = vector.broadcast %33 : vector<1x120xf32> to vector<2x120xf32>
    %35 = arith.addf %31, %34 : vector<2x120xf32>
    %cst_31 = arith.constant 0.000000e+00 : f32
    %36 = vector.broadcast %cst_31 : f32 to vector<2x120xf32>
    %37 = arith.maximumf %35, %36 : vector<2x120xf32>
    %38 = arith.truncf %37 : vector<2x120xf32> to vector<2x120xbf16>
    %c1_32 = arith.constant 1 : index
    %c0_33 = arith.constant 0 : index
    %c0_34 = arith.constant 0 : index
    %39 = vector.load %arg4[%c1_32, %c0_33, %c0_34] : memref<5x120x84xbf16, #tpu.memory_space<vmem>>, vector<1x120x84xbf16>
    %40 = vector.shape_cast %39 : vector<1x120x84xbf16> to vector<120x84xbf16>
    %cst_35 = arith.constant dense<0.000000e+00> : vector<2x84xf32>
    %41 = tpu.matmul %38, %40, %cst_35 {dimension_numbers = #tpu.dot_dimension_numbers<[1], [0], [0], [1], [0, 0, 1, 1], [], []>} : vector<2x120xbf16>, vector<120x84xbf16>, vector<2x84xf32> -> vector<2x84xf32>
    %c1_36 = arith.constant 1 : index
    %c0_37 = arith.constant 0 : index
    %c0_38 = arith.constant 0 : index
    %42 = vector.load %arg5[%c1_36, %c0_37, %c0_38] : memref<5x1x84xf32, #tpu.memory_space<vmem>>, vector<1x1x84xf32>
    %43 = vector.shape_cast %42 : vector<1x1x84xf32> to vector<1x84xf32>
    %44 = vector.broadcast %43 : vector<1x84xf32> to vector<2x84xf32>
    %45 = arith.addf %41, %44 : vector<2x84xf32>
    %cst_39 = arith.constant 0.000000e+00 : f32
    %46 = vector.broadcast %cst_39 : f32 to vector<2x84xf32>
    %47 = arith.maximumf %45, %46 : vector<2x84xf32>
    %48 = arith.truncf %47 : vector<2x84xf32> to vector<2x84xbf16>
    %c1_40 = arith.constant 1 : index
    %c0_41 = arith.constant 0 : index
    %c0_42 = arith.constant 0 : index
    %49 = vector.load %arg6[%c1_40, %c0_41, %c0_42] : memref<5x84x19xbf16, #tpu.memory_space<vmem>>, vector<1x84x19xbf16>
    %50 = vector.shape_cast %49 : vector<1x84x19xbf16> to vector<84x19xbf16>
    %cst_43 = arith.constant dense<0.000000e+00> : vector<2x19xf32>
    %51 = tpu.matmul %48, %50, %cst_43 {dimension_numbers = #tpu.dot_dimension_numbers<[1], [0], [0], [1], [0, 0, 1, 1], [], []>} : vector<2x84xbf16>, vector<84x19xbf16>, vector<2x19xf32> -> vector<2x19xf32>
    %52 = arith.addf %26, %51 : vector<2x19xf32>
    %c2 = arith.constant 2 : index
    %c0_44 = arith.constant 0 : index
    %c0_45 = arith.constant 0 : index
    %53 = vector.load %arg1[%c2, %c0_44, %c0_45] : memref<5x2x400xbf16, #tpu.memory_space<vmem>>, vector<1x2x400xbf16>
    %54 = vector.shape_cast %53 : vector<1x2x400xbf16> to vector<2x400xbf16>
    %c2_46 = arith.constant 2 : index
    %c0_47 = arith.constant 0 : index
    %c0_48 = arith.constant 0 : index
    %55 = vector.load %arg2[%c2_46, %c0_47, %c0_48] : memref<5x400x120xbf16, #tpu.memory_space<vmem>>, vector<1x400x120xbf16>
    %56 = vector.shape_cast %55 : vector<1x400x120xbf16> to vector<400x120xbf16>
    %cst_49 = arith.constant dense<0.000000e+00> : vector<2x120xf32>
    %57 = tpu.matmul %54, %56, %cst_49 {dimension_numbers = #tpu.dot_dimension_numbers<[1], [0], [0], [1], [0, 0, 1, 1], [], []>} : vector<2x400xbf16>, vector<400x120xbf16>, vector<2x120xf32> -> vector<2x120xf32>
    %c2_50 = arith.constant 2 : index
    %c0_51 = arith.constant 0 : index
    %c0_52 = arith.constant 0 : index
    %58 = vector.load %arg3[%c2_50, %c0_51, %c0_52] : memref<5x1x120xf32, #tpu.memory_space<vmem>>, vector<1x1x120xf32>
    %59 = vector.shape_cast %58 : vector<1x1x120xf32> to vector<1x120xf32>
    %60 = vector.broadcast %59 : vector<1x120xf32> to vector<2x120xf32>
    %61 = arith.addf %57, %60 : vector<2x120xf32>
    %cst_53 = arith.constant 0.000000e+00 : f32
    %62 = vector.broadcast %cst_53 : f32 to vector<2x120xf32>
    %63 = arith.maximumf %61, %62 : vector<2x120xf32>
    %64 = arith.truncf %63 : vector<2x120xf32> to vector<2x120xbf16>
    %c2_54 = arith.constant 2 : index
    %c0_55 = arith.constant 0 : index
    %c0_56 = arith.constant 0 : index
    %65 = vector.load %arg4[%c2_54, %c0_55, %c0_56] : memref<5x120x84xbf16, #tpu.memory_space<vmem>>, vector<1x120x84xbf16>
    %66 = vector.shape_cast %65 : vector<1x120x84xbf16> to vector<120x84xbf16>
    %cst_57 = arith.constant dense<0.000000e+00> : vector<2x84xf32>
    %67 = tpu.matmul %64, %66, %cst_57 {dimension_numbers = #tpu.dot_dimension_numbers<[1], [0], [0], [1], [0, 0, 1, 1], [], []>} : vector<2x120xbf16>, vector<120x84xbf16>, vector<2x84xf32> -> vector<2x84xf32>
    %c2_58 = arith.constant 2 : index
    %c0_59 = arith.constant 0 : index
    %c0_60 = arith.constant 0 : index
    %68 = vector.load %arg5[%c2_58, %c0_59, %c0_60] : memref<5x1x84xf32, #tpu.memory_space<vmem>>, vector<1x1x84xf32>
    %69 = vector.shape_cast %68 : vector<1x1x84xf32> to vector<1x84xf32>
    %70 = vector.broadcast %69 : vector<1x84xf32> to vector<2x84xf32>
    %71 = arith.addf %67, %70 : vector<2x84xf32>
    %cst_61 = arith.constant 0.000000e+00 : f32
    %72 = vector.broadcast %cst_61 : f32 to vector<2x84xf32>
    %73 = arith.maximumf %71, %72 : vector<2x84xf32>
    %74 = arith.truncf %73 : vector<2x84xf32> to vector<2x84xbf16>
    %c2_62 = arith.constant 2 : index
    %c0_63 = arith.constant 0 : index
    %c0_64 = arith.constant 0 : index
    %75 = vector.load %arg6[%c2_62, %c0_63, %c0_64] : memref<5x84x19xbf16, #tpu.memory_space<vmem>>, vector<1x84x19xbf16>
    %76 = vector.shape_cast %75 : vector<1x84x19xbf16> to vector<84x19xbf16>
    %cst_65 = arith.constant dense<0.000000e+00> : vector<2x19xf32>
    %77 = tpu.matmul %74, %76, %cst_65 {dimension_numbers = #tpu.dot_dimension_numbers<[1], [0], [0], [1], [0, 0, 1, 1], [], []>} : vector<2x84xbf16>, vector<84x19xbf16>, vector<2x19xf32> -> vector<2x19xf32>
    %78 = arith.addf %52, %77 : vector<2x19xf32>
    %c3 = arith.constant 3 : index
    %c0_66 = arith.constant 0 : index
    %c0_67 = arith.constant 0 : index
    %79 = vector.load %arg1[%c3, %c0_66, %c0_67] : memref<5x2x400xbf16, #tpu.memory_space<vmem>>, vector<1x2x400xbf16>
    %80 = vector.shape_cast %79 : vector<1x2x400xbf16> to vector<2x400xbf16>
    %c3_68 = arith.constant 3 : index
    %c0_69 = arith.constant 0 : index
    %c0_70 = arith.constant 0 : index
    %81 = vector.load %arg2[%c3_68, %c0_69, %c0_70] : memref<5x400x120xbf16, #tpu.memory_space<vmem>>, vector<1x400x120xbf16>
    %82 = vector.shape_cast %81 : vector<1x400x120xbf16> to vector<400x120xbf16>
    %cst_71 = arith.constant dense<0.000000e+00> : vector<2x120xf32>
    %83 = tpu.matmul %80, %82, %cst_71 {dimension_numbers = #tpu.dot_dimension_numbers<[1], [0], [0], [1], [0, 0, 1, 1], [], []>} : vector<2x400xbf16>, vector<400x120xbf16>, vector<2x120xf32> -> vector<2x120xf32>
    %c3_72 = arith.constant 3 : index
    %c0_73 = arith.constant 0 : index
    %c0_74 = arith.constant 0 : index
    %84 = vector.load %arg3[%c3_72, %c0_73, %c0_74] : memref<5x1x120xf32, #tpu.memory_space<vmem>>, vector<1x1x120xf32>
    %85 = vector.shape_cast %84 : vector<1x1x120xf32> to vector<1x120xf32>
    %86 = vector.broadcast %85 : vector<1x120xf32> to vector<2x120xf32>
    %87 = arith.addf %83, %86 : vector<2x120xf32>
    %cst_75 = arith.constant 0.000000e+00 : f32
    %88 = vector.broadcast %cst_75 : f32 to vector<2x120xf32>
    %89 = arith.maximumf %87, %88 : vector<2x120xf32>
    %90 = arith.truncf %89 : vector<2x120xf32> to vector<2x120xbf16>
    %c3_76 = arith.constant 3 : index
    %c0_77 = arith.constant 0 : index
    %c0_78 = arith.constant 0 : index
    %91 = vector.load %arg4[%c3_76, %c0_77, %c0_78] : memref<5x120x84xbf16, #tpu.memory_space<vmem>>, vector<1x120x84xbf16>
    %92 = vector.shape_cast %91 : vector<1x120x84xbf16> to vector<120x84xbf16>
    %cst_79 = arith.constant dense<0.000000e+00> : vector<2x84xf32>
    %93 = tpu.matmul %90, %92, %cst_79 {dimension_numbers = #tpu.dot_dimension_numbers<[1], [0], [0], [1], [0, 0, 1, 1], [], []>} : vector<2x120xbf16>, vector<120x84xbf16>, vector<2x84xf32> -> vector<2x84xf32>
    %c3_80 = arith.constant 3 : index
    %c0_81 = arith.constant 0 : index
    %c0_82 = arith.constant 0 : index
    %94 = vector.load %arg5[%c3_80, %c0_81, %c0_82] : memref<5x1x84xf32, #tpu.memory_space<vmem>>, vector<1x1x84xf32>
    %95 = vector.shape_cast %94 : vector<1x1x84xf32> to vector<1x84xf32>
    %96 = vector.broadcast %95 : vector<1x84xf32> to vector<2x84xf32>
    %97 = arith.addf %93, %96 : vector<2x84xf32>
    %cst_83 = arith.constant 0.000000e+00 : f32
    %98 = vector.broadcast %cst_83 : f32 to vector<2x84xf32>
    %99 = arith.maximumf %97, %98 : vector<2x84xf32>
    %100 = arith.truncf %99 : vector<2x84xf32> to vector<2x84xbf16>
    %c3_84 = arith.constant 3 : index
    %c0_85 = arith.constant 0 : index
    %c0_86 = arith.constant 0 : index
    %101 = vector.load %arg6[%c3_84, %c0_85, %c0_86] : memref<5x84x19xbf16, #tpu.memory_space<vmem>>, vector<1x84x19xbf16>
    %102 = vector.shape_cast %101 : vector<1x84x19xbf16> to vector<84x19xbf16>
    %cst_87 = arith.constant dense<0.000000e+00> : vector<2x19xf32>
    %103 = tpu.matmul %100, %102, %cst_87 {dimension_numbers = #tpu.dot_dimension_numbers<[1], [0], [0], [1], [0, 0, 1, 1], [], []>} : vector<2x84xbf16>, vector<84x19xbf16>, vector<2x19xf32> -> vector<2x19xf32>
    %104 = arith.addf %78, %103 : vector<2x19xf32>
    %c4 = arith.constant 4 : index
    %c0_88 = arith.constant 0 : index
    %c0_89 = arith.constant 0 : index
    %105 = vector.load %arg1[%c4, %c0_88, %c0_89] : memref<5x2x400xbf16, #tpu.memory_space<vmem>>, vector<1x2x400xbf16>
    %106 = vector.shape_cast %105 : vector<1x2x400xbf16> to vector<2x400xbf16>
    %c4_90 = arith.constant 4 : index
    %c0_91 = arith.constant 0 : index
    %c0_92 = arith.constant 0 : index
    %107 = vector.load %arg2[%c4_90, %c0_91, %c0_92] : memref<5x400x120xbf16, #tpu.memory_space<vmem>>, vector<1x400x120xbf16>
    %108 = vector.shape_cast %107 : vector<1x400x120xbf16> to vector<400x120xbf16>
    %cst_93 = arith.constant dense<0.000000e+00> : vector<2x120xf32>
    %109 = tpu.matmul %106, %108, %cst_93 {dimension_numbers = #tpu.dot_dimension_numbers<[1], [0], [0], [1], [0, 0, 1, 1], [], []>} : vector<2x400xbf16>, vector<400x120xbf16>, vector<2x120xf32> -> vector<2x120xf32>
    %c4_94 = arith.constant 4 : index
    %c0_95 = arith.constant 0 : index
    %c0_96 = arith.constant 0 : index
    %110 = vector.load %arg3[%c4_94, %c0_95, %c0_96] : memref<5x1x120xf32, #tpu.memory_space<vmem>>, vector<1x1x120xf32>
    %111 = vector.shape_cast %110 : vector<1x1x120xf32> to vector<1x120xf32>
    %112 = vector.broadcast %111 : vector<1x120xf32> to vector<2x120xf32>
    %113 = arith.addf %109, %112 : vector<2x120xf32>
    %cst_97 = arith.constant 0.000000e+00 : f32
    %114 = vector.broadcast %cst_97 : f32 to vector<2x120xf32>
    %115 = arith.maximumf %113, %114 : vector<2x120xf32>
    %116 = arith.truncf %115 : vector<2x120xf32> to vector<2x120xbf16>
    %c4_98 = arith.constant 4 : index
    %c0_99 = arith.constant 0 : index
    %c0_100 = arith.constant 0 : index
    %117 = vector.load %arg4[%c4_98, %c0_99, %c0_100] : memref<5x120x84xbf16, #tpu.memory_space<vmem>>, vector<1x120x84xbf16>
    %118 = vector.shape_cast %117 : vector<1x120x84xbf16> to vector<120x84xbf16>
    %cst_101 = arith.constant dense<0.000000e+00> : vector<2x84xf32>
    %119 = tpu.matmul %116, %118, %cst_101 {dimension_numbers = #tpu.dot_dimension_numbers<[1], [0], [0], [1], [0, 0, 1, 1], [], []>} : vector<2x120xbf16>, vector<120x84xbf16>, vector<2x84xf32> -> vector<2x84xf32>
    %c4_102 = arith.constant 4 : index
    %c0_103 = arith.constant 0 : index
    %c0_104 = arith.constant 0 : index
    %120 = vector.load %arg5[%c4_102, %c0_103, %c0_104] : memref<5x1x84xf32, #tpu.memory_space<vmem>>, vector<1x1x84xf32>
    %121 = vector.shape_cast %120 : vector<1x1x84xf32> to vector<1x84xf32>
    %122 = vector.broadcast %121 : vector<1x84xf32> to vector<2x84xf32>
    %123 = arith.addf %119, %122 : vector<2x84xf32>
    %cst_105 = arith.constant 0.000000e+00 : f32
    %124 = vector.broadcast %cst_105 : f32 to vector<2x84xf32>
    %125 = arith.maximumf %123, %124 : vector<2x84xf32>
    %126 = arith.truncf %125 : vector<2x84xf32> to vector<2x84xbf16>
    %c4_106 = arith.constant 4 : index
    %c0_107 = arith.constant 0 : index
    %c0_108 = arith.constant 0 : index
    %127 = vector.load %arg6[%c4_106, %c0_107, %c0_108] : memref<5x84x19xbf16, #tpu.memory_space<vmem>>, vector<1x84x19xbf16>
    %128 = vector.shape_cast %127 : vector<1x84x19xbf16> to vector<84x19xbf16>
    %cst_109 = arith.constant dense<0.000000e+00> : vector<2x19xf32>
    %129 = tpu.matmul %126, %128, %cst_109 {dimension_numbers = #tpu.dot_dimension_numbers<[1], [0], [0], [1], [0, 0, 1, 1], [], []>} : vector<2x84xbf16>, vector<84x19xbf16>, vector<2x19xf32> -> vector<2x19xf32>
    %130 = arith.addf %104, %129 : vector<2x19xf32>
    %c0_110 = arith.constant 0 : index
    %c0_111 = arith.constant 0 : index
    %131 = vector.load %arg7[%c0_110, %c0_111] : memref<1x19xf32, #tpu.memory_space<vmem>>, vector<1x19xf32>
    %132 = vector.broadcast %131 : vector<1x19xf32> to vector<2x19xf32>
    %133 = arith.addf %130, %132 : vector<2x19xf32>
    %c0_112 = arith.constant 0 : index
    %c0_113 = arith.constant 0 : index
    %134 = vector.load %arg8[%c0_112, %c0_113] : memref<2x19xf32, #tpu.memory_space<vmem>>, vector<2x19xf32>
    tpu.vector_store %arg8[%c0_112, %c0_113], %133 {strides = array<i32>} : memref<2x19xf32, #tpu.memory_space<vmem>>, vector<2x19xf32>,
    return
  }
  func.func @transform_0(%arg0: i32) -> (i32, i32, i32) {
    %c0_i32 = arith.constant 0 : i32
    %c0_i32_0 = arith.constant 0 : i32
    %c0_i32_1 = arith.constant 0 : i32
    return %c0_i32, %arg0, %c0_i32_0 : i32, i32, i32
  }
  func.func @transform_1(%arg0: i32) -> (i32, i32, i32) {
    %c0_i32 = arith.constant 0 : i32
    %c0_i32_0 = arith.constant 0 : i32
    %c0_i32_1 = arith.constant 0 : i32
    %c0_i32_2 = arith.constant 0 : i32
    return %c0_i32, %c0_i32_0, %c0_i32_1 : i32, i32, i32
  }
  func.func @transform_2(%arg0: i32) -> (i32, i32, i32) {
    %c0_i32 = arith.constant 0 : i32
    %c0_i32_0 = arith.constant 0 : i32
    %c0_i32_1 = arith.constant 0 : i32
    %c0_i32_2 = arith.constant 0 : i32
    return %c0_i32, %c0_i32_0, %c0_i32_1 : i32, i32, i32
  }
  func.func @transform_3(%arg0: i32) -> (i32, i32, i32) {
    %c0_i32 = arith.constant 0 : i32
    %c0_i32_0 = arith.constant 0 : i32
    %c0_i32_1 = arith.constant 0 : i32
    %c0_i32_2 = arith.constant 0 : i32
    return %c0_i32, %c0_i32_0, %c0_i32_1 : i32, i32, i32
  }
  func.func @transform_4(%arg0: i32) -> (i32, i32, i32) {
    %c0_i32 = arith.constant 0 : i32
    %c0_i32_0 = arith.constant 0 : i32
    %c0_i32_1 = arith.constant 0 : i32
    %c0_i32_2 = arith.constant 0 : i32
    return %c0_i32, %c0_i32_0, %c0_i32_1 : i32, i32, i32
  }
  func.func @transform_5(%arg0: i32) -> (i32, i32, i32) {
    %c0_i32 = arith.constant 0 : i32
    %c0_i32_0 = arith.constant 0 : i32
    %c0_i32_1 = arith.constant 0 : i32
    %c0_i32_2 = arith.constant 0 : i32
    return %c0_i32, %c0_i32_0, %c0_i32_1 : i32, i32, i32
  }
  func.func @transform_6(%arg0: i32) -> (i32, i32) {
    %c0_i32 = arith.constant 0 : i32
    %c0_i32_0 = arith.constant 0 : i32
    %c0_i32_1 = arith.constant 0 : i32
    return %c0_i32, %c0_i32_0 : i32, i32
  }
  func.func @transform_7(%arg0: i32) -> (i32, i32) {
    %c0_i32 = arith.constant 0 : i32
    %c0_i32_0 = arith.constant 0 : i32
    return %arg0, %c0_i32 : i32, i32
  }
}

</mosaic_0001>

<llo_original>
// kernel: mcdnn_forward.3
$region0: #{mcdnn_forward.3}
  #allocation0 [shape = 'u32[]', space=smem, size = 0x4, offset = 0x4, fixed_abs, tag = 'smem constant byte address 0x4 - core index']
  #allocation1 [shape = 'u32[144,128]{1,0:T(1,128)}', space=vmem, size = 0x12000, scoped, tag = 'internal scratch']
  %s0 = inlined_call_operand.vmem [shape: bf16[2,4,196,128], index: 0, kind: input, shape index: {}]
  %s1 = inlined_call_operand.vmem [shape: bf16[128,30], index: 1, kind: input, shape index: {}]
  %s2 = inlined_call_operand.vmem [shape: f32[1,30], index: 2, kind: input, shape index: {}]
  %s3 = inlined_call_operand.vmem [shape: bf16[2,196,30], index: 3, kind: output, shape index: {}]
  %s4 = sld [smem:[#allocation0]]
  $region45: #{mcdnn_forward.3} parent=0
    _
  %s6 = ssub.s32 1, %s4
  %s7 = scalar_select 0, %s6, %s4
  loop: start=0, step=1, limit=4
  $region2: #{mcdnn_forward.3} parent=0 // loop_pre_header
    _
  $region3: #{mcdnn_forward.3} parent=0 // loop_header
    %s9 = sphi 0, %s13
    %p10 = scmp.ge.s32.totalorder %s9, 4
    %s19 = sphi 0, %s21
    %s22 = sphi 0, %s19
    %s23 = sphi 0, %s22
    %s39 = sphi 0, %s23
    %s43 = sphi 0, %s43
    %s45 = sphi 0, %s43
    %s46 = sphi 0, %s45
    %s60 = sphi 0, %s46
    %s64 = sphi 0, %s64
    %s66 = sphi 0, %s64
    %s67 = sphi 0, %s66
    %s81 = sphi 0, %s67
    %s87 = sphi 0, %s89
    %s90 = sphi 0, %s87
    %s91 = sphi 0, %s90
    %s107 = sphi 0, %s91
  $region4: #{mcdnn_forward.3} parent=0 // loop_header_branch
    %12 = sbr.rel (%p10) target = $region8
  $region5: #{mcdnn_forward.3} parent=0 // loop_body
    %s14 = ssub.s32 %s9, 1
    %s15 = ssub.s32 %s9, 2
    %s16 = sadd.s32 %s9, 1
    %s17 = ssub.s32 %s9, %s16
    %p18 = scmp.eq.s32.totalorder %s17, 0
    %s20 = sadd.s32 %s19, 1
    %s21 = scalar_select %p18, %s19, %s20
    %p24 = pneg %p18
    %p25 = scmp.eq.s32.totalorder %s9, 1
    %p26 = por %p24, %p25
    %p27 = scmp.ne.s32.totalorder %s19, %s22
    %p28 = scmp.eq.s32.totalorder %s9, 0
    %p29 = por %p27, %p28
    %p30 = scmp.ne.s32.totalorder %s19, %s22
    %p31 = scmp.eq.s32.totalorder %s14, 1
    %p32 = por %p30, %p31
    %p33 = scmp.ne.s32.totalorder %s22, %s23
    %p34 = scmp.eq.s32.totalorder %s14, 0
    %p35 = por %p33, %p34
    %p36 = scmp.ne.s32.totalorder %s22, %s23
    %p37 = scmp.eq.s32.totalorder %s15, 1
    %p38 = por %p36, %p37
    %p40 = scmp.ne.s32.totalorder %s23, %s39
    %p41 = scmp.eq.s32.totalorder %s15, 0
    %p42 = por %p40, %p41
    %s44 = sadd.s32 %s43, 1
    %p47 = scmp.eq.s32.totalorder %s9, 1
    %p48 = scmp.ne.s32.totalorder %s43, %s45
    %p49 = scmp.eq.s32.totalorder %s9, 0
    %p50 = por %p48, %p49
    %p51 = scmp.ne.s32.totalorder %s43, %s45
    %p52 = scmp.eq.s32.totalorder %s14, 1
    %p53 = por %p51, %p52
    %p54 = scmp.ne.s32.totalorder %s45, %s46
    %p55 = scmp.eq.s32.totalorder %s14, 0
    %p56 = por %p54, %p55
    %p57 = scmp.ne.s32.totalorder %s45, %s46
    %p58 = scmp.eq.s32.totalorder %s15, 1
    %p59 = por %p57, %p58
    %p61 = scmp.ne.s32.totalorder %s46, %s60
    %p62 = scmp.eq.s32.totalorder %s15, 0
    %p63 = por %p61, %p62
    %s65 = sadd.s32 %s64, 1
    %p68 = scmp.eq.s32.totalorder %s9, 1
    %p69 = scmp.ne.s32.totalorder %s64, %s66
    %p70 = scmp.eq.s32.totalorder %s9, 0
    %p71 = por %p69, %p70
    %p72 = scmp.ne.s32.totalorder %s64, %s66
    %p73 = scmp.eq.s32.totalorder %s14, 1
    %p74 = por %p72, %p73
    %p75 = scmp.ne.s32.totalorder %s66, %s67
    %p76 = scmp.eq.s32.totalorder %s14, 0
    %p77 = por %p75, %p76
    %p78 = scmp.ne.s32.totalorder %s66, %s67
    %p79 = scmp.eq.s32.totalorder %s15, 1
    %p80 = por %p78, %p79
    %p82 = scmp.ne.s32.totalorder %s67, %s81
    %p83 = scmp.eq.s32.totalorder %s15, 0
    %p84 = por %p82, %p83
    %s85 = ssub.s32 %s9, %s16
    %p86 = scmp.eq.s32.totalorder %s85, 0
    %s88 = sadd.s32 %s87, 1
    %s89 = scalar_select %p86, %s87, %s88
    %p92 = pneg %p86
    %p93 = scmp.eq.s32.totalorder %s9, 1
    %p94 = por %p92, %p93
    %p95 = scmp.ne.s32.totalorder %s87, %s90
    %p96 = scmp.eq.s32.totalorder %s9, 0
    %p97 = por %p95, %p96
    %p98 = scmp.ne.s32.totalorder %s87, %s90
    %p99 = scmp.eq.s32.totalorder %s14, 1
    %p100 = por %p98, %p99
    %p101 = scmp.ne.s32.totalorder %s90, %s91
    %p102 = scmp.eq.s32.totalorder %s14, 0
    %p103 = por %p101, %p102
    %p104 = scmp.ne.s32.totalorder %s90, %s91
    %p105 = scmp.eq.s32.totalorder %s15, 1
    %p106 = por %p104, %p105
    %p108 = scmp.ne.s32.totalorder %s91, %s107
    %p109 = scmp.eq.s32.totalorder %s15, 0
    %p110 = por %p108, %p109
    %p111 = scmp.le.s32.totalorder 1, %s9
    %p112 = scmp.lt.s32.totalorder %s9, 3
    %p113 = pnand %p111, %p112
    %p114 = pneg %p113
    // Predicated region
    $region9: #{mcdnn_forward.3} parent=5 // pred_check
      _
    $region10: #{mcdnn_forward.3} parent=5 // pred_check_branch
      %116 = sbr.rel (%p113) target = $region12
    $region11: #{mcdnn_forward.3} parent=5 // pred_region
      %s117 = ssub.s32 %s9, 1
      // Predicated region
      $region13: #{mcdnn_forward.3} parent=11 // pred_check
        %p118 = pneg %p56
      $region14: #{mcdnn_forward.3} parent=11 // pred_check_branch
        %120 = sbr.rel (%p118) target = $region16
      $region15: #{mcdnn_forward.3} parent=11 // pred_region
        _
      $region16: #{mcdnn_forward.3} parent=11 // pred_fallthru
        _
      // Predicated region
      $region17: #{mcdnn_forward.3} parent=11 // pred_check
        %p121 = pneg %p77
      $region18: #{mcdnn_forward.3} parent=11 // pred_check_branch
        %123 = sbr.rel (%p121) target = $region20
      $region19: #{mcdnn_forward.3} parent=11 // pred_region
        _
      $region20: #{mcdnn_forward.3} parent=11 // pred_fallthru
        _
    $region12: #{mcdnn_forward.3} parent=5 // pred_fallthru
      _
    %p124 = scmp.lt.s32.totalorder %s9, 2
    // Predicated region
    $region21: #{mcdnn_forward.3} parent=5 // pred_check
      %p125 = pneg %p124
    $region22: #{mcdnn_forward.3} parent=5 // pred_check_branch
      %127 = sbr.rel (%p125) target = $region24
    $region23: #{mcdnn_forward.3} parent=5 // pred_region
      // Predicated region
      $region25: #{mcdnn_forward.3} parent=23 // pred_check
        %p128 = pneg %p29
      $region26: #{mcdnn_forward.3} parent=23 // pred_check_branch
        %130 = sbr.rel (%p128) target = $region28
      $region27: #{mcdnn_forward.3} parent=23 // pred_region
        %p131 = scmp.lt.s32.totalorder %s9, 1
        %s132 = scalar_select %p131, %s9, 1
        %s133 = smul.addr %s132, 100
        %s134 = smul.addr %s133, 4
        %s135 = scalar_lea.vmem %s0, %s134
      $region28: #{mcdnn_forward.3} parent=23 // pred_fallthru
        _
    $region24: #{mcdnn_forward.3} parent=5 // pred_fallthru
      _
    %p136 = scmp.le.s32.totalorder 1, %s9
    %p137 = scmp.lt.s32.totalorder %s9, 3
    %p138 = pnand %p136, %p137
    %p139 = pneg %p138
    // Predicated region
    $region29: #{mcdnn_forward.3} parent=5 // pred_check
      _
    $region30: #{mcdnn_forward.3} parent=5 // pred_check_branch
      %141 = sbr.rel (%p138) target = $region32
    $region31: #{mcdnn_forward.3} parent=5 // pred_region
      %s142 = ssub.s32 %s9, 1
      %p143 = scmp.lt.s32.totalorder %s14, 1
      %s144 = scalar_select %p143, %s14, 1
      %s145 = smul.addr %s144, 100
      %s146 = smul.addr %s145, 4
      %s147 = scalar_lea.vmem %s0, %s146
      %p148 = pneg %p35
      %p149 = pneg %p32
      %p150 = pneg %p56
      %p151 = pneg %p53
      %p152 = pneg %p77
      %p153 = pneg %p74
      %p154 = pneg %p103
      %p155 = pneg %p100
      %p156 = scmp.lt.s32.totalorder %s14, 1
      %s157 = scalar_select %p156, %s14, 1
      %s158 = smul.addr %s157, 25
      %s159 = smul.addr %s158, 4
      %s160 = scalar_lea.vmem %s3, %s159
      %p161 = scmp.lt.s32.totalorder %s14, 1
      %s162 = scalar_select %p161, %s14, 1
      %s163 = smul.addr %s162, 100
      %s164 = smul.addr %s163, 4
      %s165 = scalar_lea.vmem %s0, %s164
      %p166 = scmp.lt.s32.totalorder %s14, 1
      %s167 = scalar_select %p166, %s14, 1
      %s168 = smul.addr %s167, 25
      %s169 = smul.addr %s168, 4
      %s170 = scalar_lea.vmem %s3, %s169
      %v172 = vld [vmem:[%s1] sm:$0xf]
      %v173 = vld [vmem:[%s1 + $0x4] sm:$0xf]
      %v174 = vld [vmem:[%s1 + $0x8] sm:$0xf]
      %v175 = vld [vmem:[%s1 + $0xc] sm:$0xf]
      %v176 = vld [vmem:[%s1 + $0x10] sm:$0xf]
      %v177 = vld [vmem:[%s1 + $0x14] sm:$0xf]
      %v178 = vld [vmem:[%s1 + $0x18] sm:$0xf]
      %v179 = vld [vmem:[%s1 + $0x1c] sm:$0xf]
      %v180 = vld [vmem:[%s1 + $0x20] sm:$0xf]
      %v181 = vld [vmem:[%s1 + $0x24] sm:$0xf]
      %v182 = vld [vmem:[%s1 + $0x28] sm:$0xf]
      %v183 = vld [vmem:[%s1 + $0x2c] sm:$0xf]
      %v184 = vld [vmem:[%s1 + $0x30] sm:$0xf]
      %v185 = vld [vmem:[%s1 + $0x34] sm:$0xf]
      %v186 = vld [vmem:[%s1 + $0x38] sm:$0xf]
      %v187 = vld [vmem:[%s1 + $0x3c] sm:$0xf]
      %v188 = vld [vmem:[%s165] sm:$0xf]
      %v189 = vld [vmem:[%s165 + $0x4] sm:$0xf]
      %v190 = vld [vmem:[%s165 + $0x8] sm:$0xf]
      %v191 = vld [vmem:[%s165 + $0xc] sm:$0xf]
      %v192 = vld [vmem:[%s165 + $0x10] sm:$0xf]
      %v193 = vld [vmem:[%s165 + $0x14] sm:$0xf]
      %v194 = vld [vmem:[%s165 + $0x18] sm:$0xf]
      %v195 = vld [vmem:[%s165 + $0x1c] sm:$0xf]
      %v196 = vld [vmem:[%s165 + $0x20] sm:$0xf]
      %v197 = vld [vmem:[%s165 + $0x24] sm:$0xf]
      %v198 = vld [vmem:[%s165 + $0x28] sm:$0xf]
      %v199 = vld [vmem:[%s165 + $0x2c] sm:$0xf]
      %v200 = vld [vmem:[%s165 + $0x30] sm:$0xf]
      %v201 = vld [vmem:[%s165 + $0x34] sm:$0xf]
      %v202 = vld [vmem:[%s165 + $0x38] sm:$0xf]
      %v203 = vld [vmem:[%s165 + $0x3c] sm:$0xf]
      %v204 = vld [vmem:[%s165 + $0x40] sm:$0xf]
      %v205 = vld [vmem:[%s165 + $0x44] sm:$0xf]
      %v206 = vld [vmem:[%s165 + $0x48] sm:$0xf]
      %v207 = vld [vmem:[%s165 + $0x4c] sm:$0xf]
      %v208 = vld [vmem:[%s165 + $0x50] sm:$0xf]
      %v209 = vld [vmem:[%s165 + $0x54] sm:$0xf]
      %v210 = vld [vmem:[%s165 + $0x58] sm:$0xf]
      %v211 = vld [vmem:[%s165 + $0x5c] sm:$0xf]
      %v212 = vld [vmem:[%s165 + $0x60] sm:$0x3]
      %v238 = vunpack.c.l.b16 %v188
      %v239 = vunpack.c.l.b16 %v189
      %v240 = vunpack.c.l.b16 %v190
      %v241 = vunpack.c.l.b16 %v191
      %v242 = vunpack.c.l.b16 %v192
      %v243 = vunpack.c.l.b16 %v193
      %v244 = vunpack.c.l.b16 %v194
      %v245 = vunpack.c.l.b16 %v195
      %v246 = vunpack.c.l.b16 %v196
      %v247 = vunpack.c.l.b16 %v197
      %v248 = vunpack.c.l.b16 %v198
      %v249 = vunpack.c.l.b16 %v199
      %v250 = vunpack.c.l.b16 %v200
      %v251 = vunpack.c.l.b16 %v201
      %v252 = vunpack.c.l.b16 %v202
      %v253 = vunpack.c.l.b16 %v203
      %v254 = vunpack.c.l.b16 %v204
      %v255 = vunpack.c.l.b16 %v205
      %v256 = vunpack.c.l.b16 %v206
      %v257 = vunpack.c.l.b16 %v207
      %v258 = vunpack.c.l.b16 %v208
      %v259 = vunpack.c.l.b16 %v209
      %v260 = vunpack.c.l.b16 %v210
      %v261 = vunpack.c.l.b16 %v211
      %v262 = vunpack.c.l.b16 %v212
      %v263 = vpack.c.b16 %v239, %v238
      %v264 = vpack.c.b16 %v241, %v240
      %v265 = vpack.c.b16 %v243, %v242
      %v266 = vpack.c.b16 %v245, %v244
      %v267 = vpack.c.b16 %v247, %v246
      %v268 = vpack.c.b16 %v249, %v248
      %v269 = vpack.c.b16 %v251, %v250
      %v270 = vpack.c.b16 %v253, %v252
      %v271 = vpack.c.b16 %v255, %v254
      %v272 = vpack.c.b16 %v257, %v256
      %v273 = vpack.c.b16 %v259, %v258
      %v274 = vpack.c.b16 %v261, %v260
      %v275 = vpack.c.b16 %v262, %v262
      %v305 = vunpack.c.l.b16 %v172
      %v306 = vunpack.c.l.b16 %v173
      %v307 = vunpack.c.l.b16 %v174
      %v308 = vunpack.c.l.b16 %v175
      %v309 = vunpack.c.l.b16 %v176
      %v310 = vunpack.c.l.b16 %v177
      %v311 = vunpack.c.l.b16 %v178
      %v312 = vunpack.c.l.b16 %v179
      %v313 = vunpack.c.l.b16 %v180
      %v314 = vunpack.c.l.b16 %v181
      %v315 = vunpack.c.l.b16 %v182
      %v316 = vunpack.c.l.b16 %v183
      %v317 = vunpack.c.l.b16 %v184
      %v318 = vunpack.c.l.b16 %v185
      %v319 = vunpack.c.l.b16 %v186
      %v320 = vunpack.c.l.b16 %v187
      %v321 = vpack.c.b16 %v306, %v305
      %v322 = vpack.c.b16 %v308, %v307
      %v323 = vpack.c.b16 %v310, %v309
      %v324 = vpack.c.b16 %v312, %v311
      %v325 = vpack.c.b16 %v314, %v313
      %v326 = vpack.c.b16 %v316, %v315
      %v327 = vpack.c.b16 %v318, %v317
      %v328 = vpack.c.b16 %v320, %v319
      %337 = vmatprep.subr.bf16.mxu0 0
      %338 = vmatpush1.bf16.msra.mxu0 %v321
      %339 = vmatprep.subr.bf16.mxu0 0
      %340 = vmatpush1.bf16.msra.mxu0 %v322
      %341 = vmatprep.subr.bf16.mxu0 0
      %342 = vmatpush1.bf16.msra.mxu0 %v323
      %343 = vmatprep.subr.bf16.mxu0 0
      %344 = vmatpush1.bf16.msra.mxu0 %v324
      %345 = vmatprep.subr.bf16.mxu0 0
      %346 = vmatpush1.bf16.msra.mxu0 %v325
      %347 = vmatprep.subr.bf16.mxu0 0
      %348 = vmatpush1.bf16.msra.mxu0 %v326
      %349 = vmatprep.subr.bf16.mxu0 0
      %350 = vmatpush1.bf16.msra.mxu0 %v327
      %351 = vmatprep.subr.bf16.mxu0 0
      %352 = vmatpush1.bf16.msra.mxu0 %v328
      %353 = vmatprep.subr.bf16.mxu0 0
      %354 = vmatpush1.bf16.msra.mxu0 0
      %355 = vmatprep.subr.bf16.mxu0 0
      %356 = vmatpush1.bf16.msra.mxu0 0
      %357 = vmatprep.subr.bf16.mxu0 0
      %358 = vmatpush1.bf16.msra.mxu0 0
      %359 = vmatprep.subr.bf16.mxu0 0
      %360 = vmatpush1.bf16.msra.mxu0 0
      %361 = vmatprep.subr.bf16.mxu0 0
      %362 = vmatpush1.bf16.msra.mxu0 0
      %363 = vmatprep.subr.bf16.mxu0 0
      %364 = vmatpush1.bf16.msra.mxu0 0
      %365 = vmatprep.subr.bf16.mxu0 0
      %366 = vmatpush1.bf16.msra.mxu0 0
      %367 = vmatprep.subr.bf16.mxu0 0
      %368 = vmatpush1.bf16.msra.mxu0 0
      %369 = vmatprep.mubr.bf16.mxu0 0
      %370 = vmatmul.mubr.bf16.gmra.mrb[0].mxu0 %v263
      %v371 = vpop.f32.mrb[0].mxu0
      %v372 = vadd.f32 0.0, %v371
      %v373 = vpop.f32.mrb[0].mxu0
      %v374 = vpop.f32.mrb[0].mxu0
      %v375 = vadd.f32 0.0, %v374
      %v376 = vpop.f32.mrb[0].mxu0
      %377 = vmatprep.mubr.bf16.mxu0 0
      %378 = vmatmul.mubr.bf16.gmra.mrb[0].mxu0 %v264
      %v379 = vpop.f32.mrb[0].mxu0
      %v380 = vadd.f32 0.0, %v379
      %v381 = vpop.f32.mrb[0].mxu0
      %v382 = vpop.f32.mrb[0].mxu0
      %v383 = vadd.f32 0.0, %v382
      %v384 = vpop.f32.mrb[0].mxu0
      %385 = vmatprep.mubr.bf16.mxu0 0
      %386 = vmatmul.mubr.bf16.gmra.mrb[0].mxu0 %v265
      %v387 = vpop.f32.mrb[0].mxu0
      %v388 = vadd.f32 0.0, %v387
      %v389 = vpop.f32.mrb[0].mxu0
      %v390 = vpop.f32.mrb[0].mxu0
      %v391 = vadd.f32 0.0, %v390
      %v392 = vpop.f32.mrb[0].mxu0
      %393 = vmatprep.mubr.bf16.mxu0 0
      %394 = vmatmul.mubr.bf16.gmra.mrb[0].mxu0 %v266
      %v395 = vpop.f32.mrb[0].mxu0
      %v396 = vadd.f32 0.0, %v395
      %v397 = vpop.f32.mrb[0].mxu0
      %v398 = vpop.f32.mrb[0].mxu0
      %v399 = vadd.f32 0.0, %v398
      %v400 = vpop.f32.mrb[0].mxu0
      %401 = vmatprep.mubr.bf16.mxu0 0
      %402 = vmatmul.mubr.bf16.gmra.mrb[0].mxu0 %v267
      %v403 = vpop.f32.mrb[0].mxu0
      %v404 = vadd.f32 0.0, %v403
      %v405 = vpop.f32.mrb[0].mxu0
      %v406 = vpop.f32.mrb[0].mxu0
      %v407 = vadd.f32 0.0, %v406
      %v408 = vpop.f32.mrb[0].mxu0
      %409 = vmatprep.mubr.bf16.mxu0 0
      %410 = vmatmul.mubr.bf16.gmra.mrb[0].mxu0 %v268
      %v411 = vpop.f32.mrb[0].mxu0
      %v412 = vadd.f32 0.0, %v411
      %v413 = vpop.f32.mrb[0].mxu0
      %v414 = vpop.f32.mrb[0].mxu0
      %v415 = vadd.f32 0.0, %v414
      %v416 = vpop.f32.mrb[0].mxu0
      %417 = vmatprep.mubr.bf16.mxu0 0
      %418 = vmatmul.mubr.bf16.gmra.mrb[0].mxu0 %v269
      %v419 = vpop.f32.mrb[0].mxu0
      %v420 = vadd.f32 0.0, %v419
      %v421 = vpop.f32.mrb[0].mxu0
      %v422 = vpop.f32.mrb[0].mxu0
      %v423 = vadd.f32 0.0, %v422
      %v424 = vpop.f32.mrb[0].mxu0
      %425 = vmatprep.mubr.bf16.mxu0 0
      %426 = vmatmul.mubr.bf16.gmra.mrb[0].mxu0 %v270
      %v427 = vpop.f32.mrb[0].mxu0
      %v428 = vadd.f32 0.0, %v427
      %v429 = vpop.f32.mrb[0].mxu0
      %v430 = vpop.f32.mrb[0].mxu0
      %v431 = vadd.f32 0.0, %v430
      %v432 = vpop.f32.mrb[0].mxu0
      %433 = vmatprep.mubr.bf16.mxu0 0
      %434 = vmatmul.mubr.bf16.gmra.mrb[0].mxu0 %v271
      %v435 = vpop.f32.mrb[0].mxu0
      %v436 = vadd.f32 0.0, %v435
      %v437 = vpop.f32.mrb[0].mxu0
      %v438 = vpop.f32.mrb[0].mxu0
      %v439 = vadd.f32 0.0, %v438
      %v440 = vpop.f32.mrb[0].mxu0
      %441 = vmatprep.mubr.bf16.mxu0 0
      %442 = vmatmul.mubr.bf16.gmra.mrb[0].mxu0 %v272
      %v443 = vpop.f32.mrb[0].mxu0
      %v444 = vadd.f32 0.0, %v443
      %v445 = vpop.f32.mrb[0].mxu0
      %v446 = vpop.f32.mrb[0].mxu0
      %v447 = vadd.f32 0.0, %v446
      %v448 = vpop.f32.mrb[0].mxu0
      %449 = vmatprep.mubr.bf16.mxu0 0
      %450 = vmatmul.mubr.bf16.gmra.mrb[0].mxu0 %v273
      %v451 = vpop.f32.mrb[0].mxu0
      %v452 = vadd.f32 0.0, %v451
      %v453 = vpop.f32.mrb[0].mxu0
      %v454 = vpop.f32.mrb[0].mxu0
      %v455 = vadd.f32 0.0, %v454
      %v456 = vpop.f32.mrb[0].mxu0
      %457 = vmatprep.mubr.bf16.mxu0 0
      %458 = vmatmul.mubr.bf16.gmra.mrb[0].mxu0 %v274
      %v459 = vpop.f32.mrb[0].mxu0
      %v460 = vadd.f32 0.0, %v459
      %v461 = vpop.f32.mrb[0].mxu0
      %v462 = vpop.f32.mrb[0].mxu0
      %v463 = vadd.f32 0.0, %v462
      %v464 = vpop.f32.mrb[0].mxu0
      %465 = vmatprep.mubr.bf16.mxu0 0
      %466 = vmatmul.mubr.bf16.gmra.mrb[0].mxu0 %v275
      %v467 = vpop.f32.mrb[0].mxu0
      %v468 = vadd.f32 0.0, %v467
      %v469 = vpop.f32.mrb[0].mxu0
      %v470 = vpop.f32.mrb[0].mxu0
      %v471 = vpop.f32.mrb[0].mxu0
      %472 = vdwg.mxu0
      %s473 = scalar_lea.vmem %s165, 100
      %v474 = vld [vmem:[%s473] sm:$0xf]
      %v475 = vld [vmem:[%s473 + $0x4] sm:$0xf]
      %v476 = vld [vmem:[%s473 + $0x8] sm:$0xf]
      %v477 = vld [vmem:[%s473 + $0xc] sm:$0xf]
      %v478 = vld [vmem:[%s473 + $0x10] sm:$0xf]
      %v479 = vld [vmem:[%s473 + $0x14] sm:$0xf]
      %v480 = vld [vmem:[%s473 + $0x18] sm:$0xf]
      %v481 = vld [vmem:[%s473 + $0x1c] sm:$0xf]
      %v482 = vld [vmem:[%s473 + $0x20] sm:$0xf]
      %v483 = vld [vmem:[%s473 + $0x24] sm:$0xf]
      %v484 = vld [vmem:[%s473 + $0x28] sm:$0xf]
      %v485 = vld [vmem:[%s473 + $0x2c] sm:$0xf]
      %v486 = vld [vmem:[%s473 + $0x30] sm:$0xf]
      %v487 = vld [vmem:[%s473 + $0x34] sm:$0xf]
      %v488 = vld [vmem:[%s473 + $0x38] sm:$0xf]
      %v489 = vld [vmem:[%s473 + $0x3c] sm:$0xf]
      %v490 = vld [vmem:[%s473 + $0x40] sm:$0xf]
      %v491 = vld [vmem:[%s473 + $0x44] sm:$0xf]
      %v492 = vld [vmem:[%s473 + $0x48] sm:$0xf]
      %v493 = vld [vmem:[%s473 + $0x4c] sm:$0xf]
      %v494 = vld [vmem:[%s473 + $0x50] sm:$0xf]
      %v495 = vld [vmem:[%s473 + $0x54] sm:$0xf]
      %v496 = vld [vmem:[%s473 + $0x58] sm:$0xf]
      %v497 = vld [vmem:[%s473 + $0x5c] sm:$0xf]
      %v498 = vld [vmem:[%s473 + $0x60] sm:$0x3]
      %v524 = vunpack.c.l.b16 %v474
      %v525 = vunpack.c.l.b16 %v475
      %v526 = vunpack.c.l.b16 %v476
      %v527 = vunpack.c.l.b16 %v477
      %v528 = vunpack.c.l.b16 %v478
      %v529 = vunpack.c.l.b16 %v479
      %v530 = vunpack.c.l.b16 %v480
      %v531 = vunpack.c.l.b16 %v481
      %v532 = vunpack.c.l.b16 %v482
      %v533 = vunpack.c.l.b16 %v483
      %v534 = vunpack.c.l.b16 %v484
      %v535 = vunpack.c.l.b16 %v485
      %v536 = vunpack.c.l.b16 %v486
      %v537 = vunpack.c.l.b16 %v487
      %v538 = vunpack.c.l.b16 %v488
      %v539 = vunpack.c.l.b16 %v489
      %v540 = vunpack.c.l.b16 %v490
      %v541 = vunpack.c.l.b16 %v491
      %v542 = vunpack.c.l.b16 %v492
      %v543 = vunpack.c.l.b16 %v493
      %v544 = vunpack.c.l.b16 %v494
      %v545 = vunpack.c.l.b16 %v495
      %v546 = vunpack.c.l.b16 %v496
      %v547 = vunpack.c.l.b16 %v497
      %v548 = vunpack.c.l.b16 %v498
      %v549 = vpack.c.b16 %v525, %v524
      %v550 = vpack.c.b16 %v527, %v526
      %v551 = vpack.c.b16 %v529, %v528
      %v552 = vpack.c.b16 %v531, %v530
      %v553 = vpack.c.b16 %v533, %v532
      %v554 = vpack.c.b16 %v535, %v534
      %v555 = vpack.c.b16 %v537, %v536
      %v556 = vpack.c.b16 %v539, %v538
      %v557 = vpack.c.b16 %v541, %v540
      %v558 = vpack.c.b16 %v543, %v542
      %v559 = vpack.c.b16 %v545, %v544
      %v560 = vpack.c.b16 %v547, %v546
      %v561 = vpack.c.b16 %v548, %v548
      %575 = vmatprep.subr.bf16.mxu0 0
      %576 = vmatpush1.bf16.msra.mxu0 %v321
      %577 = vmatprep.subr.bf16.mxu0 0
      %578 = vmatpush1.bf16.msra.mxu0 %v322
      %579 = vmatprep.subr.bf16.mxu0 0
      %580 = vmatpush1.bf16.msra.mxu0 %v323
      %581 = vmatprep.subr.bf16.mxu0 0
      %582 = vmatpush1.bf16.msra.mxu0 %v324
      %583 = vmatprep.subr.bf16.mxu0 0
      %584 = vmatpush1.bf16.msra.mxu0 %v325
      %585 = vmatprep.subr.bf16.mxu0 0
      %586 = vmatpush1.bf16.msra.mxu0 %v326
      %587 = vmatprep.subr.bf16.mxu0 0
      %588 = vmatpush1.bf16.msra.mxu0 %v327
      %589 = vmatprep.subr.bf16.mxu0 0
      %590 = vmatpush1.bf16.msra.mxu0 %v328
      %591 = vmatprep.subr.bf16.mxu0 0
      %592 = vmatpush1.bf16.msra.mxu0 0
      %593 = vmatprep.subr.bf16.mxu0 0
      %594 = vmatpush1.bf16.msra.mxu0 0
      %595 = vmatprep.subr.bf16.mxu0 0
      %596 = vmatpush1.bf16.msra.mxu0 0
      %597 = vmatprep.subr.bf16.mxu0 0
      %598 = vmatpush1.bf16.msra.mxu0 0
      %599 = vmatprep.subr.bf16.mxu0 0
      %600 = vmatpush1.bf16.msra.mxu0 0
      %601 = vmatprep.subr.bf16.mxu0 0
      %602 = vmatpush1.bf16.msra.mxu0 0
      %603 = vmatprep.subr.bf16.mxu0 0
      %604 = vmatpush1.bf16.msra.mxu0 0
      %605 = vmatprep.subr.bf16.mxu0 0
      %606 = vmatpush1.bf16.msra.mxu0 0
      %607 = vmatprep.mubr.bf16.mxu0 0
      %608 = vmatmul.mubr.bf16.gmra.mrb[0].mxu0 %v549
      %v609 = vpop.f32.mrb[0].mxu0
      %v610 = vadd.f32 0.0, %v609
      %v611 = vpop.f32.mrb[0].mxu0
      %v612 = vpop.f32.mrb[0].mxu0
      %v613 = vadd.f32 0.0, %v612
      %v614 = vpop.f32.mrb[0].mxu0
      %615 = vmatprep.mubr.bf16.mxu0 0
      %616 = vmatmul.mubr.bf16.gmra.mrb[0].mxu0 %v550
      %v617 = vpop.f32.mrb[0].mxu0
      %v618 = vadd.f32 0.0, %v617
      %v619 = vpop.f32.mrb[0].mxu0
      %v620 = vpop.f32.mrb[0].mxu0
      %v621 = vadd.f32 0.0, %v620
      %v622 = vpop.f32.mrb[0].mxu0
      %623 = vmatprep.mubr.bf16.mxu0 0
      %624 = vmatmul.mubr.bf16.gmra.mrb[0].mxu0 %v551
      %v625 = vpop.f32.mrb[0].mxu0
      %v626 = vadd.f32 0.0, %v625
      %v627 = vpop.f32.mrb[0].mxu0
      %v628 = vpop.f32.mrb[0].mxu0
      %v629 = vadd.f32 0.0, %v628
      %v630 = vpop.f32.mrb[0].mxu0
      %631 = vmatprep.mubr.bf16.mxu0 0
      %632 = vmatmul.mubr.bf16.gmra.mrb[0].mxu0 %v552
      %v633 = vpop.f32.mrb[0].mxu0
      %v634 = vadd.f32 0.0, %v633
      %v635 = vpop.f32.mrb[0].mxu0
      %v636 = vpop.f32.mrb[0].mxu0
      %v637 = vadd.f32 0.0, %v636
      %v638 = vpop.f32.mrb[0].mxu0
      %639 = vmatprep.mubr.bf16.mxu0 0
      %640 = vmatmul.mubr.bf16.gmra.mrb[0].mxu0 %v553
      %v641 = vpop.f32.mrb[0].mxu0
      %v642 = vadd.f32 0.0, %v641
      %v643 = vpop.f32.mrb[0].mxu0
      %v644 = vpop.f32.mrb[0].mxu0
      %v645 = vadd.f32 0.0, %v644
      %v646 = vpop.f32.mrb[0].mxu0
      %647 = vmatprep.mubr.bf16.mxu0 0
      %648 = vmatmul.mubr.bf16.gmra.mrb[0].mxu0 %v554
      %v649 = vpop.f32.mrb[0].mxu0
      %v650 = vadd.f32 0.0, %v649
      %v651 = vpop.f32.mrb[0].mxu0
      %v652 = vpop.f32.mrb[0].mxu0
      %v653 = vadd.f32 0.0, %v652
      %v654 = vpop.f32.mrb[0].mxu0
      %655 = vmatprep.mubr.bf16.mxu0 0
      %656 = vmatmul.mubr.bf16.gmra.mrb[0].mxu0 %v555
      %v657 = vpop.f32.mrb[0].mxu0
      %v658 = vadd.f32 0.0, %v657
      %v659 = vpop.f32.mrb[0].mxu0
      %v660 = vpop.f32.mrb[0].mxu0
      %v661 = vadd.f32 0.0, %v660
      %v662 = vpop.f32.mrb[0].mxu0
      %663 = vmatprep.mubr.bf16.mxu0 0
      %664 = vmatmul.mubr.bf16.gmra.mrb[0].mxu0 %v556
      %v665 = vpop.f32.mrb[0].mxu0
      %v666 = vadd.f32 0.0, %v665
      %v667 = vpop.f32.mrb[0].mxu0
      %v668 = vpop.f32.mrb[0].mxu0
      %v669 = vadd.f32 0.0, %v668
      %v670 = vpop.f32.mrb[0].mxu0
      %671 = vmatprep.mubr.bf16.mxu0 0
      %672 = vmatmul.mubr.bf16.gmra.mrb[0].mxu0 %v557
      %v673 = vpop.f32.mrb[0].mxu0
      %v674 = vadd.f32 0.0, %v673
      %v675 = vpop.f32.mrb[0].mxu0
      %v676 = vpop.f32.mrb[0].mxu0
      %v677 = vadd.f32 0.0, %v676
      %v678 = vpop.f32.mrb[0].mxu0
      %679 = vmatprep.mubr.bf16.mxu0 0
      %680 = vmatmul.mubr.bf16.gmra.mrb[0].mxu0 %v558
      %v681 = vpop.f32.mrb[0].mxu0
      %v682 = vadd.f32 0.0, %v681
      %v683 = vpop.f32.mrb[0].mxu0
      %v684 = vpop.f32.mrb[0].mxu0
      %v685 = vadd.f32 0.0, %v684
      %v686 = vpop.f32.mrb[0].mxu0
      %687 = vmatprep.mubr.bf16.mxu0 0
      %688 = vmatmul.mubr.bf16.gmra.mrb[0].mxu0 %v559
      %v689 = vpop.f32.mrb[0].mxu0
      %v690 = vadd.f32 0.0, %v689
      %v691 = vpop.f32.mrb[0].mxu0
      %v692 = vpop.f32.mrb[0].mxu0
      %v693 = vadd.f32 0.0, %v692
      %v694 = vpop.f32.mrb[0].mxu0
      %695 = vmatprep.mubr.bf16.mxu0 0
      %696 = vmatmul.mubr.bf16.gmra.mrb[0].mxu0 %v560
      %v697 = vpop.f32.mrb[0].mxu0
      %v698 = vadd.f32 0.0, %v697
      %v699 = vpop.f32.mrb[0].mxu0
      %v700 = vpop.f32.mrb[0].mxu0
      %v701 = vadd.f32 0.0, %v700
      %v702 = vpop.f32.mrb[0].mxu0
      %703 = vmatprep.mubr.bf16.mxu0 0
      %704 = vmatmul.mubr.bf16.gmra.mrb[0].mxu0 %v561
      %v705 = vpop.f32.mrb[0].mxu0
      %v706 = vadd.f32 0.0, %v705
      %v707 = vpop.f32.mrb[0].mxu0
      %v708 = vpop.f32.mrb[0].mxu0
      %v709 = vpop.f32.mrb[0].mxu0
      %710 = vdwg.mxu0
      %v711 = vmax.f32 %v372, %v610
      %v712 = vmax.f32 %v375, %v613
      %v713 = vmax.f32 %v380, %v618
      %v714 = vmax.f32 %v383, %v621
      %v715 = vmax.f32 %v388, %v626
      %v716 = vmax.f32 %v391, %v629
      %v717 = vmax.f32 %v396, %v634
      %v718 = vmax.f32 %v399, %v637
      %v719 = vmax.f32 %v404, %v642
      %v720 = vmax.f32 %v407, %v645
      %v721 = vmax.f32 %v412, %v650
      %v722 = vmax.f32 %v415, %v653
      %v723 = vmax.f32 %v420, %v658
      %v724 = vmax.f32 %v423, %v661
      %v725 = vmax.f32 %v428, %v666
      %v726 = vmax.f32 %v431, %v669
      %v727 = vmax.f32 %v436, %v674
      %v728 = vmax.f32 %v439, %v677
      %v729 = vmax.f32 %v444, %v682
      %v730 = vmax.f32 %v447, %v685
      %v731 = vmax.f32 %v452, %v690
      %v732 = vmax.f32 %v455, %v693
      %v733 = vmax.f32 %v460, %v698
      %v734 = vmax.f32 %v463, %v701
      %v735 = vmax.f32 %v468, %v706
      %s736 = scalar_lea.vmem %s165, 200
      %v737 = vld [vmem:[%s736] sm:$0xf]
      %v738 = vld [vmem:[%s736 + $0x4] sm:$0xf]
      %v739 = vld [vmem:[%s736 + $0x8] sm:$0xf]
      %v740 = vld [vmem:[%s736 + $0xc] sm:$0xf]
      %v741 = vld [vmem:[%s736 + $0x10] sm:$0xf]
      %v742 = vld [vmem:[%s736 + $0x14] sm:$0xf]
      %v743 = vld [vmem:[%s736 + $0x18] sm:$0xf]
      %v744 = vld [vmem:[%s736 + $0x1c] sm:$0xf]
      %v745 = vld [vmem:[%s736 + $0x20] sm:$0xf]
      %v746 = vld [vmem:[%s736 + $0x24] sm:$0xf]
      %v747 = vld [vmem:[%s736 + $0x28] sm:$0xf]
      %v748 = vld [vmem:[%s736 + $0x2c] sm:$0xf]
      %v749 = vld [vmem:[%s736 + $0x30] sm:$0xf]
      %v750 = vld [vmem:[%s736 + $0x34] sm:$0xf]
      %v751 = vld [vmem:[%s736 + $0x38] sm:$0xf]
      %v752 = vld [vmem:[%s736 + $0x3c] sm:$0xf]
      %v753 = vld [vmem:[%s736 + $0x40] sm:$0xf]
      %v754 = vld [vmem:[%s736 + $0x44] sm:$0xf]
      %v755 = vld [vmem:[%s736 + $0x48] sm:$0xf]
      %v756 = vld [vmem:[%s736 + $0x4c] sm:$0xf]
      %v757 = vld [vmem:[%s736 + $0x50] sm:$0xf]
      %v758 = vld [vmem:[%s736 + $0x54] sm:$0xf]
      %v759 = vld [vmem:[%s736 + $0x58] sm:$0xf]
      %v760 = vld [vmem:[%s736 + $0x5c] sm:$0xf]
      %v761 = vld [vmem:[%s736 + $0x60] sm:$0x3]
      %v787 = vunpack.c.l.b16 %v737
      %v788 = vunpack.c.l.b16 %v738
      %v789 = vunpack.c.l.b16 %v739
      %v790 = vunpack.c.l.b16 %v740
      %v791 = vunpack.c.l.b16 %v741
      %v792 = vunpack.c.l.b16 %v742
      %v793 = vunpack.c.l.b16 %v743
      %v794 = vunpack.c.l.b16 %v744
      %v795 = vunpack.c.l.b16 %v745
      %v796 = vunpack.c.l.b16 %v746
      %v797 = vunpack.c.l.b16 %v747
      %v798 = vunpack.c.l.b16 %v748
      %v799 = vunpack.c.l.b16 %v749
      %v800 = vunpack.c.l.b16 %v750
      %v801 = vunpack.c.l.b16 %v751
      %v802 = vunpack.c.l.b16 %v752
      %v803 = vunpack.c.l.b16 %v753
      %v804 = vunpack.c.l.b16 %v754
      %v805 = vunpack.c.l.b16 %v755
      %v806 = vunpack.c.l.b16 %v756
      %v807 = vunpack.c.l.b16 %v757
      %v808 = vunpack.c.l.b16 %v758
      %v809 = vunpack.c.l.b16 %v759
      %v810 = vunpack.c.l.b16 %v760
      %v811 = vunpack.c.l.b16 %v761
      %v812 = vpack.c.b16 %v788, %v787
      %v813 = vpack.c.b16 %v790, %v789
      %v814 = vpack.c.b16 %v792, %v791
      %v815 = vpack.c.b16 %v794, %v793
      %v816 = vpack.c.b16 %v796, %v795
      %v817 = vpack.c.b16 %v798, %v797
      %v818 = vpack.c.b16 %v800, %v799
      %v819 = vpack.c.b16 %v802, %v801
      %v820 = vpack.c.b16 %v804, %v803
      %v821 = vpack.c.b16 %v806, %v805
      %v822 = vpack.c.b16 %v808, %v807
      %v823 = vpack.c.b16 %v810, %v809
      %v824 = vpack.c.b16 %v811, %v811
      %838 = vmatprep.subr.bf16.mxu0 0
      %839 = vmatpush1.bf16.msra.mxu0 %v321
      %840 = vmatprep.subr.bf16.mxu0 0
      %841 = vmatpush1.bf16.msra.mxu0 %v322
      %842 = vmatprep.subr.bf16.mxu0 0
      %843 = vmatpush1.bf16.msra.mxu0 %v323
      %844 = vmatprep.subr.bf16.mxu0 0
      %845 = vmatpush1.bf16.msra.mxu0 %v324
      %846 = vmatprep.subr.bf16.mxu0 0
      %847 = vmatpush1.bf16.msra.mxu0 %v325
      %848 = vmatprep.subr.bf16.mxu0 0
      %849 = vmatpush1.bf16.msra.mxu0 %v326
      %850 = vmatprep.subr.bf16.mxu0 0
      %851 = vmatpush1.bf16.msra.mxu0 %v327
      %852 = vmatprep.subr.bf16.mxu0 0
      %853 = vmatpush1.bf16.msra.mxu0 %v328
      %854 = vmatprep.subr.bf16.mxu0 0
      %855 = vmatpush1.bf16.msra.mxu0 0
      %856 = vmatprep.subr.bf16.mxu0 0
      %857 = vmatpush1.bf16.msra.mxu0 0
      %858 = vmatprep.subr.bf16.mxu0 0
      %859 = vmatpush1.bf16.msra.mxu0 0
      %860 = vmatprep.subr.bf16.mxu0 0
      %861 = vmatpush1.bf16.msra.mxu0 0
      %862 = vmatprep.subr.bf16.mxu0 0
      %863 = vmatpush1.bf16.msra.mxu0 0
      %864 = vmatprep.subr.bf16.mxu0 0
      %865 = vmatpush1.bf16.msra.mxu0 0
      %866 = vmatprep.subr.bf16.mxu0 0
      %867 = vmatpush1.bf16.msra.mxu0 0
      %868 = vmatprep.subr.bf16.mxu0 0
      %869 = vmatpush1.bf16.msra.mxu0 0
      %870 = vmatprep.mubr.bf16.mxu0 0
      %871 = vmatmul.mubr.bf16.gmra.mrb[0].mxu0 %v812
      %v872 = vpop.f32.mrb[0].mxu0
      %v873 = vadd.f32 0.0, %v872
      %v874 = vpop.f32.mrb[0].mxu0
      %v875 = vpop.f32.mrb[0].mxu0
      %v876 = vadd.f32 0.0, %v875
      %v877 = vpop.f32.mrb[0].mxu0
      %878 = vmatprep.mubr.bf16.mxu0 0
      %879 = vmatmul.mubr.bf16.gmra.mrb[0].mxu0 %v813
      %v880 = vpop.f32.mrb[0].mxu0
      %v881 = vadd.f32 0.0, %v880
      %v882 = vpop.f32.mrb[0].mxu0
      %v883 = vpop.f32.mrb[0].mxu0
      %v884 = vadd.f32 0.0, %v883
      %v885 = vpop.f32.mrb[0].mxu0
      %886 = vmatprep.mubr.bf16.mxu0 0
      %887 = vmatmul.mubr.bf16.gmra.mrb[0].mxu0 %v814
      %v888 = vpop.f32.mrb[0].mxu0
      %v889 = vadd.f32 0.0, %v888
      %v890 = vpop.f32.mrb[0].mxu0
      %v891 = vpop.f32.mrb[0].mxu0
      %v892 = vadd.f32 0.0, %v891
      %v893 = vpop.f32.mrb[0].mxu0
      %894 = vmatprep.mubr.bf16.mxu0 0
      %895 = vmatmul.mubr.bf16.gmra.mrb[0].mxu0 %v815
      %v896 = vpop.f32.mrb[0].mxu0
      %v897 = vadd.f32 0.0, %v896
      %v898 = vpop.f32.mrb[0].mxu0
      %v899 = vpop.f32.mrb[0].mxu0
      %v900 = vadd.f32 0.0, %v899
      %v901 = vpop.f32.mrb[0].mxu0
      %902 = vmatprep.mubr.bf16.mxu0 0
      %903 = vmatmul.mubr.bf16.gmra.mrb[0].mxu0 %v816
      %v904 = vpop.f32.mrb[0].mxu0
      %v905 = vadd.f32 0.0, %v904
      %v906 = vpop.f32.mrb[0].mxu0
      %v907 = vpop.f32.mrb[0].mxu0
      %v908 = vadd.f32 0.0, %v907
      %v909 = vpop.f32.mrb[0].mxu0
      %910 = vmatprep.mubr.bf16.mxu0 0
      %911 = vmatmul.mubr.bf16.gmra.mrb[0].mxu0 %v817
      %v912 = vpop.f32.mrb[0].mxu0
      %v913 = vadd.f32 0.0, %v912
      %v914 = vpop.f32.mrb[0].mxu0
      %v915 = vpop.f32.mrb[0].mxu0
      %v916 = vadd.f32 0.0, %v915
      %v917 = vpop.f32.mrb[0].mxu0
      %918 = vmatprep.mubr.bf16.mxu0 0
      %919 = vmatmul.mubr.bf16.gmra.mrb[0].mxu0 %v818
      %v920 = vpop.f32.mrb[0].mxu0
      %v921 = vadd.f32 0.0, %v920
      %v922 = vpop.f32.mrb[0].mxu0
      %v923 = vpop.f32.mrb[0].mxu0
      %v924 = vadd.f32 0.0, %v923
      %v925 = vpop.f32.mrb[0].mxu0
      %926 = vmatprep.mubr.bf16.mxu0 0
      %927 = vmatmul.mubr.bf16.gmra.mrb[0].mxu0 %v819
      %v928 = vpop.f32.mrb[0].mxu0
      %v929 = vadd.f32 0.0, %v928
      %v930 = vpop.f32.mrb[0].mxu0
      %v931 = vpop.f32.mrb[0].mxu0
      %v932 = vadd.f32 0.0, %v931
      %v933 = vpop.f32.mrb[0].mxu0
      %934 = vmatprep.mubr.bf16.mxu0 0
      %935 = vmatmul.mubr.bf16.gmra.mrb[0].mxu0 %v820
      %v936 = vpop.f32.mrb[0].mxu0
      %v937 = vadd.f32 0.0, %v936
      %v938 = vpop.f32.mrb[0].mxu0
      %v939 = vpop.f32.mrb[0].mxu0
      %v940 = vadd.f32 0.0, %v939
      %v941 = vpop.f32.mrb[0].mxu0
      %942 = vmatprep.mubr.bf16.mxu0 0
      %943 = vmatmul.mubr.bf16.gmra.mrb[0].mxu0 %v821
      %v944 = vpop.f32.mrb[0].mxu0
      %v945 = vadd.f32 0.0, %v944
      %v946 = vpop.f32.mrb[0].mxu0
      %v947 = vpop.f32.mrb[0].mxu0
      %v948 = vadd.f32 0.0, %v947
      %v949 = vpop.f32.mrb[0].mxu0
      %950 = vmatprep.mubr.bf16.mxu0 0
      %951 = vmatmul.mubr.bf16.gmra.mrb[0].mxu0 %v822
      %v952 = vpop.f32.mrb[0].mxu0
      %v953 = vadd.f32 0.0, %v952
      %v954 = vpop.f32.mrb[0].mxu0
      %v955 = vpop.f32.mrb[0].mxu0
      %v956 = vadd.f32 0.0, %v955
      %v957 = vpop.f32.mrb[0].mxu0
      %958 = vmatprep.mubr.bf16.mxu0 0
      %959 = vmatmul.mubr.bf16.gmra.mrb[0].mxu0 %v823
      %v960 = vpop.f32.mrb[0].mxu0
      %v961 = vadd.f32 0.0, %v960
      %v962 = vpop.f32.mrb[0].mxu0
      %v963 = vpop.f32.mrb[0].mxu0
      %v964 = vadd.f32 0.0, %v963
      %v965 = vpop.f32.mrb[0].mxu0
      %966 = vmatprep.mubr.bf16.mxu0 0
      %967 = vmatmul.mubr.bf16.gmra.mrb[0].mxu0 %v824
      %v968 = vpop.f32.mrb[0].mxu0
      %v969 = vadd.f32 0.0, %v968
      %v970 = vpop.f32.mrb[0].mxu0
      %v971 = vpop.f32.mrb[0].mxu0
      %v972 = vpop.f32.mrb[0].mxu0
      %973 = vdwg.mxu0
      %v974 = vmax.f32 %v711, %v873
      %v975 = vmax.f32 %v712, %v876
      %v976 = vmax.f32 %v713, %v881
      %v977 = vmax.f32 %v714, %v884
      %v978 = vmax.f32 %v715, %v889
      %v979 = vmax.f32 %v716, %v892
      %v980 = vmax.f32 %v717, %v897
      %v981 = vmax.f32 %v718, %v900
      %v982 = vmax.f32 %v719, %v905
      %v983 = vmax.f32 %v720, %v908
      %v984 = vmax.f32 %v721, %v913
      %v985 = vmax.f32 %v722, %v916
      %v986 = vmax.f32 %v723, %v921
      %v987 = vmax.f32 %v724, %v924
      %v988 = vmax.f32 %v725, %v929
      %v989 = vmax.f32 %v726, %v932
      %v990 = vmax.f32 %v727, %v937
      %v991 = vmax.f32 %v728, %v940
      %v992 = vmax.f32 %v729, %v945
      %v993 = vmax.f32 %v730, %v948
      %v994 = vmax.f32 %v731, %v953
      %v995 = vmax.f32 %v732, %v956
      %v996 = vmax.f32 %v733, %v961
      %v997 = vmax.f32 %v734, %v964
      %v998 = vmax.f32 %v735, %v969
      %s999 = scalar_lea.vmem %s165, 300
      %v1000 = vld [vmem:[%s999] sm:$0xf]
      %v1001 = vld [vmem:[%s999 + $0x4] sm:$0xf]
      %v1002 = vld [vmem:[%s999 + $0x8] sm:$0xf]
      %v1003 = vld [vmem:[%s999 + $0xc] sm:$0xf]
      %v1004 = vld [vmem:[%s999 + $0x10] sm:$0xf]
      %v1005 = vld [vmem:[%s999 + $0x14] sm:$0xf]
      %v1006 = vld [vmem:[%s999 + $0x18] sm:$0xf]
      %v1007 = vld [vmem:[%s999 + $0x1c] sm:$0xf]
      %v1008 = vld [vmem:[%s999 + $0x20] sm:$0xf]
      %v1009 = vld [vmem:[%s999 + $0x24] sm:$0xf]
      %v1010 = vld [vmem:[%s999 + $0x28] sm:$0xf]
      %v1011 = vld [vmem:[%s999 + $0x2c] sm:$0xf]
      %v1012 = vld [vmem:[%s999 + $0x30] sm:$0xf]
      %v1013 = vld [vmem:[%s999 + $0x34] sm:$0xf]
      %v1014 = vld [vmem:[%s999 + $0x38] sm:$0xf]
      %v1015 = vld [vmem:[%s999 + $0x3c] sm:$0xf]
      %v1016 = vld [vmem:[%s999 + $0x40] sm:$0xf]
      %v1017 = vld [vmem:[%s999 + $0x44] sm:$0xf]
      %v1018 = vld [vmem:[%s999 + $0x48] sm:$0xf]
      %v1019 = vld [vmem:[%s999 + $0x4c] sm:$0xf]
      %v1020 = vld [vmem:[%s999 + $0x50] sm:$0xf]
      %v1021 = vld [vmem:[%s999 + $0x54] sm:$0xf]
      %v1022 = vld [vmem:[%s999 + $0x58] sm:$0xf]
      %v1023 = vld [vmem:[%s999 + $0x5c] sm:$0xf]
      %v1024 = vld [vmem:[%s999 + $0x60] sm:$0x3]
      %v1050 = vunpack.c.l.b16 %v1000
      %v1051 = vunpack.c.l.b16 %v1001
      %v1052 = vunpack.c.l.b16 %v1002
      %v1053 = vunpack.c.l.b16 %v1003
      %v1054 = vunpack.c.l.b16 %v1004
      %v1055 = vunpack.c.l.b16 %v1005
      %v1056 = vunpack.c.l.b16 %v1006
      %v1057 = vunpack.c.l.b16 %v1007
      %v1058 = vunpack.c.l.b16 %v1008
      %v1059 = vunpack.c.l.b16 %v1009
      %v1060 = vunpack.c.l.b16 %v1010
      %v1061 = vunpack.c.l.b16 %v1011
      %v1062 = vunpack.c.l.b16 %v1012
      %v1063 = vunpack.c.l.b16 %v1013
      %v1064 = vunpack.c.l.b16 %v1014
      %v1065 = vunpack.c.l.b16 %v1015
      %v1066 = vunpack.c.l.b16 %v1016
      %v1067 = vunpack.c.l.b16 %v1017
      %v1068 = vunpack.c.l.b16 %v1018
      %v1069 = vunpack.c.l.b16 %v1019
      %v1070 = vunpack.c.l.b16 %v1020
      %v1071 = vunpack.c.l.b16 %v1021
      %v1072 = vunpack.c.l.b16 %v1022
      %v1073 = vunpack.c.l.b16 %v1023
      %v1074 = vunpack.c.l.b16 %v1024
      %v1075 = vpack.c.b16 %v1051, %v1050
      %v1076 = vpack.c.b16 %v1053, %v1052
      %v1077 = vpack.c.b16 %v1055, %v1054
      %v1078 = vpack.c.b16 %v1057, %v1056
      %v1079 = vpack.c.b16 %v1059, %v1058
      %v1080 = vpack.c.b16 %v1061, %v1060
      %v1081 = vpack.c.b16 %v1063, %v1062
      %v1082 = vpack.c.b16 %v1065, %v1064
      %v1083 = vpack.c.b16 %v1067, %v1066
      %v1084 = vpack.c.b16 %v1069, %v1068
      %v1085 = vpack.c.b16 %v1071, %v1070
      %v1086 = vpack.c.b16 %v1073, %v1072
      %v1087 = vpack.c.b16 %v1074, %v1074
      %1101 = vmatprep.subr.bf16.mxu0 0
      %1102 = vmatpush1.bf16.msra.mxu0 %v321
      %1103 = vmatprep.subr.bf16.mxu0 0
      %1104 = vmatpush1.bf16.msra.mxu0 %v322
      %1105 = vmatprep.subr.bf16.mxu0 0
      %1106 = vmatpush1.bf16.msra.mxu0 %v323
      %1107 = vmatprep.subr.bf16.mxu0 0
      %1108 = vmatpush1.bf16.msra.mxu0 %v324
      %1109 = vmatprep.subr.bf16.mxu0 0
      %1110 = vmatpush1.bf16.msra.mxu0 %v325
      %1111 = vmatprep.subr.bf16.mxu0 0
      %1112 = vmatpush1.bf16.msra.mxu0 %v326
      %1113 = vmatprep.subr.bf16.mxu0 0
      %1114 = vmatpush1.bf16.msra.mxu0 %v327
      %1115 = vmatprep.subr.bf16.mxu0 0
      %1116 = vmatpush1.bf16.msra.mxu0 %v328
      %1117 = vmatprep.subr.bf16.mxu0 0
      %1118 = vmatpush1.bf16.msra.mxu0 0
      %1119 = vmatprep.subr.bf16.mxu0 0
      %1120 = vmatpush1.bf16.msra.mxu0 0
      %1121 = vmatprep.subr.bf16.mxu0 0
      %1122 = vmatpush1.bf16.msra.mxu0 0
      %1123 = vmatprep.subr.bf16.mxu0 0
      %1124 = vmatpush1.bf16.msra.mxu0 0
      %1125 = vmatprep.subr.bf16.mxu0 0
      %1126 = vmatpush1.bf16.msra.mxu0 0
      %1127 = vmatprep.subr.bf16.mxu0 0
      %1128 = vmatpush1.bf16.msra.mxu0 0
      %1129 = vmatprep.subr.bf16.mxu0 0
      %1130 = vmatpush1.bf16.msra.mxu0 0
      %1131 = vmatprep.subr.bf16.mxu0 0
      %1132 = vmatpush1.bf16.msra.mxu0 0
      %1133 = vmatprep.mubr.bf16.mxu0 0
      %1134 = vmatmul.mubr.bf16.gmra.mrb[0].mxu0 %v1075
      %v1135 = vpop.f32.mrb[0].mxu0
      %v1136 = vadd.f32 0.0, %v1135
      %v1137 = vpop.f32.mrb[0].mxu0
      %v1138 = vpop.f32.mrb[0].mxu0
      %v1139 = vadd.f32 0.0, %v1138
      %v1140 = vpop.f32.mrb[0].mxu0
      %1141 = vmatprep.mubr.bf16.mxu0 0
      %1142 = vmatmul.mubr.bf16.gmra.mrb[0].mxu0 %v1076
      %v1143 = vpop.f32.mrb[0].mxu0
      %v1144 = vadd.f32 0.0, %v1143
      %v1145 = vpop.f32.mrb[0].mxu0
      %v1146 = vpop.f32.mrb[0].mxu0
      %v1147 = vadd.f32 0.0, %v1146
      %v1148 = vpop.f32.mrb[0].mxu0
      %1149 = vmatprep.mubr.bf16.mxu0 0
      %1150 = vmatmul.mubr.bf16.gmra.mrb[0].mxu0 %v1077
      %v1151 = vpop.f32.mrb[0].mxu0
      %v1152 = vadd.f32 0.0, %v1151
      %v1153 = vpop.f32.mrb[0].mxu0
      %v1154 = vpop.f32.mrb[0].mxu0
      %v1155 = vadd.f32 0.0, %v1154
      %v1156 = vpop.f32.mrb[0].mxu0
      %1157 = vmatprep.mubr.bf16.mxu0 0
      %1158 = vmatmul.mubr.bf16.gmra.mrb[0].mxu0 %v1078
      %v1159 = vpop.f32.mrb[0].mxu0
      %v1160 = vadd.f32 0.0, %v1159
      %v1161 = vpop.f32.mrb[0].mxu0
      %v1162 = vpop.f32.mrb[0].mxu0
      %v1163 = vadd.f32 0.0, %v1162
      %v1164 = vpop.f32.mrb[0].mxu0
      %1165 = vmatprep.mubr.bf16.mxu0 0
      %1166 = vmatmul.mubr.bf16.gmra.mrb[0].mxu0 %v1079
      %v1167 = vpop.f32.mrb[0].mxu0
      %v1168 = vadd.f32 0.0, %v1167
      %v1169 = vpop.f32.mrb[0].mxu0
      %v1170 = vpop.f32.mrb[0].mxu0
      %v1171 = vadd.f32 0.0, %v1170
      %v1172 = vpop.f32.mrb[0].mxu0
      %1173 = vmatprep.mubr.bf16.mxu0 0
      %1174 = vmatmul.mubr.bf16.gmra.mrb[0].mxu0 %v1080
      %v1175 = vpop.f32.mrb[0].mxu0
      %v1176 = vadd.f32 0.0, %v1175
      %v1177 = vpop.f32.mrb[0].mxu0
      %v1178 = vpop.f32.mrb[0].mxu0
      %v1179 = vadd.f32 0.0, %v1178
      %v1180 = vpop.f32.mrb[0].mxu0
      %1181 = vmatprep.mubr.bf16.mxu0 0
      %1182 = vmatmul.mubr.bf16.gmra.mrb[0].mxu0 %v1081
      %v1183 = vpop.f32.mrb[0].mxu0
      %v1184 = vadd.f32 0.0, %v1183
      %v1185 = vpop.f32.mrb[0].mxu0
      %v1186 = vpop.f32.mrb[0].mxu0
      %v1187 = vadd.f32 0.0, %v1186
      %v1188 = vpop.f32.mrb[0].mxu0
      %1189 = vmatprep.mubr.bf16.mxu0 0
      %1190 = vmatmul.mubr.bf16.gmra.mrb[0].mxu0 %v1082
      %v1191 = vpop.f32.mrb[0].mxu0
      %v1192 = vadd.f32 0.0, %v1191
      %v1193 = vpop.f32.mrb[0].mxu0
      %v1194 = vpop.f32.mrb[0].mxu0
      %v1195 = vadd.f32 0.0, %v1194
      %v1196 = vpop.f32.mrb[0].mxu0
      %1197 = vmatprep.mubr.bf16.mxu0 0
      %1198 = vmatmul.mubr.bf16.gmra.mrb[0].mxu0 %v1083
      %v1199 = vpop.f32.mrb[0].mxu0
      %v1200 = vadd.f32 0.0, %v1199
      %v1201 = vpop.f32.mrb[0].mxu0
      %v1202 = vpop.f32.mrb[0].mxu0
      %v1203 = vadd.f32 0.0, %v1202
      %v1204 = vpop.f32.mrb[0].mxu0
      %1205 = vmatprep.mubr.bf16.mxu0 0
      %1206 = vmatmul.mubr.bf16.gmra.mrb[0].mxu0 %v1084
      %v1207 = vpop.f32.mrb[0].mxu0
      %v1208 = vadd.f32 0.0, %v1207
      %v1209 = vpop.f32.mrb[0].mxu0
      %v1210 = vpop.f32.mrb[0].mxu0
      %v1211 = vadd.f32 0.0, %v1210
      %v1212 = vpop.f32.mrb[0].mxu0
      %1213 = vmatprep.mubr.bf16.mxu0 0
      %1214 = vmatmul.mubr.bf16.gmra.mrb[0].mxu0 %v1085
      %v1215 = vpop.f32.mrb[0].mxu0
      %v1216 = vadd.f32 0.0, %v1215
      %v1217 = vpop.f32.mrb[0].mxu0
      %v1218 = vpop.f32.mrb[0].mxu0
      %v1219 = vadd.f32 0.0, %v1218
      %v1220 = vpop.f32.mrb[0].mxu0
      %1221 = vmatprep.mubr.bf16.mxu0 0
      %1222 = vmatmul.mubr.bf16.gmra.mrb[0].mxu0 %v1086
      %v1223 = vpop.f32.mrb[0].mxu0
      %v1224 = vadd.f32 0.0, %v1223
      %v1225 = vpop.f32.mrb[0].mxu0
      %v1226 = vpop.f32.mrb[0].mxu0
      %v1227 = vadd.f32 0.0, %v1226
      %v1228 = vpop.f32.mrb[0].mxu0
      %1229 = vmatprep.mubr.bf16.mxu0 0
      %1230 = vmatmul.mubr.bf16.gmra.mrb[0].mxu0 %v1087
      %v1231 = vpop.f32.mrb[0].mxu0
      %v1232 = vadd.f32 0.0, %v1231
      %v1233 = vpop.f32.mrb[0].mxu0
      %v1234 = vpop.f32.mrb[0].mxu0
      %v1235 = vpop.f32.mrb[0].mxu0
      %1236 = vdwg.mxu0
      %v1237 = vmax.f32 %v974, %v1136
      %v1238 = vmax.f32 %v975, %v1139
      %v1239 = vmax.f32 %v976, %v1144
      %v1240 = vmax.f32 %v977, %v1147
      %v1241 = vmax.f32 %v978, %v1152
      %v1242 = vmax.f32 %v979, %v1155
      %v1243 = vmax.f32 %v980, %v1160
      %v1244 = vmax.f32 %v981, %v1163
      %v1245 = vmax.f32 %v982, %v1168
      %v1246 = vmax.f32 %v983, %v1171
      %v1247 = vmax.f32 %v984, %v1176
      %v1248 = vmax.f32 %v985, %v1179
      %v1249 = vmax.f32 %v986, %v1184
      %v1250 = vmax.f32 %v987, %v1187
      %v1251 = vmax.f32 %v988, %v1192
      %v1252 = vmax.f32 %v989, %v1195
      %v1253 = vmax.f32 %v990, %v1200
      %v1254 = vmax.f32 %v991, %v1203
      %v1255 = vmax.f32 %v992, %v1208
      %v1256 = vmax.f32 %v993, %v1211
      %v1257 = vmax.f32 %v994, %v1216
      %v1258 = vmax.f32 %v995, %v1219
      %v1259 = vmax.f32 %v996, %v1224
      %v1260 = vmax.f32 %v997, %v1227
      %v1261 = vmax.f32 %v998, %v1232
      %v1262 = vld [vmem:[%s2] sm:$0x1]
      %v1264 = vlaneseq
      %v1265 = vshrl.u32 %v1264, 7
      %v1266 = vsub.s32 0, %v1265
      %v1267 = vrot.slane %v1262, %v1266
      %v1269 = vadd.f32 %v1237, %v1267
      %v1270 = vadd.f32 %v1238, %v1267
      %v1271 = vadd.f32 %v1239, %v1267
      %v1272 = vadd.f32 %v1240, %v1267
      %v1273 = vadd.f32 %v1241, %v1267
      %v1274 = vadd.f32 %v1242, %v1267
      %v1275 = vadd.f32 %v1243, %v1267
      %v1276 = vadd.f32 %v1244, %v1267
      %v1277 = vadd.f32 %v1245, %v1267
      %v1278 = vadd.f32 %v1246, %v1267
      %v1279 = vadd.f32 %v1247, %v1267
      %v1280 = vadd.f32 %v1248, %v1267
      %v1281 = vadd.f32 %v1249, %v1267
      %v1282 = vadd.f32 %v1250, %v1267
      %v1283 = vadd.f32 %v1251, %v1267
      %v1284 = vadd.f32 %v1252, %v1267
      %v1285 = vadd.f32 %v1253, %v1267
      %v1286 = vadd.f32 %v1254, %v1267
      %v1287 = vadd.f32 %v1255, %v1267
      %v1288 = vadd.f32 %v1256, %v1267
      %v1289 = vadd.f32 %v1257, %v1267
      %v1290 = vadd.f32 %v1258, %v1267
      %v1291 = vadd.f32 %v1259, %v1267
      %v1292 = vadd.f32 %v1260, %v1267
      %v1293 = vadd.f32 %v1261, %v1267
      %v1294 = vmax.f32 %v1269, 0.0
      %v1295 = vmax.f32 %v1270, 0.0
      %v1296 = vmax.f32 %v1271, 0.0
      %v1297 = vmax.f32 %v1272, 0.0
      %v1298 = vmax.f32 %v1273, 0.0
      %v1299 = vmax.f32 %v1274, 0.0
      %v1300 = vmax.f32 %v1275, 0.0
      %v1301 = vmax.f32 %v1276, 0.0
      %v1302 = vmax.f32 %v1277, 0.0
      %v1303 = vmax.f32 %v1278, 0.0
      %v1304 = vmax.f32 %v1279, 0.0
      %v1305 = vmax.f32 %v1280, 0.0
      %v1306 = vmax.f32 %v1281, 0.0
      %v1307 = vmax.f32 %v1282, 0.0
      %v1308 = vmax.f32 %v1283, 0.0
      %v1309 = vmax.f32 %v1284, 0.0
      %v1310 = vmax.f32 %v1285, 0.0
      %v1311 = vmax.f32 %v1286, 0.0
      %v1312 = vmax.f32 %v1287, 0.0
      %v1313 = vmax.f32 %v1288, 0.0
      %v1314 = vmax.f32 %v1289, 0.0
      %v1315 = vmax.f32 %v1290, 0.0
      %v1316 = vmax.f32 %v1291, 0.0
      %v1317 = vmax.f32 %v1292, 0.0
      %v1318 = vmax.f32 %v1293, 0.0
      %v1319 = vpack.c.bf16 %v1295, %v1294
      %v1320 = vpack.c.bf16 %v1297, %v1296
      %v1321 = vpack.c.bf16 %v1299, %v1298
      %v1322 = vpack.c.bf16 %v1301, %v1300
      %v1323 = vpack.c.bf16 %v1303, %v1302
      %v1324 = vpack.c.bf16 %v1305, %v1304
      %v1325 = vpack.c.bf16 %v1307, %v1306
      %v1326 = vpack.c.bf16 %v1309, %v1308
      %v1327 = vpack.c.bf16 %v1311, %v1310
      %v1328 = vpack.c.bf16 %v1313, %v1312
      %v1329 = vpack.c.bf16 %v1315, %v1314
      %v1330 = vpack.c.bf16 %v1317, %v1316
      %v1331 = vpack.c.bf16 %v1318, %v1318
      %v1345 = vunpack.c.l.b16 %v1319
      %v1346 = vunpack.c.h.b16 %v1319
      %v1347 = vunpack.c.l.b16 %v1320
      %v1348 = vunpack.c.h.b16 %v1320
      %v1349 = vunpack.c.l.b16 %v1321
      %v1350 = vunpack.c.h.b16 %v1321
      %v1351 = vunpack.c.l.b16 %v1322
      %v1352 = vunpack.c.h.b16 %v1322
      %v1353 = vunpack.c.l.b16 %v1323
      %v1354 = vunpack.c.h.b16 %v1323
      %v1355 = vunpack.c.l.b16 %v1324
      %v1356 = vunpack.c.h.b16 %v1324
      %v1357 = vunpack.c.l.b16 %v1325
      %v1358 = vunpack.c.h.b16 %v1325
      %v1359 = vunpack.c.l.b16 %v1326
      %v1360 = vunpack.c.h.b16 %v1326
      %v1361 = vunpack.c.l.b16 %v1327
      %v1362 = vunpack.c.h.b16 %v1327
      %v1363 = vunpack.c.l.b16 %v1328
      %v1364 = vunpack.c.h.b16 %v1328
      %v1365 = vunpack.c.l.b16 %v1329
      %v1366 = vunpack.c.h.b16 %v1329
      %v1367 = vunpack.c.l.b16 %v1330
      %v1368 = vunpack.c.h.b16 %v1330
      %v1369 = vunpack.c.l.b16 %v1331
      %v1370 = vpack.c.b16 %v1345, %v1345
      %v1371 = vpack.c.b16 %v1346, %v1346
      %v1372 = vpack.c.b16 %v1347, %v1347
      %v1373 = vpack.c.b16 %v1348, %v1348
      %v1374 = vpack.c.b16 %v1349, %v1349
      %v1375 = vpack.c.b16 %v1350, %v1350
      %v1376 = vpack.c.b16 %v1351, %v1351
      %v1377 = vpack.c.b16 %v1352, %v1352
      %v1378 = vpack.c.b16 %v1353, %v1353
      %v1379 = vpack.c.b16 %v1354, %v1354
      %v1380 = vpack.c.b16 %v1355, %v1355
      %v1381 = vpack.c.b16 %v1356, %v1356
      %v1382 = vpack.c.b16 %v1357, %v1357
      %v1383 = vpack.c.b16 %v1358, %v1358
      %v1384 = vpack.c.b16 %v1359, %v1359
      %v1385 = vpack.c.b16 %v1360, %v1360
      %v1386 = vpack.c.b16 %v1361, %v1361
      %v1387 = vpack.c.b16 %v1362, %v1362
      %v1388 = vpack.c.b16 %v1363, %v1363
      %v1389 = vpack.c.b16 %v1364, %v1364
      %v1390 = vpack.c.b16 %v1365, %v1365
      %v1391 = vpack.c.b16 %v1366, %v1366
      %v1392 = vpack.c.b16 %v1367, %v1367
      %v1393 = vpack.c.b16 %v1368, %v1368
      %v1394 = vpack.c.b16 %v1369, %v1369
      %vm1420 = vcmask 240640
      %1421 = vst.msk [vmem:[%s170] sm:$0xf] %vm1420, %v1370
      %1422 = vst.msk [vmem:[%s170 + $0x4] sm:$0xf] %vm1420, %v1371
      %1423 = vst.msk [vmem:[%s170 + $0x8] sm:$0xf] %vm1420, %v1372
      %1424 = vst.msk [vmem:[%s170 + $0xc] sm:$0xf] %vm1420, %v1373
      %1425 = vst.msk [vmem:[%s170 + $0x10] sm:$0xf] %vm1420, %v1374
      %1426 = vst.msk [vmem:[%s170 + $0x14] sm:$0xf] %vm1420, %v1375
      %1427 = vst.msk [vmem:[%s170 + $0x18] sm:$0xf] %vm1420, %v1376
      %1428 = vst.msk [vmem:[%s170 + $0x1c] sm:$0xf] %vm1420, %v1377
      %1429 = vst.msk [vmem:[%s170 + $0x20] sm:$0xf] %vm1420, %v1378
      %1430 = vst.msk [vmem:[%s170 + $0x24] sm:$0xf] %vm1420, %v1379
      %1431 = vst.msk [vmem:[%s170 + $0x28] sm:$0xf] %vm1420, %v1380
      %1432 = vst.msk [vmem:[%s170 + $0x2c] sm:$0xf] %vm1420, %v1381
      %1433 = vst.msk [vmem:[%s170 + $0x30] sm:$0xf] %vm1420, %v1382
      %1434 = vst.msk [vmem:[%s170 + $0x34] sm:$0xf] %vm1420, %v1383
      %1435 = vst.msk [vmem:[%s170 + $0x38] sm:$0xf] %vm1420, %v1384
      %1436 = vst.msk [vmem:[%s170 + $0x3c] sm:$0xf] %vm1420, %v1385
      %1437 = vst.msk [vmem:[%s170 + $0x40] sm:$0xf] %vm1420, %v1386
      %1438 = vst.msk [vmem:[%s170 + $0x44] sm:$0xf] %vm1420, %v1387
      %1439 = vst.msk [vmem:[%s170 + $0x48] sm:$0xf] %vm1420, %v1388
      %1440 = vst.msk [vmem:[%s170 + $0x4c] sm:$0xf] %vm1420, %v1389
      %1441 = vst.msk [vmem:[%s170 + $0x50] sm:$0xf] %vm1420, %v1390
      %1442 = vst.msk [vmem:[%s170 + $0x54] sm:$0xf] %vm1420, %v1391
      %1443 = vst.msk [vmem:[%s170 + $0x58] sm:$0xf] %vm1420, %v1392
      %1444 = vst.msk [vmem:[%s170 + $0x5c] sm:$0xf] %vm1420, %v1393
      %vm1445 = vcmask 238592
      %1446 = vst.msk [vmem:[%s170 + $0x60] sm:$0x3] %vm1445, %v1394
      %p1447 = scmp.lt.s32.totalorder %s14, 1
      %s1448 = scalar_select %p1447, %s14, 1
      %s1449 = smul.addr %s1448, 25
      %s1450 = smul.addr %s1449, 4
      %s1451 = scalar_lea.vmem %s3, %s1450
      // Predicated region
      $region33: #{mcdnn_forward.3} parent=31 // pred_check
        %p1452 = pneg %p100
      $region34: #{mcdnn_forward.3} parent=31 // pred_check_branch
        %1454 = sbr.rel (%p1452) target = $region36
      $region35: #{mcdnn_forward.3} parent=31 // pred_region
        _
      $region36: #{mcdnn_forward.3} parent=31 // pred_fallthru
        _
    $region32: #{mcdnn_forward.3} parent=5 // pred_fallthru
      _
    %p1455 = scmp.le.s32.totalorder 2, %s9
    // Predicated region
    $region37: #{mcdnn_forward.3} parent=5 // pred_check
      %p1456 = pneg %p1455
    $region38: #{mcdnn_forward.3} parent=5 // pred_check_branch
      %1458 = sbr.rel (%p1456) target = $region40
    $region39: #{mcdnn_forward.3} parent=5 // pred_region
      %s1459 = ssub.s32 %s9, 2
      // Predicated region
      $region41: #{mcdnn_forward.3} parent=39 // pred_check
        %p1460 = pneg %p106
      $region42: #{mcdnn_forward.3} parent=39 // pred_check_branch
        %1462 = sbr.rel (%p1460) target = $region44
      $region43: #{mcdnn_forward.3} parent=39 // pred_region
        %p1463 = scmp.lt.s32.totalorder %s15, 1
        %s1464 = scalar_select %p1463, %s15, 1
        %s1465 = smul.addr %s1464, 25
        %s1466 = smul.addr %s1465, 4
        %s1467 = scalar_lea.vmem %s3, %s1466
      $region44: #{mcdnn_forward.3} parent=39 // pred_fallthru
        _
    $region40: #{mcdnn_forward.3} parent=5 // pred_fallthru
      _
  $region6: #{mcdnn_forward.3} parent=0 // loop_footer
    %s13 = sadd.s32 1, %s9
  $region7: #{mcdnn_forward.3} parent=0 // loop_footer_branch
    %8 = sbr.rel target = $region3
  $region8: #{mcdnn_forward.3} parent=0 // loop_exit
    _

// kernel: mcdnn_forward.4
$region0: #{mcdnn_forward.4}
  #allocation0 [shape = 'u32[]', space=smem, size = 0x4, offset = 0x4, fixed_abs, tag = 'smem constant byte address 0x4 - core index']
  #allocation1 [shape = 'u32[144,128]{1,0:T(1,128)}', space=vmem, size = 0x12000, scoped, tag = 'internal scratch']
  %s0 = inlined_call_operand.vmem [shape: bf16[2,4,25,768], index: 0, kind: input, shape index: {}]
  %s1 = inlined_call_operand.vmem [shape: bf16[768,80], index: 1, kind: input, shape index: {}]
  %s2 = inlined_call_operand.vmem [shape: f32[1,80], index: 2, kind: input, shape index: {}]
  %s3 = inlined_call_operand.vmem [shape: bf16[2,25,80], index: 3, kind: output, shape index: {}]
  %s4 = sld [smem:[#allocation0]]
  $region45: #{mcdnn_forward.4} parent=0
    _
  %s6 = ssub.s32 1, %s4
  %s7 = scalar_select 0, %s6, %s4
  loop: start=0, step=1, limit=4
  $region2: #{mcdnn_forward.4} parent=0 // loop_pre_header
    _
  $region3: #{mcdnn_forward.4} parent=0 // loop_header
    %s9 = sphi 0, %s13
    %p10 = scmp.ge.s32.totalorder %s9, 4
    %s19 = sphi 0, %s21
    %s22 = sphi 0, %s19
    %s23 = sphi 0, %s22
    %s39 = sphi 0, %s23
    %s43 = sphi 0, %s43
    %s45 = sphi 0, %s43
    %s46 = sphi 0, %s45
    %s60 = sphi 0, %s46
    %s64 = sphi 0, %s64
    %s66 = sphi 0, %s64
    %s67 = sphi 0, %s66
    %s81 = sphi 0, %s67
    %s87 = sphi 0, %s89
    %s90 = sphi 0, %s87
    %s91 = sphi 0, %s90
    %s107 = sphi 0, %s91
  $region4: #{mcdnn_forward.4} parent=0 // loop_header_branch
    %12 = sbr.rel (%p10) target = $region8
  $region5: #{mcdnn_forward.4} parent=0 // loop_body
    %s14 = ssub.s32 %s9, 1
    %s15 = ssub.s32 %s9, 2
    %s16 = sadd.s32 %s9, 1
    %s17 = ssub.s32 %s9, %s16
    %p18 = scmp.eq.s32.totalorder %s17, 0
    %s20 = sadd.s32 %s19, 1
    %s21 = scalar_select %p18, %s19, %s20
    %p24 = pneg %p18
    %p25 = scmp.eq.s32.totalorder %s9, 1
    %p26 = por %p24, %p25
    %p27 = scmp.ne.s32.totalorder %s19, %s22
    %p28 = scmp.eq.s32.totalorder %s9, 0
    %p29 = por %p27, %p28
    %p30 = scmp.ne.s32.totalorder %s19, %s22
    %p31 = scmp.eq.s32.totalorder %s14, 1
    %p32 = por %p30, %p31
    %p33 = scmp.ne.s32.totalorder %s22, %s23
    %p34 = scmp.eq.s32.totalorder %s14, 0
    %p35 = por %p33, %p34
    %p36 = scmp.ne.s32.totalorder %s22, %s23
    %p37 = scmp.eq.s32.totalorder %s15, 1
    %p38 = por %p36, %p37
    %p40 = scmp.ne.s32.totalorder %s23, %s39
    %p41 = scmp.eq.s32.totalorder %s15, 0
    %p42 = por %p40, %p41
    %s44 = sadd.s32 %s43, 1
    %p47 = scmp.eq.s32.totalorder %s9, 1
    %p48 = scmp.ne.s32.totalorder %s43, %s45
    %p49 = scmp.eq.s32.totalorder %s9, 0
    %p50 = por %p48, %p49
    %p51 = scmp.ne.s32.totalorder %s43, %s45
    %p52 = scmp.eq.s32.totalorder %s14, 1
    %p53 = por %p51, %p52
    %p54 = scmp.ne.s32.totalorder %s45, %s46
    %p55 = scmp.eq.s32.totalorder %s14, 0
    %p56 = por %p54, %p55
    %p57 = scmp.ne.s32.totalorder %s45, %s46
    %p58 = scmp.eq.s32.totalorder %s15, 1
    %p59 = por %p57, %p58
    %p61 = scmp.ne.s32.totalorder %s46, %s60
    %p62 = scmp.eq.s32.totalorder %s15, 0
    %p63 = por %p61, %p62
    %s65 = sadd.s32 %s64, 1
    %p68 = scmp.eq.s32.totalorder %s9, 1
    %p69 = scmp.ne.s32.totalorder %s64, %s66
    %p70 = scmp.eq.s32.totalorder %s9, 0
    %p71 = por %p69, %p70
    %p72 = scmp.ne.s32.totalorder %s64, %s66
    %p73 = scmp.eq.s32.totalorder %s14, 1
    %p74 = por %p72, %p73
    %p75 = scmp.ne.s32.totalorder %s66, %s67
    %p76 = scmp.eq.s32.totalorder %s14, 0
    %p77 = por %p75, %p76
    %p78 = scmp.ne.s32.totalorder %s66, %s67
    %p79 = scmp.eq.s32.totalorder %s15, 1
    %p80 = por %p78, %p79
    %p82 = scmp.ne.s32.totalorder %s67, %s81
    %p83 = scmp.eq.s32.totalorder %s15, 0
    %p84 = por %p82, %p83
    %s85 = ssub.s32 %s9, %s16
    %p86 = scmp.eq.s32.totalorder %s85, 0
    %s88 = sadd.s32 %s87, 1
    %s89 = scalar_select %p86, %s87, %s88
    %p92 = pneg %p86
    %p93 = scmp.eq.s32.totalorder %s9, 1
    %p94 = por %p92, %p93
    %p95 = scmp.ne.s32.totalorder %s87, %s90
    %p96 = scmp.eq.s32.totalorder %s9, 0
    %p97 = por %p95, %p96
    %p98 = scmp.ne.s32.totalorder %s87, %s90
    %p99 = scmp.eq.s32.totalorder %s14, 1
    %p100 = por %p98, %p99
    %p101 = scmp.ne.s32.totalorder %s90, %s91
    %p102 = scmp.eq.s32.totalorder %s14, 0
    %p103 = por %p101, %p102
    %p104 = scmp.ne.s32.totalorder %s90, %s91
    %p105 = scmp.eq.s32.totalorder %s15, 1
    %p106 = por %p104, %p105
    %p108 = scmp.ne.s32.totalorder %s91, %s107
    %p109 = scmp.eq.s32.totalorder %s15, 0
    %p110 = por %p108, %p109
    %p111 = scmp.le.s32.totalorder 1, %s9
    %p112 = scmp.lt.s32.totalorder %s9, 3
    %p113 = pnand %p111, %p112
    %p114 = pneg %p113
    // Predicated region
    $region9: #{mcdnn_forward.4} parent=5 // pred_check
      _
    $region10: #{mcdnn_forward.4} parent=5 // pred_check_branch
      %116 = sbr.rel (%p113) target = $region12
    $region11: #{mcdnn_forward.4} parent=5 // pred_region
      %s117 = ssub.s32 %s9, 1
      // Predicated region
      $region13: #{mcdnn_forward.4} parent=11 // pred_check
        %p118 = pneg %p56
      $region14: #{mcdnn_forward.4} parent=11 // pred_check_branch
        %120 = sbr.rel (%p118) target = $region16
      $region15: #{mcdnn_forward.4} parent=11 // pred_region
        _
      $region16: #{mcdnn_forward.4} parent=11 // pred_fallthru
        _
      // Predicated region
      $region17: #{mcdnn_forward.4} parent=11 // pred_check
        %p121 = pneg %p77
      $region18: #{mcdnn_forward.4} parent=11 // pred_check_branch
        %123 = sbr.rel (%p121) target = $region20
      $region19: #{mcdnn_forward.4} parent=11 // pred_region
        _
      $region20: #{mcdnn_forward.4} parent=11 // pred_fallthru
        _
    $region12: #{mcdnn_forward.4} parent=5 // pred_fallthru
      _
    %p124 = scmp.lt.s32.totalorder %s9, 2
    // Predicated region
    $region21: #{mcdnn_forward.4} parent=5 // pred_check
      %p125 = pneg %p124
    $region22: #{mcdnn_forward.4} parent=5 // pred_check_branch
      %127 = sbr.rel (%p125) target = $region24
    $region23: #{mcdnn_forward.4} parent=5 // pred_region
      // Predicated region
      $region25: #{mcdnn_forward.4} parent=23 // pred_check
        %p128 = pneg %p29
      $region26: #{mcdnn_forward.4} parent=23 // pred_check_branch
        %130 = sbr.rel (%p128) target = $region28
      $region27: #{mcdnn_forward.4} parent=23 // pred_region
        %p131 = scmp.lt.s32.totalorder %s9, 1
        %s132 = scalar_select %p131, %s9, 1
        %s133 = smul.addr %s132, 96
        %s134 = smul.addr %s133, 4
        %s135 = scalar_lea.vmem %s0, %s134
      $region28: #{mcdnn_forward.4} parent=23 // pred_fallthru
        _
    $region24: #{mcdnn_forward.4} parent=5 // pred_fallthru
      _
    %p136 = scmp.le.s32.totalorder 1, %s9
    %p137 = scmp.lt.s32.totalorder %s9, 3
    %p138 = pnand %p136, %p137
    %p139 = pneg %p138
    // Predicated region
    $region29: #{mcdnn_forward.4} parent=5 // pred_check
      _
    $region30: #{mcdnn_forward.4} parent=5 // pred_check_branch
      %141 = sbr.rel (%p138) target = $region32
    $region31: #{mcdnn_forward.4} parent=5 // pred_region
      %s142 = ssub.s32 %s9, 1
      %p143 = scmp.lt.s32.totalorder %s14, 1
      %s144 = scalar_select %p143, %s14, 1
      %s145 = smul.addr %s144, 96
      %s146 = smul.addr %s145, 4
      %s147 = scalar_lea.vmem %s0, %s146
      %p148 = pneg %p35
      %p149 = pneg %p32
      %p150 = pneg %p56
      %p151 = pneg %p53
      %p152 = pneg %p77
      %p153 = pneg %p74
      %p154 = pneg %p103
      %p155 = pneg %p100
      %p156 = scmp.lt.s32.totalorder %s14, 1
      %s157 = scalar_select %p156, %s14, 1
      %s158 = smul.addr %s157, 4
      %s159 = smul.addr %s158, 4
      %s160 = scalar_lea.vmem %s3, %s159
      %p161 = scmp.lt.s32.totalorder %s14, 1
      %s162 = scalar_select %p161, %s14, 1
      %s163 = smul.addr %s162, 96
      %s164 = smul.addr %s163, 4
      %s165 = scalar_lea.vmem %s0, %s164
      %p166 = scmp.lt.s32.totalorder %s14, 1
      %s167 = scalar_select %p166, %s14, 1
      %s168 = smul.addr %s167, 4
      %s169 = smul.addr %s168, 4
      %s170 = scalar_lea.vmem %s3, %s169
      %v172 = vld [vmem:[%s1] sm:$0xf]
      %v173 = vld [vmem:[%s1 + $0x4] sm:$0xf]
      %v174 = vld [vmem:[%s1 + $0x8] sm:$0xf]
      %v175 = vld [vmem:[%s1 + $0xc] sm:$0xf]
      %v176 = vld [vmem:[%s1 + $0x10] sm:$0xf]
      %v177 = vld [vmem:[%s1 + $0x14] sm:$0xf]
      %v178 = vld [vmem:[%s1 + $0x18] sm:$0xf]
      %v179 = vld [vmem:[%s1 + $0x1c] sm:$0xf]
      %v180 = vld [vmem:[%s1 + $0x20] sm:$0xf]
      %v181 = vld [vmem:[%s1 + $0x24] sm:$0xf]
      %v182 = vld [vmem:[%s1 + $0x28] sm:$0xf]
      %v183 = vld [vmem:[%s1 + $0x2c] sm:$0xf]
      %v184 = vld [vmem:[%s1 + $0x30] sm:$0xf]
      %v185 = vld [vmem:[%s1 + $0x34] sm:$0xf]
      %v186 = vld [vmem:[%s1 + $0x38] sm:$0xf]
      %v187 = vld [vmem:[%s1 + $0x3c] sm:$0xf]
      %v188 = vld [vmem:[%s1 + $0x40] sm:$0xf]
      %v189 = vld [vmem:[%s1 + $0x44] sm:$0xf]
      %v190 = vld [vmem:[%s1 + $0x48] sm:$0xf]
      %v191 = vld [vmem:[%s1 + $0x4c] sm:$0xf]
      %v192 = vld [vmem:[%s1 + $0x50] sm:$0xf]
      %v193 = vld [vmem:[%s1 + $0x54] sm:$0xf]
      %v194 = vld [vmem:[%s1 + $0x58] sm:$0xf]
      %v195 = vld [vmem:[%s1 + $0x5c] sm:$0xf]
      %v196 = vld [vmem:[%s1 + $0x60] sm:$0xf]
      %v197 = vld [vmem:[%s1 + $0x64] sm:$0xf]
      %v198 = vld [vmem:[%s1 + $0x68] sm:$0xf]
      %v199 = vld [vmem:[%s1 + $0x6c] sm:$0xf]
      %v200 = vld [vmem:[%s1 + $0x70] sm:$0xf]
      %v201 = vld [vmem:[%s1 + $0x74] sm:$0xf]
      %v202 = vld [vmem:[%s1 + $0x78] sm:$0xf]
      %v203 = vld [vmem:[%s1 + $0x7c] sm:$0xf]
      %v204 = vld [vmem:[%s1 + $0x80] sm:$0xf]
      %v205 = vld [vmem:[%s1 + $0x84] sm:$0xf]
      %v206 = vld [vmem:[%s1 + $0x88] sm:$0xf]
      %v207 = vld [vmem:[%s1 + $0x8c] sm:$0xf]
      %v208 = vld [vmem:[%s1 + $0x90] sm:$0xf]
      %v209 = vld [vmem:[%s1 + $0x94] sm:$0xf]
      %v210 = vld [vmem:[%s1 + $0x98] sm:$0xf]
      %v211 = vld [vmem:[%s1 + $0x9c] sm:$0xf]
      %v212 = vld [vmem:[%s1 + $0xa0] sm:$0xf]
      %v213 = vld [vmem:[%s1 + $0xa4] sm:$0xf]
      %v214 = vld [vmem:[%s1 + $0xa8] sm:$0xf]
      %v215 = vld [vmem:[%s1 + $0xac] sm:$0xf]
      %v216 = vld [vmem:[%s1 + $0xb0] sm:$0xf]
      %v217 = vld [vmem:[%s1 + $0xb4] sm:$0xf]
      %v218 = vld [vmem:[%s1 + $0xb8] sm:$0xf]
      %v219 = vld [vmem:[%s1 + $0xbc] sm:$0xf]
      %v220 = vld [vmem:[%s1 + $0xc0] sm:$0xf]
      %v221 = vld [vmem:[%s1 + $0xc4] sm:$0xf]
      %v222 = vld [vmem:[%s1 + $0xc8] sm:$0xf]
      %v223 = vld [vmem:[%s1 + $0xcc] sm:$0xf]
      %v224 = vld [vmem:[%s1 + $0xd0] sm:$0xf]
      %v225 = vld [vmem:[%s1 + $0xd4] sm:$0xf]
      %v226 = vld [vmem:[%s1 + $0xd8] sm:$0xf]
      %v227 = vld [vmem:[%s1 + $0xdc] sm:$0xf]
      %v228 = vld [vmem:[%s1 + $0xe0] sm:$0xf]
      %v229 = vld [vmem:[%s1 + $0xe4] sm:$0xf]
      %v230 = vld [vmem:[%s1 + $0xe8] sm:$0xf]
      %v231 = vld [vmem:[%s1 + $0xec] sm:$0xf]
      %v232 = vld [vmem:[%s1 + $0xf0] sm:$0xf]
      %v233 = vld [vmem:[%s1 + $0xf4] sm:$0xf]
      %v234 = vld [vmem:[%s1 + $0xf8] sm:$0xf]
      %v235 = vld [vmem:[%s1 + $0xfc] sm:$0xf]
      %v236 = vld [vmem:[%s1 + $0x100] sm:$0xf]
      %v237 = vld [vmem:[%s1 + $0x104] sm:$0xf]
      %v238 = vld [vmem:[%s1 + $0x108] sm:$0xf]
      %v239 = vld [vmem:[%s1 + $0x10c] sm:$0xf]
      %v240 = vld [vmem:[%s1 + $0x110] sm:$0xf]
      %v241 = vld [vmem:[%s1 + $0x114] sm:$0xf]
      %v242 = vld [vmem:[%s1 + $0x118] sm:$0xf]
      %v243 = vld [vmem:[%s1 + $0x11c] sm:$0xf]
      %v244 = vld [vmem:[%s1 + $0x120] sm:$0xf]
      %v245 = vld [vmem:[%s1 + $0x124] sm:$0xf]
      %v246 = vld [vmem:[%s1 + $0x128] sm:$0xf]
      %v247 = vld [vmem:[%s1 + $0x12c] sm:$0xf]
      %v248 = vld [vmem:[%s1 + $0x130] sm:$0xf]
      %v249 = vld [vmem:[%s1 + $0x134] sm:$0xf]
      %v250 = vld [vmem:[%s1 + $0x138] sm:$0xf]
      %v251 = vld [vmem:[%s1 + $0x13c] sm:$0xf]
      %v252 = vld [vmem:[%s1 + $0x140] sm:$0xf]
      %v253 = vld [vmem:[%s1 + $0x144] sm:$0xf]
      %v254 = vld [vmem:[%s1 + $0x148] sm:$0xf]
      %v255 = vld [vmem:[%s1 + $0x14c] sm:$0xf]
      %v256 = vld [vmem:[%s1 + $0x150] sm:$0xf]
      %v257 = vld [vmem:[%s1 + $0x154] sm:$0xf]
      %v258 = vld [vmem:[%s1 + $0x158] sm:$0xf]
      %v259 = vld [vmem:[%s1 + $0x15c] sm:$0xf]
      %v260 = vld [vmem:[%s1 + $0x160] sm:$0xf]
      %v261 = vld [vmem:[%s1 + $0x164] sm:$0xf]
      %v262 = vld [vmem:[%s1 + $0x168] sm:$0xf]
      %v263 = vld [vmem:[%s1 + $0x16c] sm:$0xf]
      %v264 = vld [vmem:[%s1 + $0x170] sm:$0xf]
      %v265 = vld [vmem:[%s1 + $0x174] sm:$0xf]
      %v266 = vld [vmem:[%s1 + $0x178] sm:$0xf]
      %v267 = vld [vmem:[%s1 + $0x17c] sm:$0xf]
      %v268 = vld [vmem:[%s165] sm:$0xff]
      %v269 = vld [vmem:[%s165 + $0x8] sm:$0xff]
      %v270 = vld [vmem:[%s165 + $0x10] sm:$0xff]
      %v271 = vld [vmem:[%s165 + $0x18] sm:$0xff]
      %v272 = vld [vmem:[%s165 + $0x20] sm:$0xff]
      %v273 = vld [vmem:[%s165 + $0x28] sm:$0xff]
      %v274 = vld [vmem:[%s165 + $0x30] sm:$0xff]
      %v275 = vld [vmem:[%s165 + $0x38] sm:$0xff]
      %v276 = vld [vmem:[%s165 + $0x40] sm:$0xff]
      %v277 = vld [vmem:[%s165 + $0x48] sm:$0x11]
      %v278 = vld [vmem:[%s165 + $0x50] sm:$0x11]
      %v279 = vld [vmem:[%s165 + $0x58] sm:$0x11]
      %v292 = vunpack.c.l.b16 %v268
      %v293 = vunpack.c.h.b16 %v268
      %v294 = vunpack.c.l.b16 %v269
      %v295 = vunpack.c.h.b16 %v269
      %v296 = vunpack.c.l.b16 %v270
      %v297 = vunpack.c.h.b16 %v270
      %v298 = vunpack.c.l.b16 %v271
      %v299 = vunpack.c.h.b16 %v271
      %v300 = vunpack.c.l.b16 %v272
      %v301 = vunpack.c.h.b16 %v272
      %v302 = vunpack.c.l.b16 %v273
      %v303 = vunpack.c.h.b16 %v273
      %v304 = vunpack.c.l.b16 %v274
      %v305 = vunpack.c.h.b16 %v274
      %v306 = vunpack.c.l.b16 %v275
      %v307 = vunpack.c.h.b16 %v275
      %v308 = vunpack.c.l.b16 %v276
      %v309 = vunpack.c.h.b16 %v276
      %v310 = vunpack.c.l.b16 %v277
      %v311 = vunpack.c.h.b16 %v277
      %v312 = vunpack.c.l.b16 %v278
      %v313 = vunpack.c.h.b16 %v278
      %v314 = vunpack.c.l.b16 %v279
      %v315 = vunpack.c.h.b16 %v279
      %v316 = vpack.c.b16 %v298, %v292
      %v317 = vpack.c.b16 %v299, %v293
      %v318 = vpack.c.b16 %v300, %v294
      %v319 = vpack.c.b16 %v301, %v295
      %v320 = vpack.c.b16 %v302, %v296
      %v321 = vpack.c.b16 %v303, %v297
      %v322 = vpack.c.b16 %v310, %v304
      %v323 = vpack.c.b16 %v311, %v305
      %v324 = vpack.c.b16 %v312, %v306
      %v325 = vpack.c.b16 %v313, %v307
      %v326 = vpack.c.b16 %v314, %v308
      %v327 = vpack.c.b16 %v315, %v309
      %v436 = vunpack.c.l.b16 %v172
      %v437 = vunpack.c.l.b16 %v173
      %v438 = vunpack.c.l.b16 %v174
      %v439 = vunpack.c.l.b16 %v175
      %v440 = vunpack.c.l.b16 %v176
      %v441 = vunpack.c.l.b16 %v177
      %v442 = vunpack.c.l.b16 %v178
      %v443 = vunpack.c.l.b16 %v179
      %v444 = vunpack.c.l.b16 %v180
      %v445 = vunpack.c.l.b16 %v181
      %v446 = vunpack.c.l.b16 %v182
      %v447 = vunpack.c.l.b16 %v183
      %v448 = vunpack.c.l.b16 %v184
      %v449 = vunpack.c.l.b16 %v185
      %v450 = vunpack.c.l.b16 %v186
      %v451 = vunpack.c.l.b16 %v187
      %v452 = vunpack.c.l.b16 %v188
      %v453 = vunpack.c.l.b16 %v189
      %v454 = vunpack.c.l.b16 %v190
      %v455 = vunpack.c.l.b16 %v191
      %v456 = vunpack.c.l.b16 %v192
      %v457 = vunpack.c.l.b16 %v193
      %v458 = vunpack.c.l.b16 %v194
      %v459 = vunpack.c.l.b16 %v195
      %v460 = vunpack.c.l.b16 %v196
      %v461 = vunpack.c.l.b16 %v197
      %v462 = vunpack.c.l.b16 %v198
      %v463 = vunpack.c.l.b16 %v199
      %v464 = vunpack.c.l.b16 %v200
      %v465 = vunpack.c.l.b16 %v201
      %v466 = vunpack.c.l.b16 %v202
      %v467 = vunpack.c.l.b16 %v203
      %v468 = vunpack.c.l.b16 %v204
      %v469 = vunpack.c.l.b16 %v205
      %v470 = vunpack.c.l.b16 %v206
      %v471 = vunpack.c.l.b16 %v207
      %v472 = vunpack.c.l.b16 %v208
      %v473 = vunpack.c.l.b16 %v209
      %v474 = vunpack.c.l.b16 %v210
      %v475 = vunpack.c.l.b16 %v211
      %v476 = vunpack.c.l.b16 %v212
      %v477 = vunpack.c.l.b16 %v213
      %v478 = vunpack.c.l.b16 %v214
      %v479 = vunpack.c.l.b16 %v215
      %v480 = vunpack.c.l.b16 %v216
      %v481 = vunpack.c.l.b16 %v217
      %v482 = vunpack.c.l.b16 %v218
      %v483 = vunpack.c.l.b16 %v219
      %v484 = vunpack.c.l.b16 %v220
      %v485 = vunpack.c.l.b16 %v221
      %v486 = vunpack.c.l.b16 %v222
      %v487 = vunpack.c.l.b16 %v223
      %v488 = vunpack.c.l.b16 %v224
      %v489 = vunpack.c.l.b16 %v225
      %v490 = vunpack.c.l.b16 %v226
      %v491 = vunpack.c.l.b16 %v227
      %v492 = vunpack.c.l.b16 %v228
      %v493 = vunpack.c.l.b16 %v229
      %v494 = vunpack.c.l.b16 %v230
      %v495 = vunpack.c.l.b16 %v231
      %v496 = vunpack.c.l.b16 %v232
      %v497 = vunpack.c.l.b16 %v233
      %v498 = vunpack.c.l.b16 %v234
      %v499 = vunpack.c.l.b16 %v235
      %v500 = vunpack.c.l.b16 %v236
      %v501 = vunpack.c.l.b16 %v237
      %v502 = vunpack.c.l.b16 %v238
      %v503 = vunpack.c.l.b16 %v239
      %v504 = vunpack.c.l.b16 %v240
      %v505 = vunpack.c.l.b16 %v241
      %v506 = vunpack.c.l.b16 %v242
      %v507 = vunpack.c.l.b16 %v243
      %v508 = vunpack.c.l.b16 %v244
      %v509 = vunpack.c.l.b16 %v245
      %v510 = vunpack.c.l.b16 %v246
      %v511 = vunpack.c.l.b16 %v247
      %v512 = vunpack.c.l.b16 %v248
      %v513 = vunpack.c.l.b16 %v249
      %v514 = vunpack.c.l.b16 %v250
      %v515 = vunpack.c.l.b16 %v251
      %v516 = vunpack.c.l.b16 %v252
      %v517 = vunpack.c.l.b16 %v253
      %v518 = vunpack.c.l.b16 %v254
      %v519 = vunpack.c.l.b16 %v255
      %v520 = vunpack.c.l.b16 %v256
      %v521 = vunpack.c.l.b16 %v257
      %v522 = vunpack.c.l.b16 %v258
      %v523 = vunpack.c.l.b16 %v259
      %v524 = vunpack.c.l.b16 %v260
      %v525 = vunpack.c.l.b16 %v261
      %v526 = vunpack.c.l.b16 %v262
      %v527 = vunpack.c.l.b16 %v263
      %v528 = vunpack.c.l.b16 %v264
      %v529 = vunpack.c.l.b16 %v265
      %v530 = vunpack.c.l.b16 %v266
      %v531 = vunpack.c.l.b16 %v267
      %v532 = vpack.c.b16 %v437, %v436
      %v533 = vpack.c.b16 %v439, %v438
      %v534 = vpack.c.b16 %v441, %v440
      %v535 = vpack.c.b16 %v443, %v442
      %v536 = vpack.c.b16 %v445, %v444
      %v537 = vpack.c.b16 %v447, %v446
      %v538 = vpack.c.b16 %v449, %v448
      %v539 = vpack.c.b16 %v451, %v450
      %v540 = vpack.c.b16 %v453, %v452
      %v541 = vpack.c.b16 %v455, %v454
      %v542 = vpack.c.b16 %v457, %v456
      %v543 = vpack.c.b16 %v459, %v458
      %v544 = vpack.c.b16 %v461, %v460
      %v545 = vpack.c.b16 %v463, %v462
      %v546 = vpack.c.b16 %v465, %v464
      %v547 = vpack.c.b16 %v467, %v466
      %v548 = vpack.c.b16 %v469, %v468
      %v549 = vpack.c.b16 %v471, %v470
      %v550 = vpack.c.b16 %v473, %v472
      %v551 = vpack.c.b16 %v475, %v474
      %v552 = vpack.c.b16 %v477, %v476
      %v553 = vpack.c.b16 %v479, %v478
      %v554 = vpack.c.b16 %v481, %v480
      %v555 = vpack.c.b16 %v483, %v482
      %v556 = vpack.c.b16 %v485, %v484
      %v557 = vpack.c.b16 %v487, %v486
      %v558 = vpack.c.b16 %v489, %v488
      %v559 = vpack.c.b16 %v491, %v490
      %v560 = vpack.c.b16 %v493, %v492
      %v561 = vpack.c.b16 %v495, %v494
      %v562 = vpack.c.b16 %v497, %v496
      %v563 = vpack.c.b16 %v499, %v498
      %v564 = vpack.c.b16 %v501, %v500
      %v565 = vpack.c.b16 %v503, %v502
      %v566 = vpack.c.b16 %v505, %v504
      %v567 = vpack.c.b16 %v507, %v506
      %v568 = vpack.c.b16 %v509, %v508
      %v569 = vpack.c.b16 %v511, %v510
      %v570 = vpack.c.b16 %v513, %v512
      %v571 = vpack.c.b16 %v515, %v514
      %v572 = vpack.c.b16 %v517, %v516
      %v573 = vpack.c.b16 %v519, %v518
      %v574 = vpack.c.b16 %v521, %v520
      %v575 = vpack.c.b16 %v523, %v522
      %v576 = vpack.c.b16 %v525, %v524
      %v577 = vpack.c.b16 %v527, %v526
      %v578 = vpack.c.b16 %v529, %v528
      %v579 = vpack.c.b16 %v531, %v530
      %628 = vmatprep.subr.bf16.mxu0 0
      %629 = vmatpush1.bf16.msra.mxu0 %v532
      %630 = vmatprep.subr.bf16.mxu0 0
      %631 = vmatpush1.bf16.msra.mxu0 %v533
      %632 = vmatprep.subr.bf16.mxu0 0
      %633 = vmatpush1.bf16.msra.mxu0 %v534
      %634 = vmatprep.subr.bf16.mxu0 0
      %635 = vmatpush1.bf16.msra.mxu0 %v535
      %636 = vmatprep.subr.bf16.mxu0 0
      %637 = vmatpush1.bf16.msra.mxu0 %v536
      %638 = vmatprep.subr.bf16.mxu0 0
      %639 = vmatpush1.bf16.msra.mxu0 %v537
      %640 = vmatprep.subr.bf16.mxu0 0
      %641 = vmatpush1.bf16.msra.mxu0 %v538
      %642 = vmatprep.subr.bf16.mxu0 0
      %643 = vmatpush1.bf16.msra.mxu0 %v539
      %644 = vmatprep.subr.bf16.mxu0 0
      %645 = vmatpush1.bf16.msra.mxu0 %v540
      %646 = vmatprep.subr.bf16.mxu0 0
      %647 = vmatpush1.bf16.msra.mxu0 %v541
      %648 = vmatprep.subr.bf16.mxu0 0
      %649 = vmatpush1.bf16.msra.mxu0 %v542
      %650 = vmatprep.subr.bf16.mxu0 0
      %651 = vmatpush1.bf16.msra.mxu0 %v543
      %652 = vmatprep.subr.bf16.mxu0 0
      %653 = vmatpush1.bf16.msra.mxu0 %v544
      %654 = vmatprep.subr.bf16.mxu0 0
      %655 = vmatpush1.bf16.msra.mxu0 %v545
      %656 = vmatprep.subr.bf16.mxu0 0
      %657 = vmatpush1.bf16.msra.mxu0 %v546
      %658 = vmatprep.subr.bf16.mxu0 0
      %659 = vmatpush1.bf16.msra.mxu0 %v547
      %660 = vmatprep.mubr.bf16.mxu0 %v317
      %661 = vmatmul.mubr.bf16.gmra.mrb[0].mxu0 %v316
      %v662 = vpop.f32.mrb[0].mxu0
      %v663 = vadd.f32 0.0, %v662
      %v664 = vpop.f32.mrb[0].mxu0
      %v665 = vpop.f32.mrb[0].mxu0
      %v666 = vadd.f32 0.0, %v665
      %v667 = vpop.f32.mrb[0].mxu0
      %668 = vmatprep.mubr.bf16.mxu0 %v323
      %669 = vmatmul.mubr.bf16.gmra.mrb[0].mxu0 %v322
      %v670 = vpop.f32.mrb[0].mxu0
      %v671 = vadd.f32 0.0, %v670
      %v672 = vpop.f32.mrb[0].mxu0
      %v673 = vpop.f32.mrb[0].mxu0
      %v674 = vadd.f32 0.0, %v673
      %v675 = vpop.f32.mrb[0].mxu0
      %676 = vdwg.mxu0
      %677 = vmatprep.subr.bf16.mxu0 0
      %678 = vmatpush1.bf16.msra.mxu0 %v548
      %679 = vmatprep.subr.bf16.mxu0 0
      %680 = vmatpush1.bf16.msra.mxu0 %v549
      %681 = vmatprep.subr.bf16.mxu0 0
      %682 = vmatpush1.bf16.msra.mxu0 %v550
      %683 = vmatprep.subr.bf16.mxu0 0
      %684 = vmatpush1.bf16.msra.mxu0 %v551
      %685 = vmatprep.subr.bf16.mxu0 0
      %686 = vmatpush1.bf16.msra.mxu0 %v552
      %687 = vmatprep.subr.bf16.mxu0 0
      %688 = vmatpush1.bf16.msra.mxu0 %v553
      %689 = vmatprep.subr.bf16.mxu0 0
      %690 = vmatpush1.bf16.msra.mxu0 %v554
      %691 = vmatprep.subr.bf16.mxu0 0
      %692 = vmatpush1.bf16.msra.mxu0 %v555
      %693 = vmatprep.subr.bf16.mxu0 0
      %694 = vmatpush1.bf16.msra.mxu0 %v556
      %695 = vmatprep.subr.bf16.mxu0 0
      %696 = vmatpush1.bf16.msra.mxu0 %v557
      %697 = vmatprep.subr.bf16.mxu0 0
      %698 = vmatpush1.bf16.msra.mxu0 %v558
      %699 = vmatprep.subr.bf16.mxu0 0
      %700 = vmatpush1.bf16.msra.mxu0 %v559
      %701 = vmatprep.subr.bf16.mxu0 0
      %702 = vmatpush1.bf16.msra.mxu0 %v560
      %703 = vmatprep.subr.bf16.mxu0 0
      %704 = vmatpush1.bf16.msra.mxu0 %v561
      %705 = vmatprep.subr.bf16.mxu0 0
      %706 = vmatpush1.bf16.msra.mxu0 %v562
      %707 = vmatprep.subr.bf16.mxu0 0
      %708 = vmatpush1.bf16.msra.mxu0 %v563
      %709 = vmatprep.mubr.bf16.mxu0 %v319
      %710 = vmatmul.mubr.bf16.gmra.mrb[0].mxu0 %v318
      %v711 = vpop.f32.mrb[0].mxu0
      %v712 = vadd.f32 %v663, %v711
      %v713 = vpop.f32.mrb[0].mxu0
      %v714 = vpop.f32.mrb[0].mxu0
      %v715 = vadd.f32 %v666, %v714
      %v716 = vpop.f32.mrb[0].mxu0
      %717 = vmatprep.mubr.bf16.mxu0 %v325
      %718 = vmatmul.mubr.bf16.gmra.mrb[0].mxu0 %v324
      %v719 = vpop.f32.mrb[0].mxu0
      %v720 = vadd.f32 %v671, %v719
      %v721 = vpop.f32.mrb[0].mxu0
      %v722 = vpop.f32.mrb[0].mxu0
      %v723 = vadd.f32 %v674, %v722
      %v724 = vpop.f32.mrb[0].mxu0
      %725 = vdwg.mxu0
      %726 = vmatprep.subr.bf16.mxu0 0
      %727 = vmatpush1.bf16.msra.mxu0 %v564
      %728 = vmatprep.subr.bf16.mxu0 0
      %729 = vmatpush1.bf16.msra.mxu0 %v565
      %730 = vmatprep.subr.bf16.mxu0 0
      %731 = vmatpush1.bf16.msra.mxu0 %v566
      %732 = vmatprep.subr.bf16.mxu0 0
      %733 = vmatpush1.bf16.msra.mxu0 %v567
      %734 = vmatprep.subr.bf16.mxu0 0
      %735 = vmatpush1.bf16.msra.mxu0 %v568
      %736 = vmatprep.subr.bf16.mxu0 0
      %737 = vmatpush1.bf16.msra.mxu0 %v569
      %738 = vmatprep.subr.bf16.mxu0 0
      %739 = vmatpush1.bf16.msra.mxu0 %v570
      %740 = vmatprep.subr.bf16.mxu0 0
      %741 = vmatpush1.bf16.msra.mxu0 %v571
      %742 = vmatprep.subr.bf16.mxu0 0
      %743 = vmatpush1.bf16.msra.mxu0 %v572
      %744 = vmatprep.subr.bf16.mxu0 0
      %745 = vmatpush1.bf16.msra.mxu0 %v573
      %746 = vmatprep.subr.bf16.mxu0 0
      %747 = vmatpush1.bf16.msra.mxu0 %v574
      %748 = vmatprep.subr.bf16.mxu0 0
      %749 = vmatpush1.bf16.msra.mxu0 %v575
      %750 = vmatprep.subr.bf16.mxu0 0
      %751 = vmatpush1.bf16.msra.mxu0 %v576
      %752 = vmatprep.subr.bf16.mxu0 0
      %753 = vmatpush1.bf16.msra.mxu0 %v577
      %754 = vmatprep.subr.bf16.mxu0 0
      %755 = vmatpush1.bf16.msra.mxu0 %v578
      %756 = vmatprep.subr.bf16.mxu0 0
      %757 = vmatpush1.bf16.msra.mxu0 %v579
      %758 = vmatprep.mubr.bf16.mxu0 %v321
      %759 = vmatmul.mubr.bf16.gmra.mrb[0].mxu0 %v320
      %v760 = vpop.f32.mrb[0].mxu0
      %v761 = vadd.f32 %v712, %v760
      %v762 = vpop.f32.mrb[0].mxu0
      %v763 = vpop.f32.mrb[0].mxu0
      %v764 = vadd.f32 %v715, %v763
      %v765 = vpop.f32.mrb[0].mxu0
      %766 = vmatprep.mubr.bf16.mxu0 %v327
      %767 = vmatmul.mubr.bf16.gmra.mrb[0].mxu0 %v326
      %v768 = vpop.f32.mrb[0].mxu0
      %v769 = vadd.f32 %v720, %v768
      %v770 = vpop.f32.mrb[0].mxu0
      %v771 = vpop.f32.mrb[0].mxu0
      %v772 = vadd.f32 %v723, %v771
      %v773 = vpop.f32.mrb[0].mxu0
      %774 = vdwg.mxu0
      %s775 = scalar_lea.vmem %s165, 96
      %v776 = vld [vmem:[%s775] sm:$0xff]
      %v777 = vld [vmem:[%s775 + $0x8] sm:$0xff]
      %v778 = vld [vmem:[%s775 + $0x10] sm:$0xff]
      %v779 = vld [vmem:[%s775 + $0x18] sm:$0xff]
      %v780 = vld [vmem:[%s775 + $0x20] sm:$0xff]
      %v781 = vld [vmem:[%s775 + $0x28] sm:$0xff]
      %v782 = vld [vmem:[%s775 + $0x30] sm:$0xff]
      %v783 = vld [vmem:[%s775 + $0x38] sm:$0xff]
      %v784 = vld [vmem:[%s775 + $0x40] sm:$0xff]
      %v785 = vld [vmem:[%s775 + $0x48] sm:$0x11]
      %v786 = vld [vmem:[%s775 + $0x50] sm:$0x11]
      %v787 = vld [vmem:[%s775 + $0x58] sm:$0x11]
      %v800 = vunpack.c.l.b16 %v776
      %v801 = vunpack.c.h.b16 %v776
      %v802 = vunpack.c.l.b16 %v777
      %v803 = vunpack.c.h.b16 %v777
      %v804 = vunpack.c.l.b16 %v778
      %v805 = vunpack.c.h.b16 %v778
      %v806 = vunpack.c.l.b16 %v779
      %v807 = vunpack.c.h.b16 %v779
      %v808 = vunpack.c.l.b16 %v780
      %v809 = vunpack.c.h.b16 %v780
      %v810 = vunpack.c.l.b16 %v781
      %v811 = vunpack.c.h.b16 %v781
      %v812 = vunpack.c.l.b16 %v782
      %v813 = vunpack.c.h.b16 %v782
      %v814 = vunpack.c.l.b16 %v783
      %v815 = vunpack.c.h.b16 %v783
      %v816 = vunpack.c.l.b16 %v784
      %v817 = vunpack.c.h.b16 %v784
      %v818 = vunpack.c.l.b16 %v785
      %v819 = vunpack.c.h.b16 %v785
      %v820 = vunpack.c.l.b16 %v786
      %v821 = vunpack.c.h.b16 %v786
      %v822 = vunpack.c.l.b16 %v787
      %v823 = vunpack.c.h.b16 %v787
      %v824 = vpack.c.b16 %v806, %v800
      %v825 = vpack.c.b16 %v807, %v801
      %v826 = vpack.c.b16 %v808, %v802
      %v827 = vpack.c.b16 %v809, %v803
      %v828 = vpack.c.b16 %v810, %v804
      %v829 = vpack.c.b16 %v811, %v805
      %v830 = vpack.c.b16 %v818, %v812
      %v831 = vpack.c.b16 %v819, %v813
      %v832 = vpack.c.b16 %v820, %v814
      %v833 = vpack.c.b16 %v821, %v815
      %v834 = vpack.c.b16 %v822, %v816
      %v835 = vpack.c.b16 %v823, %v817
      %848 = vmatprep.subr.bf16.mxu0 0
      %849 = vmatpush1.bf16.msra.mxu0 %v532
      %850 = vmatprep.subr.bf16.mxu0 0
      %851 = vmatpush1.bf16.msra.mxu0 %v533
      %852 = vmatprep.subr.bf16.mxu0 0
      %853 = vmatpush1.bf16.msra.mxu0 %v534
      %854 = vmatprep.subr.bf16.mxu0 0
      %855 = vmatpush1.bf16.msra.mxu0 %v535
      %856 = vmatprep.subr.bf16.mxu0 0
      %857 = vmatpush1.bf16.msra.mxu0 %v536
      %858 = vmatprep.subr.bf16.mxu0 0
      %859 = vmatpush1.bf16.msra.mxu0 %v537
      %860 = vmatprep.subr.bf16.mxu0 0
      %861 = vmatpush1.bf16.msra.mxu0 %v538
      %862 = vmatprep.subr.bf16.mxu0 0
      %863 = vmatpush1.bf16.msra.mxu0 %v539
      %864 = vmatprep.subr.bf16.mxu0 0
      %865 = vmatpush1.bf16.msra.mxu0 %v540
      %866 = vmatprep.subr.bf16.mxu0 0
      %867 = vmatpush1.bf16.msra.mxu0 %v541
      %868 = vmatprep.subr.bf16.mxu0 0
      %869 = vmatpush1.bf16.msra.mxu0 %v542
      %870 = vmatprep.subr.bf16.mxu0 0
      %871 = vmatpush1.bf16.msra.mxu0 %v543
      %872 = vmatprep.subr.bf16.mxu0 0
      %873 = vmatpush1.bf16.msra.mxu0 %v544
      %874 = vmatprep.subr.bf16.mxu0 0
      %875 = vmatpush1.bf16.msra.mxu0 %v545
      %876 = vmatprep.subr.bf16.mxu0 0
      %877 = vmatpush1.bf16.msra.mxu0 %v546
      %878 = vmatprep.subr.bf16.mxu0 0
      %879 = vmatpush1.bf16.msra.mxu0 %v547
      %880 = vmatprep.mubr.bf16.mxu0 %v825
      %881 = vmatmul.mubr.bf16.gmra.mrb[0].mxu0 %v824
      %v882 = vpop.f32.mrb[0].mxu0
      %v883 = vadd.f32 0.0, %v882
      %v884 = vpop.f32.mrb[0].mxu0
      %v885 = vpop.f32.mrb[0].mxu0
      %v886 = vadd.f32 0.0, %v885
      %v887 = vpop.f32.mrb[0].mxu0
      %888 = vmatprep.mubr.bf16.mxu0 %v831
      %889 = vmatmul.mubr.bf16.gmra.mrb[0].mxu0 %v830
      %v890 = vpop.f32.mrb[0].mxu0
      %v891 = vadd.f32 0.0, %v890
      %v892 = vpop.f32.mrb[0].mxu0
      %v893 = vpop.f32.mrb[0].mxu0
      %v894 = vadd.f32 0.0, %v893
      %v895 = vpop.f32.mrb[0].mxu0
      %896 = vdwg.mxu0
      %897 = vmatprep.subr.bf16.mxu0 0
      %898 = vmatpush1.bf16.msra.mxu0 %v548
      %899 = vmatprep.subr.bf16.mxu0 0
      %900 = vmatpush1.bf16.msra.mxu0 %v549
      %901 = vmatprep.subr.bf16.mxu0 0
      %902 = vmatpush1.bf16.msra.mxu0 %v550
      %903 = vmatprep.subr.bf16.mxu0 0
      %904 = vmatpush1.bf16.msra.mxu0 %v551
      %905 = vmatprep.subr.bf16.mxu0 0
      %906 = vmatpush1.bf16.msra.mxu0 %v552
      %907 = vmatprep.subr.bf16.mxu0 0
      %908 = vmatpush1.bf16.msra.mxu0 %v553
      %909 = vmatprep.subr.bf16.mxu0 0
      %910 = vmatpush1.bf16.msra.mxu0 %v554
      %911 = vmatprep.subr.bf16.mxu0 0
      %912 = vmatpush1.bf16.msra.mxu0 %v555
      %913 = vmatprep.subr.bf16.mxu0 0
      %914 = vmatpush1.bf16.msra.mxu0 %v556
      %915 = vmatprep.subr.bf16.mxu0 0
      %916 = vmatpush1.bf16.msra.mxu0 %v557
      %917 = vmatprep.subr.bf16.mxu0 0
      %918 = vmatpush1.bf16.msra.mxu0 %v558
      %919 = vmatprep.subr.bf16.mxu0 0
      %920 = vmatpush1.bf16.msra.mxu0 %v559
      %921 = vmatprep.subr.bf16.mxu0 0
      %922 = vmatpush1.bf16.msra.mxu0 %v560
      %923 = vmatprep.subr.bf16.mxu0 0
      %924 = vmatpush1.bf16.msra.mxu0 %v561
      %925 = vmatprep.subr.bf16.mxu0 0
      %926 = vmatpush1.bf16.msra.mxu0 %v562
      %927 = vmatprep.subr.bf16.mxu0 0
      %928 = vmatpush1.bf16.msra.mxu0 %v563
      %929 = vmatprep.mubr.bf16.mxu0 %v827
      %930 = vmatmul.mubr.bf16.gmra.mrb[0].mxu0 %v826
      %v931 = vpop.f32.mrb[0].mxu0
      %v932 = vadd.f32 %v883, %v931
      %v933 = vpop.f32.mrb[0].mxu0
      %v934 = vpop.f32.mrb[0].mxu0
      %v935 = vadd.f32 %v886, %v934
      %v936 = vpop.f32.mrb[0].mxu0
      %937 = vmatprep.mubr.bf16.mxu0 %v833
      %938 = vmatmul.mubr.bf16.gmra.mrb[0].mxu0 %v832
      %v939 = vpop.f32.mrb[0].mxu0
      %v940 = vadd.f32 %v891, %v939
      %v941 = vpop.f32.mrb[0].mxu0
      %v942 = vpop.f32.mrb[0].mxu0
      %v943 = vadd.f32 %v894, %v942
      %v944 = vpop.f32.mrb[0].mxu0
      %945 = vdwg.mxu0
      %946 = vmatprep.subr.bf16.mxu0 0
      %947 = vmatpush1.bf16.msra.mxu0 %v564
      %948 = vmatprep.subr.bf16.mxu0 0
      %949 = vmatpush1.bf16.msra.mxu0 %v565
      %950 = vmatprep.subr.bf16.mxu0 0
      %951 = vmatpush1.bf16.msra.mxu0 %v566
      %952 = vmatprep.subr.bf16.mxu0 0
      %953 = vmatpush1.bf16.msra.mxu0 %v567
      %954 = vmatprep.subr.bf16.mxu0 0
      %955 = vmatpush1.bf16.msra.mxu0 %v568
      %956 = vmatprep.subr.bf16.mxu0 0
      %957 = vmatpush1.bf16.msra.mxu0 %v569
      %958 = vmatprep.subr.bf16.mxu0 0
      %959 = vmatpush1.bf16.msra.mxu0 %v570
      %960 = vmatprep.subr.bf16.mxu0 0
      %961 = vmatpush1.bf16.msra.mxu0 %v571
      %962 = vmatprep.subr.bf16.mxu0 0
      %963 = vmatpush1.bf16.msra.mxu0 %v572
      %964 = vmatprep.subr.bf16.mxu0 0
      %965 = vmatpush1.bf16.msra.mxu0 %v573
      %966 = vmatprep.subr.bf16.mxu0 0
      %967 = vmatpush1.bf16.msra.mxu0 %v574
      %968 = vmatprep.subr.bf16.mxu0 0
      %969 = vmatpush1.bf16.msra.mxu0 %v575
      %970 = vmatprep.subr.bf16.mxu0 0
      %971 = vmatpush1.bf16.msra.mxu0 %v576
      %972 = vmatprep.subr.bf16.mxu0 0
      %973 = vmatpush1.bf16.msra.mxu0 %v577
      %974 = vmatprep.subr.bf16.mxu0 0
      %975 = vmatpush1.bf16.msra.mxu0 %v578
      %976 = vmatprep.subr.bf16.mxu0 0
      %977 = vmatpush1.bf16.msra.mxu0 %v579
      %978 = vmatprep.mubr.bf16.mxu0 %v829
      %979 = vmatmul.mubr.bf16.gmra.mrb[0].mxu0 %v828
      %v980 = vpop.f32.mrb[0].mxu0
      %v981 = vadd.f32 %v932, %v980
      %v982 = vpop.f32.mrb[0].mxu0
      %v983 = vpop.f32.mrb[0].mxu0
      %v984 = vadd.f32 %v935, %v983
      %v985 = vpop.f32.mrb[0].mxu0
      %986 = vmatprep.mubr.bf16.mxu0 %v835
      %987 = vmatmul.mubr.bf16.gmra.mrb[0].mxu0 %v834
      %v988 = vpop.f32.mrb[0].mxu0
      %v989 = vadd.f32 %v940, %v988
      %v990 = vpop.f32.mrb[0].mxu0
      %v991 = vpop.f32.mrb[0].mxu0
      %v992 = vadd.f32 %v943, %v991
      %v993 = vpop.f32.mrb[0].mxu0
      %994 = vdwg.mxu0
      %v995 = vmax.f32 %v761, %v981
      %v996 = vmax.f32 %v764, %v984
      %v997 = vmax.f32 %v769, %v989
      %v998 = vmax.f32 %v772, %v992
      %s999 = scalar_lea.vmem %s165, 192
      %v1000 = vld [vmem:[%s999] sm:$0xff]
      %v1001 = vld [vmem:[%s999 + $0x8] sm:$0xff]
      %v1002 = vld [vmem:[%s999 + $0x10] sm:$0xff]
      %v1003 = vld [vmem:[%s999 + $0x18] sm:$0xff]
      %v1004 = vld [vmem:[%s999 + $0x20] sm:$0xff]
      %v1005 = vld [vmem:[%s999 + $0x28] sm:$0xff]
      %v1006 = vld [vmem:[%s999 + $0x30] sm:$0xff]
      %v1007 = vld [vmem:[%s999 + $0x38] sm:$0xff]
      %v1008 = vld [vmem:[%s999 + $0x40] sm:$0xff]
      %v1009 = vld [vmem:[%s999 + $0x48] sm:$0x11]
      %v1010 = vld [vmem:[%s999 + $0x50] sm:$0x11]
      %v1011 = vld [vmem:[%s999 + $0x58] sm:$0x11]
      %v1024 = vunpack.c.l.b16 %v1000
      %v1025 = vunpack.c.h.b16 %v1000
      %v1026 = vunpack.c.l.b16 %v1001
      %v1027 = vunpack.c.h.b16 %v1001
      %v1028 = vunpack.c.l.b16 %v1002
      %v1029 = vunpack.c.h.b16 %v1002
      %v1030 = vunpack.c.l.b16 %v1003
      %v1031 = vunpack.c.h.b16 %v1003
      %v1032 = vunpack.c.l.b16 %v1004
      %v1033 = vunpack.c.h.b16 %v1004
      %v1034 = vunpack.c.l.b16 %v1005
      %v1035 = vunpack.c.h.b16 %v1005
      %v1036 = vunpack.c.l.b16 %v1006
      %v1037 = vunpack.c.h.b16 %v1006
      %v1038 = vunpack.c.l.b16 %v1007
      %v1039 = vunpack.c.h.b16 %v1007
      %v1040 = vunpack.c.l.b16 %v1008
      %v1041 = vunpack.c.h.b16 %v1008
      %v1042 = vunpack.c.l.b16 %v1009
      %v1043 = vunpack.c.h.b16 %v1009
      %v1044 = vunpack.c.l.b16 %v1010
      %v1045 = vunpack.c.h.b16 %v1010
      %v1046 = vunpack.c.l.b16 %v1011
      %v1047 = vunpack.c.h.b16 %v1011
      %v1048 = vpack.c.b16 %v1030, %v1024
      %v1049 = vpack.c.b16 %v1031, %v1025
      %v1050 = vpack.c.b16 %v1032, %v1026
      %v1051 = vpack.c.b16 %v1033, %v1027
      %v1052 = vpack.c.b16 %v1034, %v1028
      %v1053 = vpack.c.b16 %v1035, %v1029
      %v1054 = vpack.c.b16 %v1042, %v1036
      %v1055 = vpack.c.b16 %v1043, %v1037
      %v1056 = vpack.c.b16 %v1044, %v1038
      %v1057 = vpack.c.b16 %v1045, %v1039
      %v1058 = vpack.c.b16 %v1046, %v1040
      %v1059 = vpack.c.b16 %v1047, %v1041
      %1072 = vmatprep.subr.bf16.mxu0 0
      %1073 = vmatpush1.bf16.msra.mxu0 %v532
      %1074 = vmatprep.subr.bf16.mxu0 0
      %1075 = vmatpush1.bf16.msra.mxu0 %v533
      %1076 = vmatprep.subr.bf16.mxu0 0
      %1077 = vmatpush1.bf16.msra.mxu0 %v534
      %1078 = vmatprep.subr.bf16.mxu0 0
      %1079 = vmatpush1.bf16.msra.mxu0 %v535
      %1080 = vmatprep.subr.bf16.mxu0 0
      %1081 = vmatpush1.bf16.msra.mxu0 %v536
      %1082 = vmatprep.subr.bf16.mxu0 0
      %1083 = vmatpush1.bf16.msra.mxu0 %v537
      %1084 = vmatprep.subr.bf16.mxu0 0
      %1085 = vmatpush1.bf16.msra.mxu0 %v538
      %1086 = vmatprep.subr.bf16.mxu0 0
      %1087 = vmatpush1.bf16.msra.mxu0 %v539
      %1088 = vmatprep.subr.bf16.mxu0 0
      %1089 = vmatpush1.bf16.msra.mxu0 %v540
      %1090 = vmatprep.subr.bf16.mxu0 0
      %1091 = vmatpush1.bf16.msra.mxu0 %v541
      %1092 = vmatprep.subr.bf16.mxu0 0
      %1093 = vmatpush1.bf16.msra.mxu0 %v542
      %1094 = vmatprep.subr.bf16.mxu0 0
      %1095 = vmatpush1.bf16.msra.mxu0 %v543
      %1096 = vmatprep.subr.bf16.mxu0 0
      %1097 = vmatpush1.bf16.msra.mxu0 %v544
      %1098 = vmatprep.subr.bf16.mxu0 0
      %1099 = vmatpush1.bf16.msra.mxu0 %v545
      %1100 = vmatprep.subr.bf16.mxu0 0
      %1101 = vmatpush1.bf16.msra.mxu0 %v546
      %1102 = vmatprep.subr.bf16.mxu0 0
      %1103 = vmatpush1.bf16.msra.mxu0 %v547
      %1104 = vmatprep.mubr.bf16.mxu0 %v1049
      %1105 = vmatmul.mubr.bf16.gmra.mrb[0].mxu0 %v1048
      %v1106 = vpop.f32.mrb[0].mxu0
      %v1107 = vadd.f32 0.0, %v1106
      %v1108 = vpop.f32.mrb[0].mxu0
      %v1109 = vpop.f32.mrb[0].mxu0
      %v1110 = vadd.f32 0.0, %v1109
      %v1111 = vpop.f32.mrb[0].mxu0
      %1112 = vmatprep.mubr.bf16.mxu0 %v1055
      %1113 = vmatmul.mubr.bf16.gmra.mrb[0].mxu0 %v1054
      %v1114 = vpop.f32.mrb[0].mxu0
      %v1115 = vadd.f32 0.0, %v1114
      %v1116 = vpop.f32.mrb[0].mxu0
      %v1117 = vpop.f32.mrb[0].mxu0
      %v1118 = vadd.f32 0.0, %v1117
      %v1119 = vpop.f32.mrb[0].mxu0
      %1120 = vdwg.mxu0
      %1121 = vmatprep.subr.bf16.mxu0 0
      %1122 = vmatpush1.bf16.msra.mxu0 %v548
      %1123 = vmatprep.subr.bf16.mxu0 0
      %1124 = vmatpush1.bf16.msra.mxu0 %v549
      %1125 = vmatprep.subr.bf16.mxu0 0
      %1126 = vmatpush1.bf16.msra.mxu0 %v550
      %1127 = vmatprep.subr.bf16.mxu0 0
      %1128 = vmatpush1.bf16.msra.mxu0 %v551
      %1129 = vmatprep.subr.bf16.mxu0 0
      %1130 = vmatpush1.bf16.msra.mxu0 %v552
      %1131 = vmatprep.subr.bf16.mxu0 0
      %1132 = vmatpush1.bf16.msra.mxu0 %v553
      %1133 = vmatprep.subr.bf16.mxu0 0
      %1134 = vmatpush1.bf16.msra.mxu0 %v554
      %1135 = vmatprep.subr.bf16.mxu0 0
      %1136 = vmatpush1.bf16.msra.mxu0 %v555
      %1137 = vmatprep.subr.bf16.mxu0 0
      %1138 = vmatpush1.bf16.msra.mxu0 %v556
      %1139 = vmatprep.subr.bf16.mxu0 0
      %1140 = vmatpush1.bf16.msra.mxu0 %v557
      %1141 = vmatprep.subr.bf16.mxu0 0
      %1142 = vmatpush1.bf16.msra.mxu0 %v558
      %1143 = vmatprep.subr.bf16.mxu0 0
      %1144 = vmatpush1.bf16.msra.mxu0 %v559
      %1145 = vmatprep.subr.bf16.mxu0 0
      %1146 = vmatpush1.bf16.msra.mxu0 %v560
      %1147 = vmatprep.subr.bf16.mxu0 0
      %1148 = vmatpush1.bf16.msra.mxu0 %v561
      %1149 = vmatprep.subr.bf16.mxu0 0
      %1150 = vmatpush1.bf16.msra.mxu0 %v562
      %1151 = vmatprep.subr.bf16.mxu0 0
      %1152 = vmatpush1.bf16.msra.mxu0 %v563
      %1153 = vmatprep.mubr.bf16.mxu0 %v1051
      %1154 = vmatmul.mubr.bf16.gmra.mrb[0].mxu0 %v1050
      %v1155 = vpop.f32.mrb[0].mxu0
      %v1156 = vadd.f32 %v1107, %v1155
      %v1157 = vpop.f32.mrb[0].mxu0
      %v1158 = vpop.f32.mrb[0].mxu0
      %v1159 = vadd.f32 %v1110, %v1158
      %v1160 = vpop.f32.mrb[0].mxu0
      %1161 = vmatprep.mubr.bf16.mxu0 %v1057
      %1162 = vmatmul.mubr.bf16.gmra.mrb[0].mxu0 %v1056
      %v1163 = vpop.f32.mrb[0].mxu0
      %v1164 = vadd.f32 %v1115, %v1163
      %v1165 = vpop.f32.mrb[0].mxu0
      %v1166 = vpop.f32.mrb[0].mxu0
      %v1167 = vadd.f32 %v1118, %v1166
      %v1168 = vpop.f32.mrb[0].mxu0
      %1169 = vdwg.mxu0
      %1170 = vmatprep.subr.bf16.mxu0 0
      %1171 = vmatpush1.bf16.msra.mxu0 %v564
      %1172 = vmatprep.subr.bf16.mxu0 0
      %1173 = vmatpush1.bf16.msra.mxu0 %v565
      %1174 = vmatprep.subr.bf16.mxu0 0
      %1175 = vmatpush1.bf16.msra.mxu0 %v566
      %1176 = vmatprep.subr.bf16.mxu0 0
      %1177 = vmatpush1.bf16.msra.mxu0 %v567
      %1178 = vmatprep.subr.bf16.mxu0 0
      %1179 = vmatpush1.bf16.msra.mxu0 %v568
      %1180 = vmatprep.subr.bf16.mxu0 0
      %1181 = vmatpush1.bf16.msra.mxu0 %v569
      %1182 = vmatprep.subr.bf16.mxu0 0
      %1183 = vmatpush1.bf16.msra.mxu0 %v570
      %1184 = vmatprep.subr.bf16.mxu0 0
      %1185 = vmatpush1.bf16.msra.mxu0 %v571
      %1186 = vmatprep.subr.bf16.mxu0 0
      %1187 = vmatpush1.bf16.msra.mxu0 %v572
      %1188 = vmatprep.subr.bf16.mxu0 0
      %1189 = vmatpush1.bf16.msra.mxu0 %v573
      %1190 = vmatprep.subr.bf16.mxu0 0
      %1191 = vmatpush1.bf16.msra.mxu0 %v574
      %1192 = vmatprep.subr.bf16.mxu0 0
      %1193 = vmatpush1.bf16.msra.mxu0 %v575
      %1194 = vmatprep.subr.bf16.mxu0 0
      %1195 = vmatpush1.bf16.msra.mxu0 %v576
      %1196 = vmatprep.subr.bf16.mxu0 0
      %1197 = vmatpush1.bf16.msra.mxu0 %v577
      %1198 = vmatprep.subr.bf16.mxu0 0
      %1199 = vmatpush1.bf16.msra.mxu0 %v578
      %1200 = vmatprep.subr.bf16.mxu0 0
      %1201 = vmatpush1.bf16.msra.mxu0 %v579
      %1202 = vmatprep.mubr.bf16.mxu0 %v1053
      %1203 = vmatmul.mubr.bf16.gmra.mrb[0].mxu0 %v1052
      %v1204 = vpop.f32.mrb[0].mxu0
      %v1205 = vadd.f32 %v1156, %v1204
      %v1206 = vpop.f32.mrb[0].mxu0
      %v1207 = vpop.f32.mrb[0].mxu0
      %v1208 = vadd.f32 %v1159, %v1207
      %v1209 = vpop.f32.mrb[0].mxu0
      %1210 = vmatprep.mubr.bf16.mxu0 %v1059
      %1211 = vmatmul.mubr.bf16.gmra.mrb[0].mxu0 %v1058
      %v1212 = vpop.f32.mrb[0].mxu0
      %v1213 = vadd.f32 %v1164, %v1212
      %v1214 = vpop.f32.mrb[0].mxu0
      %v1215 = vpop.f32.mrb[0].mxu0
      %v1216 = vadd.f32 %v1167, %v1215
      %v1217 = vpop.f32.mrb[0].mxu0
      %1218 = vdwg.mxu0
      %v1219 = vmax.f32 %v995, %v1205
      %v1220 = vmax.f32 %v996, %v1208
      %v1221 = vmax.f32 %v997, %v1213
      %v1222 = vmax.f32 %v998, %v1216
      %s1223 = scalar_lea.vmem %s165, 288
      %v1224 = vld [vmem:[%s1223] sm:$0xff]
      %v1225 = vld [vmem:[%s1223 + $0x8] sm:$0xff]
      %v1226 = vld [vmem:[%s1223 + $0x10] sm:$0xff]
      %v1227 = vld [vmem:[%s1223 + $0x18] sm:$0xff]
      %v1228 = vld [vmem:[%s1223 + $0x20] sm:$0xff]
      %v1229 = vld [vmem:[%s1223 + $0x28] sm:$0xff]
      %v1230 = vld [vmem:[%s1223 + $0x30] sm:$0xff]
      %v1231 = vld [vmem:[%s1223 + $0x38] sm:$0xff]
      %v1232 = vld [vmem:[%s1223 + $0x40] sm:$0xff]
      %v1233 = vld [vmem:[%s1223 + $0x48] sm:$0x11]
      %v1234 = vld [vmem:[%s1223 + $0x50] sm:$0x11]
      %v1235 = vld [vmem:[%s1223 + $0x58] sm:$0x11]
      %v1248 = vunpack.c.l.b16 %v1224
      %v1249 = vunpack.c.h.b16 %v1224
      %v1250 = vunpack.c.l.b16 %v1225
      %v1251 = vunpack.c.h.b16 %v1225
      %v1252 = vunpack.c.l.b16 %v1226
      %v1253 = vunpack.c.h.b16 %v1226
      %v1254 = vunpack.c.l.b16 %v1227
      %v1255 = vunpack.c.h.b16 %v1227
      %v1256 = vunpack.c.l.b16 %v1228
      %v1257 = vunpack.c.h.b16 %v1228
      %v1258 = vunpack.c.l.b16 %v1229
      %v1259 = vunpack.c.h.b16 %v1229
      %v1260 = vunpack.c.l.b16 %v1230
      %v1261 = vunpack.c.h.b16 %v1230
      %v1262 = vunpack.c.l.b16 %v1231
      %v1263 = vunpack.c.h.b16 %v1231
      %v1264 = vunpack.c.l.b16 %v1232
      %v1265 = vunpack.c.h.b16 %v1232
      %v1266 = vunpack.c.l.b16 %v1233
      %v1267 = vunpack.c.h.b16 %v1233
      %v1268 = vunpack.c.l.b16 %v1234
      %v1269 = vunpack.c.h.b16 %v1234
      %v1270 = vunpack.c.l.b16 %v1235
      %v1271 = vunpack.c.h.b16 %v1235
      %v1272 = vpack.c.b16 %v1254, %v1248
      %v1273 = vpack.c.b16 %v1255, %v1249
      %v1274 = vpack.c.b16 %v1256, %v1250
      %v1275 = vpack.c.b16 %v1257, %v1251
      %v1276 = vpack.c.b16 %v1258, %v1252
      %v1277 = vpack.c.b16 %v1259, %v1253
      %v1278 = vpack.c.b16 %v1266, %v1260
      %v1279 = vpack.c.b16 %v1267, %v1261
      %v1280 = vpack.c.b16 %v1268, %v1262
      %v1281 = vpack.c.b16 %v1269, %v1263
      %v1282 = vpack.c.b16 %v1270, %v1264
      %v1283 = vpack.c.b16 %v1271, %v1265
      %1296 = vmatprep.subr.bf16.mxu0 0
      %1297 = vmatpush1.bf16.msra.mxu0 %v532
      %1298 = vmatprep.subr.bf16.mxu0 0
      %1299 = vmatpush1.bf16.msra.mxu0 %v533
      %1300 = vmatprep.subr.bf16.mxu0 0
      %1301 = vmatpush1.bf16.msra.mxu0 %v534
      %1302 = vmatprep.subr.bf16.mxu0 0
      %1303 = vmatpush1.bf16.msra.mxu0 %v535
      %1304 = vmatprep.subr.bf16.mxu0 0
      %1305 = vmatpush1.bf16.msra.mxu0 %v536
      %1306 = vmatprep.subr.bf16.mxu0 0
      %1307 = vmatpush1.bf16.msra.mxu0 %v537
      %1308 = vmatprep.subr.bf16.mxu0 0
      %1309 = vmatpush1.bf16.msra.mxu0 %v538
      %1310 = vmatprep.subr.bf16.mxu0 0
      %1311 = vmatpush1.bf16.msra.mxu0 %v539
      %1312 = vmatprep.subr.bf16.mxu0 0
      %1313 = vmatpush1.bf16.msra.mxu0 %v540
      %1314 = vmatprep.subr.bf16.mxu0 0
      %1315 = vmatpush1.bf16.msra.mxu0 %v541
      %1316 = vmatprep.subr.bf16.mxu0 0
      %1317 = vmatpush1.bf16.msra.mxu0 %v542
      %1318 = vmatprep.subr.bf16.mxu0 0
      %1319 = vmatpush1.bf16.msra.mxu0 %v543
      %1320 = vmatprep.subr.bf16.mxu0 0
      %1321 = vmatpush1.bf16.msra.mxu0 %v544
      %1322 = vmatprep.subr.bf16.mxu0 0
      %1323 = vmatpush1.bf16.msra.mxu0 %v545
      %1324 = vmatprep.subr.bf16.mxu0 0
      %1325 = vmatpush1.bf16.msra.mxu0 %v546
      %1326 = vmatprep.subr.bf16.mxu0 0
      %1327 = vmatpush1.bf16.msra.mxu0 %v547
      %1328 = vmatprep.mubr.bf16.mxu0 %v1273
      %1329 = vmatmul.mubr.bf16.gmra.mrb[0].mxu0 %v1272
      %v1330 = vpop.f32.mrb[0].mxu0
      %v1331 = vadd.f32 0.0, %v1330
      %v1332 = vpop.f32.mrb[0].mxu0
      %v1333 = vpop.f32.mrb[0].mxu0
      %v1334 = vadd.f32 0.0, %v1333
      %v1335 = vpop.f32.mrb[0].mxu0
      %1336 = vmatprep.mubr.bf16.mxu0 %v1279
      %1337 = vmatmul.mubr.bf16.gmra.mrb[0].mxu0 %v1278
      %v1338 = vpop.f32.mrb[0].mxu0
      %v1339 = vadd.f32 0.0, %v1338
      %v1340 = vpop.f32.mrb[0].mxu0
      %v1341 = vpop.f32.mrb[0].mxu0
      %v1342 = vadd.f32 0.0, %v1341
      %v1343 = vpop.f32.mrb[0].mxu0
      %1344 = vdwg.mxu0
      %1345 = vmatprep.subr.bf16.mxu0 0
      %1346 = vmatpush1.bf16.msra.mxu0 %v548
      %1347 = vmatprep.subr.bf16.mxu0 0
      %1348 = vmatpush1.bf16.msra.mxu0 %v549
      %1349 = vmatprep.subr.bf16.mxu0 0
      %1350 = vmatpush1.bf16.msra.mxu0 %v550
      %1351 = vmatprep.subr.bf16.mxu0 0
      %1352 = vmatpush1.bf16.msra.mxu0 %v551
      %1353 = vmatprep.subr.bf16.mxu0 0
      %1354 = vmatpush1.bf16.msra.mxu0 %v552
      %1355 = vmatprep.subr.bf16.mxu0 0
      %1356 = vmatpush1.bf16.msra.mxu0 %v553
      %1357 = vmatprep.subr.bf16.mxu0 0
      %1358 = vmatpush1.bf16.msra.mxu0 %v554
      %1359 = vmatprep.subr.bf16.mxu0 0
      %1360 = vmatpush1.bf16.msra.mxu0 %v555
      %1361 = vmatprep.subr.bf16.mxu0 0
      %1362 = vmatpush1.bf16.msra.mxu0 %v556
      %1363 = vmatprep.subr.bf16.mxu0 0
      %1364 = vmatpush1.bf16.msra.mxu0 %v557
      %1365 = vmatprep.subr.bf16.mxu0 0
      %1366 = vmatpush1.bf16.msra.mxu0 %v558
      %1367 = vmatprep.subr.bf16.mxu0 0
      %1368 = vmatpush1.bf16.msra.mxu0 %v559
      %1369 = vmatprep.subr.bf16.mxu0 0
      %1370 = vmatpush1.bf16.msra.mxu0 %v560
      %1371 = vmatprep.subr.bf16.mxu0 0
      %1372 = vmatpush1.bf16.msra.mxu0 %v561
      %1373 = vmatprep.subr.bf16.mxu0 0
      %1374 = vmatpush1.bf16.msra.mxu0 %v562
      %1375 = vmatprep.subr.bf16.mxu0 0
      %1376 = vmatpush1.bf16.msra.mxu0 %v563
      %1377 = vmatprep.mubr.bf16.mxu0 %v1275
      %1378 = vmatmul.mubr.bf16.gmra.mrb[0].mxu0 %v1274
      %v1379 = vpop.f32.mrb[0].mxu0
      %v1380 = vadd.f32 %v1331, %v1379
      %v1381 = vpop.f32.mrb[0].mxu0
      %v1382 = vpop.f32.mrb[0].mxu0
      %v1383 = vadd.f32 %v1334, %v1382
      %v1384 = vpop.f32.mrb[0].mxu0
      %1385 = vmatprep.mubr.bf16.mxu0 %v1281
      %1386 = vmatmul.mubr.bf16.gmra.mrb[0].mxu0 %v1280
      %v1387 = vpop.f32.mrb[0].mxu0
      %v1388 = vadd.f32 %v1339, %v1387
      %v1389 = vpop.f32.mrb[0].mxu0
      %v1390 = vpop.f32.mrb[0].mxu0
      %v1391 = vadd.f32 %v1342, %v1390
      %v1392 = vpop.f32.mrb[0].mxu0
      %1393 = vdwg.mxu0
      %1394 = vmatprep.subr.bf16.mxu0 0
      %1395 = vmatpush1.bf16.msra.mxu0 %v564
      %1396 = vmatprep.subr.bf16.mxu0 0
      %1397 = vmatpush1.bf16.msra.mxu0 %v565
      %1398 = vmatprep.subr.bf16.mxu0 0
      %1399 = vmatpush1.bf16.msra.mxu0 %v566
      %1400 = vmatprep.subr.bf16.mxu0 0
      %1401 = vmatpush1.bf16.msra.mxu0 %v567
      %1402 = vmatprep.subr.bf16.mxu0 0
      %1403 = vmatpush1.bf16.msra.mxu0 %v568
      %1404 = vmatprep.subr.bf16.mxu0 0
      %1405 = vmatpush1.bf16.msra.mxu0 %v569
      %1406 = vmatprep.subr.bf16.mxu0 0
      %1407 = vmatpush1.bf16.msra.mxu0 %v570
      %1408 = vmatprep.subr.bf16.mxu0 0
      %1409 = vmatpush1.bf16.msra.mxu0 %v571
      %1410 = vmatprep.subr.bf16.mxu0 0
      %1411 = vmatpush1.bf16.msra.mxu0 %v572
      %1412 = vmatprep.subr.bf16.mxu0 0
      %1413 = vmatpush1.bf16.msra.mxu0 %v573
      %1414 = vmatprep.subr.bf16.mxu0 0
      %1415 = vmatpush1.bf16.msra.mxu0 %v574
      %1416 = vmatprep.subr.bf16.mxu0 0
      %1417 = vmatpush1.bf16.msra.mxu0 %v575
      %1418 = vmatprep.subr.bf16.mxu0 0
      %1419 = vmatpush1.bf16.msra.mxu0 %v576
      %1420 = vmatprep.subr.bf16.mxu0 0
      %1421 = vmatpush1.bf16.msra.mxu0 %v577
      %1422 = vmatprep.subr.bf16.mxu0 0
      %1423 = vmatpush1.bf16.msra.mxu0 %v578
      %1424 = vmatprep.subr.bf16.mxu0 0
      %1425 = vmatpush1.bf16.msra.mxu0 %v579
      %1426 = vmatprep.mubr.bf16.mxu0 %v1277
      %1427 = vmatmul.mubr.bf16.gmra.mrb[0].mxu0 %v1276
      %v1428 = vpop.f32.mrb[0].mxu0
      %v1429 = vadd.f32 %v1380, %v1428
      %v1430 = vpop.f32.mrb[0].mxu0
      %v1431 = vpop.f32.mrb[0].mxu0
      %v1432 = vadd.f32 %v1383, %v1431
      %v1433 = vpop.f32.mrb[0].mxu0
      %1434 = vmatprep.mubr.bf16.mxu0 %v1283
      %1435 = vmatmul.mubr.bf16.gmra.mrb[0].mxu0 %v1282
      %v1436 = vpop.f32.mrb[0].mxu0
      %v1437 = vadd.f32 %v1388, %v1436
      %v1438 = vpop.f32.mrb[0].mxu0
      %v1439 = vpop.f32.mrb[0].mxu0
      %v1440 = vadd.f32 %v1391, %v1439
      %v1441 = vpop.f32.mrb[0].mxu0
      %1442 = vdwg.mxu0
      %v1443 = vmax.f32 %v1219, %v1429
      %v1444 = vmax.f32 %v1220, %v1432
      %v1445 = vmax.f32 %v1221, %v1437
      %v1446 = vmax.f32 %v1222, %v1440
      %v1447 = vld [vmem:[%s2] sm:$0x1]
      %v1449 = vlaneseq
      %v1450 = vshrl.u32 %v1449, 7
      %v1451 = vsub.s32 0, %v1450
      %v1452 = vrot.slane %v1447, %v1451
      %v1454 = vadd.f32 %v1443, %v1452
      %v1455 = vadd.f32 %v1444, %v1452
      %v1456 = vadd.f32 %v1445, %v1452
      %v1457 = vadd.f32 %v1446, %v1452
      %v1458 = vmax.f32 %v1454, 0.0
      %v1459 = vmax.f32 %v1455, 0.0
      %v1460 = vmax.f32 %v1456, 0.0
      %v1461 = vmax.f32 %v1457, 0.0
      %v1462 = vpack.c.bf16 %v1459, %v1458
      %v1463 = vpack.c.bf16 %v1461, %v1460
      %v1466 = vunpack.c.l.b16 %v1462
      %v1467 = vunpack.c.h.b16 %v1462
      %v1468 = vunpack.c.l.b16 %v1463
      %v1469 = vunpack.c.h.b16 %v1463
      %v1470 = vpack.c.b16 %v1466, %v1466
      %v1471 = vpack.c.b16 %v1467, %v1467
      %v1472 = vpack.c.b16 %v1468, %v1468
      %v1473 = vpack.c.b16 %v1469, %v1469
      %vm1478 = vcmask 650240
      %1479 = vst.msk [vmem:[%s170] sm:$0xf] %vm1478, %v1470
      %1480 = vst.msk [vmem:[%s170 + $0x4] sm:$0xf] %vm1478, %v1471
      %1481 = vst.msk [vmem:[%s170 + $0x8] sm:$0xf] %vm1478, %v1472
      %vm1482 = vcmask 647168
      %vm1483 = vsmask.f32 256
      %vm1484 = vmand %vm1482, %vm1483
      %v1485 = vld [vmem:[%s170 + $0xc] sm:$0x1]
      %v1486 = vsel %vm1484, %v1473, %v1485
      %1487 = vst [vmem:[%s170 + $0xc] sm:$0x1] %v1486
      %p1488 = scmp.lt.s32.totalorder %s14, 1
      %s1489 = scalar_select %p1488, %s14, 1
      %s1490 = smul.addr %s1489, 4
      %s1491 = smul.addr %s1490, 4
      %s1492 = scalar_lea.vmem %s3, %s1491
      // Predicated region
      $region33: #{mcdnn_forward.4} parent=31 // pred_check
        %p1493 = pneg %p100
      $region34: #{mcdnn_forward.4} parent=31 // pred_check_branch
        %1495 = sbr.rel (%p1493) target = $region36
      $region35: #{mcdnn_forward.4} parent=31 // pred_region
        _
      $region36: #{mcdnn_forward.4} parent=31 // pred_fallthru
        _
    $region32: #{mcdnn_forward.4} parent=5 // pred_fallthru
      _
    %p1496 = scmp.le.s32.totalorder 2, %s9
    // Predicated region
    $region37: #{mcdnn_forward.4} parent=5 // pred_check
      %p1497 = pneg %p1496
    $region38: #{mcdnn_forward.4} parent=5 // pred_check_branch
      %1499 = sbr.rel (%p1497) target = $region40
    $region39: #{mcdnn_forward.4} parent=5 // pred_region
      %s1500 = ssub.s32 %s9, 2
      // Predicated region
      $region41: #{mcdnn_forward.4} parent=39 // pred_check
        %p1501 = pneg %p106
      $region42: #{mcdnn_forward.4} parent=39 // pred_check_branch
        %1503 = sbr.rel (%p1501) target = $region44
      $region43: #{mcdnn_forward.4} parent=39 // pred_region
        %p1504 = scmp.lt.s32.totalorder %s15, 1
        %s1505 = scalar_select %p1504, %s15, 1
        %s1506 = smul.addr %s1505, 4
        %s1507 = smul.addr %s1506, 4
        %s1508 = scalar_lea.vmem %s3, %s1507
      $region44: #{mcdnn_forward.4} parent=39 // pred_fallthru
        _
    $region40: #{mcdnn_forward.4} parent=5 // pred_fallthru
      _
  $region6: #{mcdnn_forward.4} parent=0 // loop_footer
    %s13 = sadd.s32 1, %s9
  $region7: #{mcdnn_forward.4} parent=0 // loop_footer_branch
    %8 = sbr.rel target = $region3
  $region8: #{mcdnn_forward.4} parent=0 // loop_exit
    _

// kernel: mcdnn_forward.5
$region0: #{mcdnn_forward.5}
  #allocation0 [shape = 'u32[]', space=smem, size = 0x4, offset = 0x4, fixed_abs, tag = 'smem constant byte address 0x4 - core index']
  #allocation1 [shape = 'u32[144,128]{1,0:T(1,128)}', space=vmem, size = 0x12000, scoped, tag = 'internal scratch']
  %s0 = inlined_call_operand.vmem [shape: bf16[5,2,400], index: 0, kind: input, shape index: {}]
  %s1 = inlined_call_operand.vmem [shape: bf16[5,400,120], index: 1, kind: input, shape index: {}]
  %s2 = inlined_call_operand.vmem [shape: f32[5,1,120], index: 2, kind: input, shape index: {}]
  %s3 = inlined_call_operand.vmem [shape: bf16[5,120,84], index: 3, kind: input, shape index: {}]
  %s4 = inlined_call_operand.vmem [shape: f32[5,1,84], index: 4, kind: input, shape index: {}]
  %s5 = inlined_call_operand.vmem [shape: bf16[5,84,19], index: 5, kind: input, shape index: {}]
  %s6 = inlined_call_operand.vmem [shape: f32[1,19], index: 6, kind: input, shape index: {}]
  %s7 = inlined_call_operand.hbm [shape: f32[2,19], index: 7, kind: output, shape index: {}]
  %s8 = sld [smem:[#allocation0]]
  $region38: #{mcdnn_forward.5} parent=0
    _
  %s10 = ssub.s32 1, %s8
  %s11 = scalar_select 0, %s10, %s8
  $region1: #{mcdnn_forward.5} parent=0
    #allocation2 [shape = 'u8[1024]{0}', space=vmem, size = 0x400, scoped, tag = 'output window, operand 0, single buffered']
    #allocation3 [shape = 's32[1]{0}', space=sflag, size = 0x4, scoped, tag = 'scoped memory for mcdnn_forward.5']
    %12 = vsyncpa [#allocation3], 0
    // Predicated region
    $region2: #{mcdnn_forward.5} parent=1 // pred_check
      _
    $region3: #{mcdnn_forward.5} parent=1 // pred_check_branch
      %14 = sbr.rel (0) target = $region5
    $region4: #{mcdnn_forward.5} parent=1 // pred_region
      _
    $region5: #{mcdnn_forward.5} parent=1 // pred_fallthru
      _
    // Predicated region
    $region6: #{mcdnn_forward.5} parent=1 // pred_check
      _
    $region7: #{mcdnn_forward.5} parent=1 // pred_check_branch
      %16 = sbr.rel (0) target = $region9
    $region8: #{mcdnn_forward.5} parent=1 // pred_region
      _
    $region9: #{mcdnn_forward.5} parent=1 // pred_fallthru
      _
    // Predicated region
    $region10: #{mcdnn_forward.5} parent=1 // pred_check
      _
    $region11: #{mcdnn_forward.5} parent=1 // pred_check_branch
      %18 = sbr.rel (0) target = $region13
    $region12: #{mcdnn_forward.5} parent=1 // pred_region
      _
    $region13: #{mcdnn_forward.5} parent=1 // pred_fallthru
      _
    // Predicated region
    $region14: #{mcdnn_forward.5} parent=1 // pred_check
      _
    $region15: #{mcdnn_forward.5} parent=1 // pred_check_branch
      %20 = sbr.rel (0) target = $region17
    $region16: #{mcdnn_forward.5} parent=1 // pred_region
      _
    $region17: #{mcdnn_forward.5} parent=1 // pred_fallthru
      _
    // Predicated region
    $region18: #{mcdnn_forward.5} parent=1 // pred_check
      _
    $region19: #{mcdnn_forward.5} parent=1 // pred_check_branch
      %22 = sbr.rel (0) target = $region21
    $region20: #{mcdnn_forward.5} parent=1 // pred_region
      _
    $region21: #{mcdnn_forward.5} parent=1 // pred_fallthru
      _
    // Predicated region
    $region22: #{mcdnn_forward.5} parent=1 // pred_check
      _
    $region23: #{mcdnn_forward.5} parent=1 // pred_check_branch
      %24 = sbr.rel (0) target = $region25
    $region24: #{mcdnn_forward.5} parent=1 // pred_region
      _
    $region25: #{mcdnn_forward.5} parent=1 // pred_fallthru
      _
    // Predicated region
    $region26: #{mcdnn_forward.5} parent=1 // pred_check
      _
    $region27: #{mcdnn_forward.5} parent=1 // pred_check_branch
      %26 = sbr.rel (0) target = $region29
    $region28: #{mcdnn_forward.5} parent=1 // pred_region
      _
    $region29: #{mcdnn_forward.5} parent=1 // pred_fallthru
      _
    %v28 = vld [vmem:[%s0] sm:$0xf]
    %v29 = vld [vmem:[%s1] sm:$0xf]
    %v30 = vld [vmem:[%s1 + $0x4] sm:$0xf]
    %v31 = vld [vmem:[%s1 + $0x8] sm:$0xf]
    %v32 = vld [vmem:[%s1 + $0xc] sm:$0xf]
    %v33 = vld [vmem:[%s1 + $0x10] sm:$0xf]
    %v34 = vld [vmem:[%s1 + $0x14] sm:$0xf]
    %v35 = vld [vmem:[%s1 + $0x18] sm:$0xf]
    %v36 = vld [vmem:[%s1 + $0x1c] sm:$0xf]
    %v37 = vld [vmem:[%s1 + $0x20] sm:$0xf]
    %v38 = vld [vmem:[%s1 + $0x24] sm:$0xf]
    %v39 = vld [vmem:[%s1 + $0x28] sm:$0xf]
    %v40 = vld [vmem:[%s1 + $0x2c] sm:$0xf]
    %v41 = vld [vmem:[%s1 + $0x30] sm:$0xf]
    %v42 = vld [vmem:[%s1 + $0x34] sm:$0xf]
    %v43 = vld [vmem:[%s1 + $0x38] sm:$0xf]
    %v44 = vld [vmem:[%s1 + $0x3c] sm:$0xf]
    %v45 = vld [vmem:[%s1 + $0x40] sm:$0xf]
    %v46 = vld [vmem:[%s1 + $0x44] sm:$0xf]
    %v47 = vld [vmem:[%s1 + $0x48] sm:$0xf]
    %v48 = vld [vmem:[%s1 + $0x4c] sm:$0xf]
    %v49 = vld [vmem:[%s1 + $0x50] sm:$0xf]
    %v50 = vld [vmem:[%s1 + $0x54] sm:$0xf]
    %v51 = vld [vmem:[%s1 + $0x58] sm:$0xf]
    %v52 = vld [vmem:[%s1 + $0x5c] sm:$0xf]
    %v53 = vld [vmem:[%s1 + $0x60] sm:$0xf]
    %v54 = vld [vmem:[%s1 + $0x64] sm:$0xf]
    %v55 = vld [vmem:[%s1 + $0x68] sm:$0xf]
    %v56 = vld [vmem:[%s1 + $0x6c] sm:$0xf]
    %v57 = vld [vmem:[%s1 + $0x70] sm:$0xf]
    %v58 = vld [vmem:[%s1 + $0x74] sm:$0xf]
    %v59 = vld [vmem:[%s1 + $0x78] sm:$0xf]
    %v60 = vld [vmem:[%s1 + $0x7c] sm:$0xf]
    %v61 = vld [vmem:[%s1 + $0x80] sm:$0xf]
    %v62 = vld [vmem:[%s1 + $0x84] sm:$0xf]
    %v63 = vld [vmem:[%s1 + $0x88] sm:$0xf]
    %v64 = vld [vmem:[%s1 + $0x8c] sm:$0xf]
    %v65 = vld [vmem:[%s1 + $0x90] sm:$0xf]
    %v66 = vld [vmem:[%s1 + $0x94] sm:$0xf]
    %v67 = vld [vmem:[%s1 + $0x98] sm:$0xf]
    %v68 = vld [vmem:[%s1 + $0x9c] sm:$0xf]
    %v69 = vld [vmem:[%s1 + $0xa0] sm:$0xf]
    %v70 = vld [vmem:[%s1 + $0xa4] sm:$0xf]
    %v71 = vld [vmem:[%s1 + $0xa8] sm:$0xf]
    %v72 = vld [vmem:[%s1 + $0xac] sm:$0xf]
    %v73 = vld [vmem:[%s1 + $0xb0] sm:$0xf]
    %v74 = vld [vmem:[%s1 + $0xb4] sm:$0xf]
    %v75 = vld [vmem:[%s1 + $0xb8] sm:$0xf]
    %v76 = vld [vmem:[%s1 + $0xbc] sm:$0xf]
    %v77 = vld [vmem:[%s1 + $0xc0] sm:$0xf]
    %v78 = vld [vmem:[%s1 + $0xc4] sm:$0xf]
    %v79 = vld [vmem:[%s2] sm:$0x1]
    %v81 = vlaneseq
    %v82 = vshrl.u32 %v81, 7
    %v83 = vsub.s32 0, %v82
    %v84 = vrot.slane %v79, %v83
    %v88 = vunpack.c.l.s4 1966171168
    %v89 = vunpack.c.0.s8 %v88
    %v90 = vlaneseq
    %v91 = vshrl.u32 %v90, 7
    %v92 = vsub.s32 %v89, %v91
    %v93 = vrot.slane %v28, %v92
    %v94 = vcombine.high %v93, %v93
    %v96 = vunpack.c.l.s4 1966171168
    %v97 = vunpack.c.0.s8 %v96
    %v98 = vlaneseq
    %v99 = vshrl.u32 %v98, 7
    %v100 = vsub.s32 %v97, %v99
    %v101 = vrot.slane %v93, %v100
    %v103 = vunpack.c.l.s4 1966171168
    %v104 = vunpack.c.0.s8 %v103
    %v105 = vlaneseq
    %v106 = vshrl.u32 %v105, 7
    %v107 = vsub.s32 %v104, %v106
    %v108 = vrot.slane %v94, %v107
    %v109 = vcombine.high %v101, %v101
    %v110 = vcombine.high %v108, %v108
    %v164 = vunpack.c.l.b16 %v29
    %v165 = vunpack.c.l.b16 %v30
    %v166 = vunpack.c.l.b16 %v31
    %v167 = vunpack.c.l.b16 %v32
    %v168 = vunpack.c.l.b16 %v33
    %v169 = vunpack.c.l.b16 %v34
    %v170 = vunpack.c.l.b16 %v35
    %v171 = vunpack.c.l.b16 %v36
    %v172 = vunpack.c.l.b16 %v37
    %v173 = vunpack.c.l.b16 %v38
    %v174 = vunpack.c.l.b16 %v39
    %v175 = vunpack.c.l.b16 %v40
    %v176 = vunpack.c.l.b16 %v41
    %v177 = vunpack.c.l.b16 %v42
    %v178 = vunpack.c.l.b16 %v43
    %v179 = vunpack.c.l.b16 %v44
    %v180 = vunpack.c.l.b16 %v45
    %v181 = vunpack.c.l.b16 %v46
    %v182 = vunpack.c.l.b16 %v47
    %v183 = vunpack.c.l.b16 %v48
    %v184 = vunpack.c.l.b16 %v49
    %v185 = vunpack.c.l.b16 %v50
    %v186 = vunpack.c.l.b16 %v51
    %v187 = vunpack.c.l.b16 %v52
    %v188 = vunpack.c.l.b16 %v53
    %v189 = vunpack.c.l.b16 %v54
    %v190 = vunpack.c.l.b16 %v55
    %v191 = vunpack.c.l.b16 %v56
    %v192 = vunpack.c.l.b16 %v57
    %v193 = vunpack.c.l.b16 %v58
    %v194 = vunpack.c.l.b16 %v59
    %v195 = vunpack.c.l.b16 %v60
    %v196 = vunpack.c.l.b16 %v61
    %v197 = vunpack.c.l.b16 %v62
    %v198 = vunpack.c.l.b16 %v63
    %v199 = vunpack.c.l.b16 %v64
    %v200 = vunpack.c.l.b16 %v65
    %v201 = vunpack.c.l.b16 %v66
    %v202 = vunpack.c.l.b16 %v67
    %v203 = vunpack.c.l.b16 %v68
    %v204 = vunpack.c.l.b16 %v69
    %v205 = vunpack.c.l.b16 %v70
    %v206 = vunpack.c.l.b16 %v71
    %v207 = vunpack.c.l.b16 %v72
    %v208 = vunpack.c.l.b16 %v73
    %v209 = vunpack.c.l.b16 %v74
    %v210 = vunpack.c.l.b16 %v75
    %v211 = vunpack.c.l.b16 %v76
    %v212 = vunpack.c.l.b16 %v77
    %v213 = vunpack.c.l.b16 %v78
    %v214 = vpack.c.b16 %v165, %v164
    %v215 = vpack.c.b16 %v167, %v166
    %v216 = vpack.c.b16 %v169, %v168
    %v217 = vpack.c.b16 %v171, %v170
    %v218 = vpack.c.b16 %v173, %v172
    %v219 = vpack.c.b16 %v175, %v174
    %v220 = vpack.c.b16 %v177, %v176
    %v221 = vpack.c.b16 %v179, %v178
    %v222 = vpack.c.b16 %v181, %v180
    %v223 = vpack.c.b16 %v183, %v182
    %v224 = vpack.c.b16 %v185, %v184
    %v225 = vpack.c.b16 %v187, %v186
    %v226 = vpack.c.b16 %v189, %v188
    %v227 = vpack.c.b16 %v191, %v190
    %v228 = vpack.c.b16 %v193, %v192
    %v229 = vpack.c.b16 %v195, %v194
    %v230 = vpack.c.b16 %v197, %v196
    %v231 = vpack.c.b16 %v199, %v198
    %v232 = vpack.c.b16 %v201, %v200
    %v233 = vpack.c.b16 %v203, %v202
    %v234 = vpack.c.b16 %v205, %v204
    %v235 = vpack.c.b16 %v207, %v206
    %v236 = vpack.c.b16 %v209, %v208
    %v237 = vpack.c.b16 %v211, %v210
    %v238 = vpack.c.b16 %v213, %v212
    %vm264 = vcmask 130048
    %v266 = vsel %vm264, %v110, 0
    %268 = vmatprep.subr.bf16.mxu0 0
    %269 = vmatpush1.bf16.msra.mxu0 %v214
    %270 = vmatprep.subr.bf16.mxu0 0
    %271 = vmatpush1.bf16.msra.mxu0 %v215
    %272 = vmatprep.subr.bf16.mxu0 0
    %273 = vmatpush1.bf16.msra.mxu0 %v216
    %274 = vmatprep.subr.bf16.mxu0 0
    %275 = vmatpush1.bf16.msra.mxu0 %v217
    %276 = vmatprep.subr.bf16.mxu0 0
    %277 = vmatpush1.bf16.msra.mxu0 %v218
    %278 = vmatprep.subr.bf16.mxu0 0
    %279 = vmatpush1.bf16.msra.mxu0 %v219
    %280 = vmatprep.subr.bf16.mxu0 0
    %281 = vmatpush1.bf16.msra.mxu0 %v220
    %282 = vmatprep.subr.bf16.mxu0 0
    %283 = vmatpush1.bf16.msra.mxu0 %v221
    %284 = vmatprep.subr.bf16.mxu0 0
    %285 = vmatpush1.bf16.msra.mxu0 %v222
    %286 = vmatprep.subr.bf16.mxu0 0
    %287 = vmatpush1.bf16.msra.mxu0 %v223
    %288 = vmatprep.subr.bf16.mxu0 0
    %289 = vmatpush1.bf16.msra.mxu0 %v224
    %290 = vmatprep.subr.bf16.mxu0 0
    %291 = vmatpush1.bf16.msra.mxu0 %v225
    %292 = vmatprep.subr.bf16.mxu0 0
    %293 = vmatpush1.bf16.msra.mxu0 %v226
    %294 = vmatprep.subr.bf16.mxu0 0
    %295 = vmatpush1.bf16.msra.mxu0 %v227
    %296 = vmatprep.subr.bf16.mxu0 0
    %297 = vmatpush1.bf16.msra.mxu0 %v228
    %298 = vmatprep.subr.bf16.mxu0 0
    %299 = vmatpush1.bf16.msra.mxu0 %v229
    %300 = vmatprep.mubr.bf16.mxu0 %v108
    %301 = vmatmul.mubr.bf16.gmra.mrb[0].mxu0 %v101
    %v302 = vpop.f32.mrb[0].mxu0
    %v303 = vadd.f32 %v84, %v302
    %v304 = vpop.f32.mrb[0].mxu0
    %v305 = vpop.f32.mrb[0].mxu0
    %v306 = vpop.f32.mrb[0].mxu0
    %307 = vdwg.mxu0
    %308 = vmatprep.subr.bf16.mxu0 0
    %309 = vmatpush1.bf16.msra.mxu0 %v230
    %310 = vmatprep.subr.bf16.mxu0 0
    %311 = vmatpush1.bf16.msra.mxu0 %v231
    %312 = vmatprep.subr.bf16.mxu0 0
    %313 = vmatpush1.bf16.msra.mxu0 %v232
    %314 = vmatprep.subr.bf16.mxu0 0
    %315 = vmatpush1.bf16.msra.mxu0 %v233
    %316 = vmatprep.subr.bf16.mxu0 0
    %317 = vmatpush1.bf16.msra.mxu0 %v234
    %318 = vmatprep.subr.bf16.mxu0 0
    %319 = vmatpush1.bf16.msra.mxu0 %v235
    %320 = vmatprep.subr.bf16.mxu0 0
    %321 = vmatpush1.bf16.msra.mxu0 %v236
    %322 = vmatprep.subr.bf16.mxu0 0
    %323 = vmatpush1.bf16.msra.mxu0 %v237
    %324 = vmatprep.subr.bf16.mxu0 0
    %325 = vmatpush1.bf16.msra.mxu0 %v238
    %326 = vmatprep.subr.bf16.mxu0 0
    %327 = vmatpush1.bf16.msra.mxu0 0
    %328 = vmatprep.subr.bf16.mxu0 0
    %329 = vmatpush1.bf16.msra.mxu0 0
    %330 = vmatprep.subr.bf16.mxu0 0
    %331 = vmatpush1.bf16.msra.mxu0 0
    %332 = vmatprep.subr.bf16.mxu0 0
    %333 = vmatpush1.bf16.msra.mxu0 0
    %334 = vmatprep.subr.bf16.mxu0 0
    %335 = vmatpush1.bf16.msra.mxu0 0
    %336 = vmatprep.subr.bf16.mxu0 0
    %337 = vmatpush1.bf16.msra.mxu0 0
    %338 = vmatprep.subr.bf16.mxu0 0
    %339 = vmatpush1.bf16.msra.mxu0 0
    %340 = vmatprep.mubr.bf16.mxu0 %v266
    %341 = vmatmul.mubr.bf16.gmra.mrb[0].mxu0 %v109
    %v342 = vpop.f32.mrb[0].mxu0
    %v343 = vadd.f32 %v303, %v342
    %v344 = vpop.f32.mrb[0].mxu0
    %v345 = vpop.f32.mrb[0].mxu0
    %v346 = vpop.f32.mrb[0].mxu0
    %347 = vdwg.mxu0
    %v348 = vmax.f32 %v343, 0.0
    %v349 = vpack.c.bf16 %v348, %v348
    %v350 = vld [vmem:[%s3] sm:$0xf]
    %v351 = vld [vmem:[%s3 + $0x4] sm:$0xf]
    %v352 = vld [vmem:[%s3 + $0x8] sm:$0xf]
    %v353 = vld [vmem:[%s3 + $0xc] sm:$0xf]
    %v354 = vld [vmem:[%s3 + $0x10] sm:$0xf]
    %v355 = vld [vmem:[%s3 + $0x14] sm:$0xf]
    %v356 = vld [vmem:[%s3 + $0x18] sm:$0xf]
    %v357 = vld [vmem:[%s3 + $0x1c] sm:$0xf]
    %v358 = vld [vmem:[%s3 + $0x20] sm:$0xf]
    %v359 = vld [vmem:[%s3 + $0x24] sm:$0xf]
    %v360 = vld [vmem:[%s3 + $0x28] sm:$0xf]
    %v361 = vld [vmem:[%s3 + $0x2c] sm:$0xf]
    %v362 = vld [vmem:[%s3 + $0x30] sm:$0xf]
    %v363 = vld [vmem:[%s3 + $0x34] sm:$0xf]
    %v364 = vld [vmem:[%s3 + $0x38] sm:$0xf]
    %v365 = vld [vmem:[%s4] sm:$0x1]
    %v367 = vlaneseq
    %v368 = vshrl.u32 %v367, 7
    %v369 = vsub.s32 0, %v368
    %v370 = vrot.slane %v365, %v369
    %v387 = vunpack.c.l.b16 %v350
    %v388 = vunpack.c.l.b16 %v351
    %v389 = vunpack.c.l.b16 %v352
    %v390 = vunpack.c.l.b16 %v353
    %v391 = vunpack.c.l.b16 %v354
    %v392 = vunpack.c.l.b16 %v355
    %v393 = vunpack.c.l.b16 %v356
    %v394 = vunpack.c.l.b16 %v357
    %v395 = vunpack.c.l.b16 %v358
    %v396 = vunpack.c.l.b16 %v359
    %v397 = vunpack.c.l.b16 %v360
    %v398 = vunpack.c.l.b16 %v361
    %v399 = vunpack.c.l.b16 %v362
    %v400 = vunpack.c.l.b16 %v363
    %v401 = vunpack.c.l.b16 %v364
    %v402 = vpack.c.b16 %v388, %v387
    %v403 = vpack.c.b16 %v390, %v389
    %v404 = vpack.c.b16 %v392, %v391
    %v405 = vpack.c.b16 %v394, %v393
    %v406 = vpack.c.b16 %v396, %v395
    %v407 = vpack.c.b16 %v398, %v397
    %v408 = vpack.c.b16 %v400, %v399
    %v409 = vpack.c.b16 %v401, %v401
    %vm417 = vcmask 982016
    %v419 = vsel %vm417, %v349, 0
    %vm421 = vcmask 1043456
    %v423 = vsel %vm421, %v409, 0
    %425 = vmatprep.subr.bf16.mxu0 0
    %426 = vmatpush1.bf16.msra.mxu0 %v402
    %427 = vmatprep.subr.bf16.mxu0 0
    %428 = vmatpush1.bf16.msra.mxu0 %v403
    %429 = vmatprep.subr.bf16.mxu0 0
    %430 = vmatpush1.bf16.msra.mxu0 %v404
    %431 = vmatprep.subr.bf16.mxu0 0
    %432 = vmatpush1.bf16.msra.mxu0 %v405
    %433 = vmatprep.subr.bf16.mxu0 0
    %434 = vmatpush1.bf16.msra.mxu0 %v406
    %435 = vmatprep.subr.bf16.mxu0 0
    %436 = vmatpush1.bf16.msra.mxu0 %v407
    %437 = vmatprep.subr.bf16.mxu0 0
    %438 = vmatpush1.bf16.msra.mxu0 %v408
    %439 = vmatprep.subr.bf16.mxu0 0
    %440 = vmatpush1.bf16.msra.mxu0 %v423
    %441 = vmatprep.subr.bf16.mxu0 0
    %442 = vmatpush1.bf16.msra.mxu0 0
    %443 = vmatprep.subr.bf16.mxu0 0
    %444 = vmatpush1.bf16.msra.mxu0 0
    %445 = vmatprep.subr.bf16.mxu0 0
    %446 = vmatpush1.bf16.msra.mxu0 0
    %447 = vmatprep.subr.bf16.mxu0 0
    %448 = vmatpush1.bf16.msra.mxu0 0
    %449 = vmatprep.subr.bf16.mxu0 0
    %450 = vmatpush1.bf16.msra.mxu0 0
    %451 = vmatprep.subr.bf16.mxu0 0
    %452 = vmatpush1.bf16.msra.mxu0 0
    %453 = vmatprep.subr.bf16.mxu0 0
    %454 = vmatpush1.bf16.msra.mxu0 0
    %455 = vmatprep.subr.bf16.mxu0 0
    %456 = vmatpush1.bf16.msra.mxu0 0
    %457 = vmatprep.mubr.bf16.mxu0 0
    %458 = vmatmul.mubr.bf16.gmra.mrb[0].mxu0 %v419
    %v459 = vpop.f32.mrb[0].mxu0
    %v460 = vadd.f32 %v370, %v459
    %v461 = vpop.f32.mrb[0].mxu0
    %v462 = vpop.f32.mrb[0].mxu0
    %v463 = vpop.f32.mrb[0].mxu0
    %464 = vdwg.mxu0
    %v465 = vmax.f32 %v460, 0.0
    %v466 = vpack.c.bf16 %v465, %v465
    %v467 = vld [vmem:[%s5] sm:$0xf]
    %v468 = vld [vmem:[%s5 + $0x4] sm:$0xf]
    %v469 = vld [vmem:[%s5 + $0x8] sm:$0xf]
    %v470 = vld [vmem:[%s5 + $0xc] sm:$0xf]
    %v471 = vld [vmem:[%s5 + $0x10] sm:$0xf]
    %v472 = vld [vmem:[%s5 + $0x14] sm:$0xf]
    %v473 = vld [vmem:[%s5 + $0x18] sm:$0xf]
    %v474 = vld [vmem:[%s5 + $0x1c] sm:$0xf]
    %v475 = vld [vmem:[%s5 + $0x20] sm:$0xf]
    %v476 = vld [vmem:[%s5 + $0x24] sm:$0xf]
    %v477 = vld [vmem:[%s5 + $0x28] sm:$0x3]
    %s478 = scalar_lea.vmem %s0, 4
    %v479 = vld [vmem:[%s478] sm:$0xf]
    %s480 = scalar_lea.vmem %s1, 200
    %v481 = vld [vmem:[%s480] sm:$0xf]
    %v482 = vld [vmem:[%s480 + $0x4] sm:$0xf]
    %v483 = vld [vmem:[%s480 + $0x8] sm:$0xf]
    %v484 = vld [vmem:[%s480 + $0xc] sm:$0xf]
    %v485 = vld [vmem:[%s480 + $0x10] sm:$0xf]
    %v486 = vld [vmem:[%s480 + $0x14] sm:$0xf]
    %v487 = vld [vmem:[%s480 + $0x18] sm:$0xf]
    %v488 = vld [vmem:[%s480 + $0x1c] sm:$0xf]
    %v489 = vld [vmem:[%s480 + $0x20] sm:$0xf]
    %v490 = vld [vmem:[%s480 + $0x24] sm:$0xf]
    %v491 = vld [vmem:[%s480 + $0x28] sm:$0xf]
    %v492 = vld [vmem:[%s480 + $0x2c] sm:$0xf]
    %v493 = vld [vmem:[%s480 + $0x30] sm:$0xf]
    %v494 = vld [vmem:[%s480 + $0x34] sm:$0xf]
    %v495 = vld [vmem:[%s480 + $0x38] sm:$0xf]
    %v496 = vld [vmem:[%s480 + $0x3c] sm:$0xf]
    %v497 = vld [vmem:[%s480 + $0x40] sm:$0xf]
    %v498 = vld [vmem:[%s480 + $0x44] sm:$0xf]
    %v499 = vld [vmem:[%s480 + $0x48] sm:$0xf]
    %v500 = vld [vmem:[%s480 + $0x4c] sm:$0xf]
    %v501 = vld [vmem:[%s480 + $0x50] sm:$0xf]
    %v502 = vld [vmem:[%s480 + $0x54] sm:$0xf]
    %v503 = vld [vmem:[%s480 + $0x58] sm:$0xf]
    %v504 = vld [vmem:[%s480 + $0x5c] sm:$0xf]
    %v505 = vld [vmem:[%s480 + $0x60] sm:$0xf]
    %v506 = vld [vmem:[%s480 + $0x64] sm:$0xf]
    %v507 = vld [vmem:[%s480 + $0x68] sm:$0xf]
    %v508 = vld [vmem:[%s480 + $0x6c] sm:$0xf]
    %v509 = vld [vmem:[%s480 + $0x70] sm:$0xf]
    %v510 = vld [vmem:[%s480 + $0x74] sm:$0xf]
    %v511 = vld [vmem:[%s480 + $0x78] sm:$0xf]
    %v512 = vld [vmem:[%s480 + $0x7c] sm:$0xf]
    %v513 = vld [vmem:[%s480 + $0x80] sm:$0xf]
    %v514 = vld [vmem:[%s480 + $0x84] sm:$0xf]
    %v515 = vld [vmem:[%s480 + $0x88] sm:$0xf]
    %v516 = vld [vmem:[%s480 + $0x8c] sm:$0xf]
    %v517 = vld [vmem:[%s480 + $0x90] sm:$0xf]
    %v518 = vld [vmem:[%s480 + $0x94] sm:$0xf]
    %v519 = vld [vmem:[%s480 + $0x98] sm:$0xf]
    %v520 = vld [vmem:[%s480 + $0x9c] sm:$0xf]
    %v521 = vld [vmem:[%s480 + $0xa0] sm:$0xf]
    %v522 = vld [vmem:[%s480 + $0xa4] sm:$0xf]
    %v523 = vld [vmem:[%s480 + $0xa8] sm:$0xf]
    %v524 = vld [vmem:[%s480 + $0xac] sm:$0xf]
    %v525 = vld [vmem:[%s480 + $0xb0] sm:$0xf]
    %v526 = vld [vmem:[%s480 + $0xb4] sm:$0xf]
    %v527 = vld [vmem:[%s480 + $0xb8] sm:$0xf]
    %v528 = vld [vmem:[%s480 + $0xbc] sm:$0xf]
    %v529 = vld [vmem:[%s480 + $0xc0] sm:$0xf]
    %v530 = vld [vmem:[%s480 + $0xc4] sm:$0xf]
    %s531 = scalar_lea.vmem %s2, 1
    %v532 = vld [vmem:[%s531] sm:$0x1]
    %v534 = vlaneseq
    %v535 = vshrl.u32 %v534, 7
    %v536 = vsub.s32 0, %v535
    %v537 = vrot.slane %v532, %v536
    %v541 = vunpack.c.l.s4 1966171168
    %v542 = vunpack.c.0.s8 %v541
    %v543 = vlaneseq
    %v544 = vshrl.u32 %v543, 7
    %v545 = vsub.s32 %v542, %v544
    %v546 = vrot.slane %v479, %v545
    %v547 = vcombine.high %v546, %v546
    %v549 = vunpack.c.l.s4 1966171168
    %v550 = vunpack.c.0.s8 %v549
    %v551 = vlaneseq
    %v552 = vshrl.u32 %v551, 7
    %v553 = vsub.s32 %v550, %v552
    %v554 = vrot.slane %v546, %v553
    %v556 = vunpack.c.l.s4 1966171168
    %v557 = vunpack.c.0.s8 %v556
    %v558 = vlaneseq
    %v559 = vshrl.u32 %v558, 7
    %v560 = vsub.s32 %v557, %v559
    %v561 = vrot.slane %v547, %v560
    %v562 = vcombine.high %v554, %v554
    %v563 = vcombine.high %v561, %v561
    %v617 = vunpack.c.l.b16 %v481
    %v618 = vunpack.c.l.b16 %v482
    %v619 = vunpack.c.l.b16 %v483
    %v620 = vunpack.c.l.b16 %v484
    %v621 = vunpack.c.l.b16 %v485
    %v622 = vunpack.c.l.b16 %v486
    %v623 = vunpack.c.l.b16 %v487
    %v624 = vunpack.c.l.b16 %v488
    %v625 = vunpack.c.l.b16 %v489
    %v626 = vunpack.c.l.b16 %v490
    %v627 = vunpack.c.l.b16 %v491
    %v628 = vunpack.c.l.b16 %v492
    %v629 = vunpack.c.l.b16 %v493
    %v630 = vunpack.c.l.b16 %v494
    %v631 = vunpack.c.l.b16 %v495
    %v632 = vunpack.c.l.b16 %v496
    %v633 = vunpack.c.l.b16 %v497
    %v634 = vunpack.c.l.b16 %v498
    %v635 = vunpack.c.l.b16 %v499
    %v636 = vunpack.c.l.b16 %v500
    %v637 = vunpack.c.l.b16 %v501
    %v638 = vunpack.c.l.b16 %v502
    %v639 = vunpack.c.l.b16 %v503
    %v640 = vunpack.c.l.b16 %v504
    %v641 = vunpack.c.l.b16 %v505
    %v642 = vunpack.c.l.b16 %v506
    %v643 = vunpack.c.l.b16 %v507
    %v644 = vunpack.c.l.b16 %v508
    %v645 = vunpack.c.l.b16 %v509
    %v646 = vunpack.c.l.b16 %v510
    %v647 = vunpack.c.l.b16 %v511
    %v648 = vunpack.c.l.b16 %v512
    %v649 = vunpack.c.l.b16 %v513
    %v650 = vunpack.c.l.b16 %v514
    %v651 = vunpack.c.l.b16 %v515
    %v652 = vunpack.c.l.b16 %v516
    %v653 = vunpack.c.l.b16 %v517
    %v654 = vunpack.c.l.b16 %v518
    %v655 = vunpack.c.l.b16 %v519
    %v656 = vunpack.c.l.b16 %v520
    %v657 = vunpack.c.l.b16 %v521
    %v658 = vunpack.c.l.b16 %v522
    %v659 = vunpack.c.l.b16 %v523
    %v660 = vunpack.c.l.b16 %v524
    %v661 = vunpack.c.l.b16 %v525
    %v662 = vunpack.c.l.b16 %v526
    %v663 = vunpack.c.l.b16 %v527
    %v664 = vunpack.c.l.b16 %v528
    %v665 = vunpack.c.l.b16 %v529
    %v666 = vunpack.c.l.b16 %v530
    %v667 = vpack.c.b16 %v618, %v617
    %v668 = vpack.c.b16 %v620, %v619
    %v669 = vpack.c.b16 %v622, %v621
    %v670 = vpack.c.b16 %v624, %v623
    %v671 = vpack.c.b16 %v626, %v625
    %v672 = vpack.c.b16 %v628, %v627
    %v673 = vpack.c.b16 %v630, %v629
    %v674 = vpack.c.b16 %v632, %v631
    %v675 = vpack.c.b16 %v634, %v633
    %v676 = vpack.c.b16 %v636, %v635
    %v677 = vpack.c.b16 %v638, %v637
    %v678 = vpack.c.b16 %v640, %v639
    %v679 = vpack.c.b16 %v642, %v641
    %v680 = vpack.c.b16 %v644, %v643
    %v681 = vpack.c.b16 %v646, %v645
    %v682 = vpack.c.b16 %v648, %v647
    %v683 = vpack.c.b16 %v650, %v649
    %v684 = vpack.c.b16 %v652, %v651
    %v685 = vpack.c.b16 %v654, %v653
    %v686 = vpack.c.b16 %v656, %v655
    %v687 = vpack.c.b16 %v658, %v657
    %v688 = vpack.c.b16 %v660, %v659
    %v689 = vpack.c.b16 %v662, %v661
    %v690 = vpack.c.b16 %v664, %v663
    %v691 = vpack.c.b16 %v666, %v665
    %v718 = vsel %vm264, %v563, 0
    %720 = vmatprep.subr.bf16.mxu0 0
    %721 = vmatpush1.bf16.msra.mxu0 %v667
    %722 = vmatprep.subr.bf16.mxu0 0
    %723 = vmatpush1.bf16.msra.mxu0 %v668
    %724 = vmatprep.subr.bf16.mxu0 0
    %725 = vmatpush1.bf16.msra.mxu0 %v669
    %726 = vmatprep.subr.bf16.mxu0 0
    %727 = vmatpush1.bf16.msra.mxu0 %v670
    %728 = vmatprep.subr.bf16.mxu0 0
    %729 = vmatpush1.bf16.msra.mxu0 %v671
    %730 = vmatprep.subr.bf16.mxu0 0
    %731 = vmatpush1.bf16.msra.mxu0 %v672
    %732 = vmatprep.subr.bf16.mxu0 0
    %733 = vmatpush1.bf16.msra.mxu0 %v673
    %734 = vmatprep.subr.bf16.mxu0 0
    %735 = vmatpush1.bf16.msra.mxu0 %v674
    %736 = vmatprep.subr.bf16.mxu0 0
    %737 = vmatpush1.bf16.msra.mxu0 %v675
    %738 = vmatprep.subr.bf16.mxu0 0
    %739 = vmatpush1.bf16.msra.mxu0 %v676
    %740 = vmatprep.subr.bf16.mxu0 0
    %741 = vmatpush1.bf16.msra.mxu0 %v677
    %742 = vmatprep.subr.bf16.mxu0 0
    %743 = vmatpush1.bf16.msra.mxu0 %v678
    %744 = vmatprep.subr.bf16.mxu0 0
    %745 = vmatpush1.bf16.msra.mxu0 %v679
    %746 = vmatprep.subr.bf16.mxu0 0
    %747 = vmatpush1.bf16.msra.mxu0 %v680
    %748 = vmatprep.subr.bf16.mxu0 0
    %749 = vmatpush1.bf16.msra.mxu0 %v681
    %750 = vmatprep.subr.bf16.mxu0 0
    %751 = vmatpush1.bf16.msra.mxu0 %v682
    %752 = vmatprep.mubr.bf16.mxu0 %v561
    %753 = vmatmul.mubr.bf16.gmra.mrb[0].mxu0 %v554
    %v754 = vpop.f32.mrb[0].mxu0
    %v755 = vadd.f32 %v537, %v754
    %v756 = vpop.f32.mrb[0].mxu0
    %v757 = vpop.f32.mrb[0].mxu0
    %v758 = vpop.f32.mrb[0].mxu0
    %759 = vdwg.mxu0
    %760 = vmatprep.subr.bf16.mxu0 0
    %761 = vmatpush1.bf16.msra.mxu0 %v683
    %762 = vmatprep.subr.bf16.mxu0 0
    %763 = vmatpush1.bf16.msra.mxu0 %v684
    %764 = vmatprep.subr.bf16.mxu0 0
    %765 = vmatpush1.bf16.msra.mxu0 %v685
    %766 = vmatprep.subr.bf16.mxu0 0
    %767 = vmatpush1.bf16.msra.mxu0 %v686
    %768 = vmatprep.subr.bf16.mxu0 0
    %769 = vmatpush1.bf16.msra.mxu0 %v687
    %770 = vmatprep.subr.bf16.mxu0 0
    %771 = vmatpush1.bf16.msra.mxu0 %v688
    %772 = vmatprep.subr.bf16.mxu0 0
    %773 = vmatpush1.bf16.msra.mxu0 %v689
    %774 = vmatprep.subr.bf16.mxu0 0
    %775 = vmatpush1.bf16.msra.mxu0 %v690
    %776 = vmatprep.subr.bf16.mxu0 0
    %777 = vmatpush1.bf16.msra.mxu0 %v691
    %778 = vmatprep.subr.bf16.mxu0 0
    %779 = vmatpush1.bf16.msra.mxu0 0
    %780 = vmatprep.subr.bf16.mxu0 0
    %781 = vmatpush1.bf16.msra.mxu0 0
    %782 = vmatprep.subr.bf16.mxu0 0
    %783 = vmatpush1.bf16.msra.mxu0 0
    %784 = vmatprep.subr.bf16.mxu0 0
    %785 = vmatpush1.bf16.msra.mxu0 0
    %786 = vmatprep.subr.bf16.mxu0 0
    %787 = vmatpush1.bf16.msra.mxu0 0
    %788 = vmatprep.subr.bf16.mxu0 0
    %789 = vmatpush1.bf16.msra.mxu0 0
    %790 = vmatprep.subr.bf16.mxu0 0
    %791 = vmatpush1.bf16.msra.mxu0 0
    %792 = vmatprep.mubr.bf16.mxu0 %v718
    %793 = vmatmul.mubr.bf16.gmra.mrb[0].mxu0 %v562
    %v794 = vpop.f32.mrb[0].mxu0
    %v795 = vadd.f32 %v755, %v794
    %v796 = vpop.f32.mrb[0].mxu0
    %v797 = vpop.f32.mrb[0].mxu0
    %v798 = vpop.f32.mrb[0].mxu0
    %799 = vdwg.mxu0
    %v800 = vmax.f32 %v795, 0.0
    %v801 = vpack.c.bf16 %v800, %v800
    %s802 = scalar_lea.vmem %s3, 60
    %v803 = vld [vmem:[%s802] sm:$0xf]
    %v804 = vld [vmem:[%s802 + $0x4] sm:$0xf]
    %v805 = vld [vmem:[%s802 + $0x8] sm:$0xf]
    %v806 = vld [vmem:[%s802 + $0xc] sm:$0xf]
    %v807 = vld [vmem:[%s802 + $0x10] sm:$0xf]
    %v808 = vld [vmem:[%s802 + $0x14] sm:$0xf]
    %v809 = vld [vmem:[%s802 + $0x18] sm:$0xf]
    %v810 = vld [vmem:[%s802 + $0x1c] sm:$0xf]
    %v811 = vld [vmem:[%s802 + $0x20] sm:$0xf]
    %v812 = vld [vmem:[%s802 + $0x24] sm:$0xf]
    %v813 = vld [vmem:[%s802 + $0x28] sm:$0xf]
    %v814 = vld [vmem:[%s802 + $0x2c] sm:$0xf]
    %v815 = vld [vmem:[%s802 + $0x30] sm:$0xf]
    %v816 = vld [vmem:[%s802 + $0x34] sm:$0xf]
    %v817 = vld [vmem:[%s802 + $0x38] sm:$0xf]
    %s818 = scalar_lea.vmem %s4, 1
    %v819 = vld [vmem:[%s818] sm:$0x1]
    %v821 = vlaneseq
    %v822 = vshrl.u32 %v821, 7
    %v823 = vsub.s32 0, %v822
    %v824 = vrot.slane %v819, %v823
    %v841 = vunpack.c.l.b16 %v803
    %v842 = vunpack.c.l.b16 %v804
    %v843 = vunpack.c.l.b16 %v805
    %v844 = vunpack.c.l.b16 %v806
    %v845 = vunpack.c.l.b16 %v807
    %v846 = vunpack.c.l.b16 %v808
    %v847 = vunpack.c.l.b16 %v809
    %v848 = vunpack.c.l.b16 %v810
    %v849 = vunpack.c.l.b16 %v811
    %v850 = vunpack.c.l.b16 %v812
    %v851 = vunpack.c.l.b16 %v813
    %v852 = vunpack.c.l.b16 %v814
    %v853 = vunpack.c.l.b16 %v815
    %v854 = vunpack.c.l.b16 %v816
    %v855 = vunpack.c.l.b16 %v817
    %v856 = vpack.c.b16 %v842, %v841
    %v857 = vpack.c.b16 %v844, %v843
    %v858 = vpack.c.b16 %v846, %v845
    %v859 = vpack.c.b16 %v848, %v847
    %v860 = vpack.c.b16 %v850, %v849
    %v861 = vpack.c.b16 %v852, %v851
    %v862 = vpack.c.b16 %v854, %v853
    %v863 = vpack.c.b16 %v855, %v855
    %v872 = vsel %vm417, %v801, 0
    %v875 = vsel %vm421, %v863, 0
    %877 = vmatprep.subr.bf16.mxu0 0
    %878 = vmatpush1.bf16.msra.mxu0 %v856
    %879 = vmatprep.subr.bf16.mxu0 0
    %880 = vmatpush1.bf16.msra.mxu0 %v857
    %881 = vmatprep.subr.bf16.mxu0 0
    %882 = vmatpush1.bf16.msra.mxu0 %v858
    %883 = vmatprep.subr.bf16.mxu0 0
    %884 = vmatpush1.bf16.msra.mxu0 %v859
    %885 = vmatprep.subr.bf16.mxu0 0
    %886 = vmatpush1.bf16.msra.mxu0 %v860
    %887 = vmatprep.subr.bf16.mxu0 0
    %888 = vmatpush1.bf16.msra.mxu0 %v861
    %889 = vmatprep.subr.bf16.mxu0 0
    %890 = vmatpush1.bf16.msra.mxu0 %v862
    %891 = vmatprep.subr.bf16.mxu0 0
    %892 = vmatpush1.bf16.msra.mxu0 %v875
    %893 = vmatprep.subr.bf16.mxu0 0
    %894 = vmatpush1.bf16.msra.mxu0 0
    %895 = vmatprep.subr.bf16.mxu0 0
    %896 = vmatpush1.bf16.msra.mxu0 0
    %897 = vmatprep.subr.bf16.mxu0 0
    %898 = vmatpush1.bf16.msra.mxu0 0
    %899 = vmatprep.subr.bf16.mxu0 0
    %900 = vmatpush1.bf16.msra.mxu0 0
    %901 = vmatprep.subr.bf16.mxu0 0
    %902 = vmatpush1.bf16.msra.mxu0 0
    %903 = vmatprep.subr.bf16.mxu0 0
    %904 = vmatpush1.bf16.msra.mxu0 0
    %905 = vmatprep.subr.bf16.mxu0 0
    %906 = vmatpush1.bf16.msra.mxu0 0
    %907 = vmatprep.subr.bf16.mxu0 0
    %908 = vmatpush1.bf16.msra.mxu0 0
    %909 = vmatprep.mubr.bf16.mxu0 0
    %910 = vmatmul.mubr.bf16.gmra.mrb[0].mxu0 %v872
    %v911 = vpop.f32.mrb[0].mxu0
    %v912 = vadd.f32 %v824, %v911
    %v913 = vpop.f32.mrb[0].mxu0
    %v914 = vpop.f32.mrb[0].mxu0
    %v915 = vpop.f32.mrb[0].mxu0
    %916 = vdwg.mxu0
    %v917 = vmax.f32 %v912, 0.0
    %v918 = vpack.c.bf16 %v917, %v917
    %s919 = scalar_lea.vmem %s5, 44
    %v920 = vld [vmem:[%s919] sm:$0xf]
    %v921 = vld [vmem:[%s919 + $0x4] sm:$0xf]
    %v922 = vld [vmem:[%s919 + $0x8] sm:$0xf]
    %v923 = vld [vmem:[%s919 + $0xc] sm:$0xf]
    %v924 = vld [vmem:[%s919 + $0x10] sm:$0xf]
    %v925 = vld [vmem:[%s919 + $0x14] sm:$0xf]
    %v926 = vld [vmem:[%s919 + $0x18] sm:$0xf]
    %v927 = vld [vmem:[%s919 + $0x1c] sm:$0xf]
    %v928 = vld [vmem:[%s919 + $0x20] sm:$0xf]
    %v929 = vld [vmem:[%s919 + $0x24] sm:$0xf]
    %v930 = vld [vmem:[%s919 + $0x28] sm:$0x3]
    %v942 = vunpack.c.l.b16 %v920
    %v943 = vunpack.c.l.b16 %v921
    %v944 = vunpack.c.l.b16 %v922
    %v945 = vunpack.c.l.b16 %v923
    %v946 = vunpack.c.l.b16 %v924
    %v947 = vunpack.c.l.b16 %v925
    %v948 = vunpack.c.l.b16 %v926
    %v949 = vunpack.c.l.b16 %v927
    %v950 = vunpack.c.l.b16 %v928
    %v951 = vunpack.c.l.b16 %v929
    %v952 = vunpack.c.l.b16 %v930
    %v953 = vpack.c.b16 %v943, %v942
    %v954 = vpack.c.b16 %v945, %v944
    %v955 = vpack.c.b16 %v947, %v946
    %v956 = vpack.c.b16 %v949, %v948
    %v957 = vpack.c.b16 %v951, %v950
    %v958 = vpack.c.b16 %v952, %v952
    %vm964 = vcmask 687104
    %v966 = vsel %vm964, %v918, 0
    %vm968 = vcmask 1041408
    %v970 = vsel %vm968, %v958, 0
    %972 = vmatprep.subr.bf16.mxu0 0
    %973 = vmatpush1.bf16.msra.mxu0 %v953
    %974 = vmatprep.subr.bf16.mxu0 0
    %975 = vmatpush1.bf16.msra.mxu0 %v954
    %976 = vmatprep.subr.bf16.mxu0 0
    %977 = vmatpush1.bf16.msra.mxu0 %v955
    %978 = vmatprep.subr.bf16.mxu0 0
    %979 = vmatpush1.bf16.msra.mxu0 %v956
    %980 = vmatprep.subr.bf16.mxu0 0
    %981 = vmatpush1.bf16.msra.mxu0 %v957
    %982 = vmatprep.subr.bf16.mxu0 0
    %983 = vmatpush1.bf16.msra.mxu0 %v970
    %984 = vmatprep.subr.bf16.mxu0 0
    %985 = vmatpush1.bf16.msra.mxu0 0
    %986 = vmatprep.subr.bf16.mxu0 0
    %987 = vmatpush1.bf16.msra.mxu0 0
    %988 = vmatprep.subr.bf16.mxu0 0
    %989 = vmatpush1.bf16.msra.mxu0 0
    %990 = vmatprep.subr.bf16.mxu0 0
    %991 = vmatpush1.bf16.msra.mxu0 0
    %992 = vmatprep.subr.bf16.mxu0 0
    %993 = vmatpush1.bf16.msra.mxu0 0
    %994 = vmatprep.subr.bf16.mxu0 0
    %995 = vmatpush1.bf16.msra.mxu0 0
    %996 = vmatprep.subr.bf16.mxu0 0
    %997 = vmatpush1.bf16.msra.mxu0 0
    %998 = vmatprep.subr.bf16.mxu0 0
    %999 = vmatpush1.bf16.msra.mxu0 0
    %1000 = vmatprep.subr.bf16.mxu0 0
    %1001 = vmatpush1.bf16.msra.mxu0 0
    %1002 = vmatprep.subr.bf16.mxu0 0
    %1003 = vmatpush1.bf16.msra.mxu0 0
    %1004 = vmatprep.mubr.bf16.mxu0 0
    %1005 = vmatmul.mubr.bf16.gmra.mrb[0].mxu0 %v966
    %v1006 = vpop.f32.mrb[0].mxu0
    %v1007 = vadd.f32 0.0, %v1006
    %v1008 = vpop.f32.mrb[0].mxu0
    %v1009 = vpop.f32.mrb[0].mxu0
    %v1010 = vpop.f32.mrb[0].mxu0
    %1011 = vdwg.mxu0
    %v1023 = vunpack.c.l.b16 %v467
    %v1024 = vunpack.c.l.b16 %v468
    %v1025 = vunpack.c.l.b16 %v469
    %v1026 = vunpack.c.l.b16 %v470
    %v1027 = vunpack.c.l.b16 %v471
    %v1028 = vunpack.c.l.b16 %v472
    %v1029 = vunpack.c.l.b16 %v473
    %v1030 = vunpack.c.l.b16 %v474
    %v1031 = vunpack.c.l.b16 %v475
    %v1032 = vunpack.c.l.b16 %v476
    %v1033 = vunpack.c.l.b16 %v477
    %v1034 = vpack.c.b16 %v1024, %v1023
    %v1035 = vpack.c.b16 %v1026, %v1025
    %v1036 = vpack.c.b16 %v1028, %v1027
    %v1037 = vpack.c.b16 %v1030, %v1029
    %v1038 = vpack.c.b16 %v1032, %v1031
    %v1039 = vpack.c.b16 %v1033, %v1033
    %v1046 = vsel %vm964, %v466, 0
    %v1049 = vsel %vm968, %v1039, 0
    %1051 = vmatprep.subr.bf16.mxu0 0
    %1052 = vmatpush1.bf16.msra.mxu0 %v1034
    %1053 = vmatprep.subr.bf16.mxu0 0
    %1054 = vmatpush1.bf16.msra.mxu0 %v1035
    %1055 = vmatprep.subr.bf16.mxu0 0
    %1056 = vmatpush1.bf16.msra.mxu0 %v1036
    %1057 = vmatprep.subr.bf16.mxu0 0
    %1058 = vmatpush1.bf16.msra.mxu0 %v1037
    %1059 = vmatprep.subr.bf16.mxu0 0
    %1060 = vmatpush1.bf16.msra.mxu0 %v1038
    %1061 = vmatprep.subr.bf16.mxu0 0
    %1062 = vmatpush1.bf16.msra.mxu0 %v1049
    %1063 = vmatprep.subr.bf16.mxu0 0
    %1064 = vmatpush1.bf16.msra.mxu0 0
    %1065 = vmatprep.subr.bf16.mxu0 0
    %1066 = vmatpush1.bf16.msra.mxu0 0
    %1067 = vmatprep.subr.bf16.mxu0 0
    %1068 = vmatpush1.bf16.msra.mxu0 0
    %1069 = vmatprep.subr.bf16.mxu0 0
    %1070 = vmatpush1.bf16.msra.mxu0 0
    %1071 = vmatprep.subr.bf16.mxu0 0
    %1072 = vmatpush1.bf16.msra.mxu0 0
    %1073 = vmatprep.subr.bf16.mxu0 0
    %1074 = vmatpush1.bf16.msra.mxu0 0
    %1075 = vmatprep.subr.bf16.mxu0 0
    %1076 = vmatpush1.bf16.msra.mxu0 0
    %1077 = vmatprep.subr.bf16.mxu0 0
    %1078 = vmatpush1.bf16.msra.mxu0 0
    %1079 = vmatprep.subr.bf16.mxu0 0
    %1080 = vmatpush1.bf16.msra.mxu0 0
    %1081 = vmatprep.subr.bf16.mxu0 0
    %1082 = vmatpush1.bf16.msra.mxu0 0
    %1083 = vmatprep.mubr.bf16.mxu0 0
    %1084 = vmatmul.mubr.bf16.gmra.mrb[0].mxu0 %v1046
    %v1085 = vpop.f32.mrb[0].mxu0
    %v1086 = vadd.f32 %v1007, %v1085
    %v1087 = vpop.f32.mrb[0].mxu0
    %v1088 = vpop.f32.mrb[0].mxu0
    %v1089 = vpop.f32.mrb[0].mxu0
    %1090 = vdwg.mxu0
    %s1091 = scalar_lea.vmem %s0, 8
    %v1092 = vld [vmem:[%s1091] sm:$0xf]
    %s1093 = scalar_lea.vmem %s1, 400
    %v1094 = vld [vmem:[%s1093] sm:$0xf]
    %v1095 = vld [vmem:[%s1093 + $0x4] sm:$0xf]
    %v1096 = vld [vmem:[%s1093 + $0x8] sm:$0xf]
    %v1097 = vld [vmem:[%s1093 + $0xc] sm:$0xf]
    %v1098 = vld [vmem:[%s1093 + $0x10] sm:$0xf]
    %v1099 = vld [vmem:[%s1093 + $0x14] sm:$0xf]
    %v1100 = vld [vmem:[%s1093 + $0x18] sm:$0xf]
    %v1101 = vld [vmem:[%s1093 + $0x1c] sm:$0xf]
    %v1102 = vld [vmem:[%s1093 + $0x20] sm:$0xf]
    %v1103 = vld [vmem:[%s1093 + $0x24] sm:$0xf]
    %v1104 = vld [vmem:[%s1093 + $0x28] sm:$0xf]
    %v1105 = vld [vmem:[%s1093 + $0x2c] sm:$0xf]
    %v1106 = vld [vmem:[%s1093 + $0x30] sm:$0xf]
    %v1107 = vld [vmem:[%s1093 + $0x34] sm:$0xf]
    %v1108 = vld [vmem:[%s1093 + $0x38] sm:$0xf]
    %v1109 = vld [vmem:[%s1093 + $0x3c] sm:$0xf]
    %v1110 = vld [vmem:[%s1093 + $0x40] sm:$0xf]
    %v1111 = vld [vmem:[%s1093 + $0x44] sm:$0xf]
    %v1112 = vld [vmem:[%s1093 + $0x48] sm:$0xf]
    %v1113 = vld [vmem:[%s1093 + $0x4c] sm:$0xf]
    %v1114 = vld [vmem:[%s1093 + $0x50] sm:$0xf]
    %v1115 = vld [vmem:[%s1093 + $0x54] sm:$0xf]
    %v1116 = vld [vmem:[%s1093 + $0x58] sm:$0xf]
    %v1117 = vld [vmem:[%s1093 + $0x5c] sm:$0xf]
    %v1118 = vld [vmem:[%s1093 + $0x60] sm:$0xf]
    %v1119 = vld [vmem:[%s1093 + $0x64] sm:$0xf]
    %v1120 = vld [vmem:[%s1093 + $0x68] sm:$0xf]
    %v1121 = vld [vmem:[%s1093 + $0x6c] sm:$0xf]
    %v1122 = vld [vmem:[%s1093 + $0x70] sm:$0xf]
    %v1123 = vld [vmem:[%s1093 + $0x74] sm:$0xf]
    %v1124 = vld [vmem:[%s1093 + $0x78] sm:$0xf]
    %v1125 = vld [vmem:[%s1093 + $0x7c] sm:$0xf]
    %v1126 = vld [vmem:[%s1093 + $0x80] sm:$0xf]
    %v1127 = vld [vmem:[%s1093 + $0x84] sm:$0xf]
    %v1128 = vld [vmem:[%s1093 + $0x88] sm:$0xf]
    %v1129 = vld [vmem:[%s1093 + $0x8c] sm:$0xf]
    %v1130 = vld [vmem:[%s1093 + $0x90] sm:$0xf]
    %v1131 = vld [vmem:[%s1093 + $0x94] sm:$0xf]
    %v1132 = vld [vmem:[%s1093 + $0x98] sm:$0xf]
    %v1133 = vld [vmem:[%s1093 + $0x9c] sm:$0xf]
    %v1134 = vld [vmem:[%s1093 + $0xa0] sm:$0xf]
    %v1135 = vld [vmem:[%s1093 + $0xa4] sm:$0xf]
    %v1136 = vld [vmem:[%s1093 + $0xa8] sm:$0xf]
    %v1137 = vld [vmem:[%s1093 + $0xac] sm:$0xf]
    %v1138 = vld [vmem:[%s1093 + $0xb0] sm:$0xf]
    %v1139 = vld [vmem:[%s1093 + $0xb4] sm:$0xf]
    %v1140 = vld [vmem:[%s1093 + $0xb8] sm:$0xf]
    %v1141 = vld [vmem:[%s1093 + $0xbc] sm:$0xf]
    %v1142 = vld [vmem:[%s1093 + $0xc0] sm:$0xf]
    %v1143 = vld [vmem:[%s1093 + $0xc4] sm:$0xf]
    %s1144 = scalar_lea.vmem %s2, 2
    %v1145 = vld [vmem:[%s1144] sm:$0x1]
    %v1147 = vlaneseq
    %v1148 = vshrl.u32 %v1147, 7
    %v1149 = vsub.s32 0, %v1148
    %v1150 = vrot.slane %v1145, %v1149
    %v1154 = vunpack.c.l.s4 1966171168
    %v1155 = vunpack.c.0.s8 %v1154
    %v1156 = vlaneseq
    %v1157 = vshrl.u32 %v1156, 7
    %v1158 = vsub.s32 %v1155, %v1157
    %v1159 = vrot.slane %v1092, %v1158
    %v1160 = vcombine.high %v1159, %v1159
    %v1162 = vunpack.c.l.s4 1966171168
    %v1163 = vunpack.c.0.s8 %v1162
    %v1164 = vlaneseq
    %v1165 = vshrl.u32 %v1164, 7
    %v1166 = vsub.s32 %v1163, %v1165
    %v1167 = vrot.slane %v1159, %v1166
    %v1169 = vunpack.c.l.s4 1966171168
    %v1170 = vunpack.c.0.s8 %v1169
    %v1171 = vlaneseq
    %v1172 = vshrl.u32 %v1171, 7
    %v1173 = vsub.s32 %v1170, %v1172
    %v1174 = vrot.slane %v1160, %v1173
    %v1175 = vcombine.high %v1167, %v1167
    %v1176 = vcombine.high %v1174, %v1174
    %v1230 = vunpack.c.l.b16 %v1094
    %v1231 = vunpack.c.l.b16 %v1095
    %v1232 = vunpack.c.l.b16 %v1096
    %v1233 = vunpack.c.l.b16 %v1097
    %v1234 = vunpack.c.l.b16 %v1098
    %v1235 = vunpack.c.l.b16 %v1099
    %v1236 = vunpack.c.l.b16 %v1100
    %v1237 = vunpack.c.l.b16 %v1101
    %v1238 = vunpack.c.l.b16 %v1102
    %v1239 = vunpack.c.l.b16 %v1103
    %v1240 = vunpack.c.l.b16 %v1104
    %v1241 = vunpack.c.l.b16 %v1105
    %v1242 = vunpack.c.l.b16 %v1106
    %v1243 = vunpack.c.l.b16 %v1107
    %v1244 = vunpack.c.l.b16 %v1108
    %v1245 = vunpack.c.l.b16 %v1109
    %v1246 = vunpack.c.l.b16 %v1110
    %v1247 = vunpack.c.l.b16 %v1111
    %v1248 = vunpack.c.l.b16 %v1112
    %v1249 = vunpack.c.l.b16 %v1113
    %v1250 = vunpack.c.l.b16 %v1114
    %v1251 = vunpack.c.l.b16 %v1115
    %v1252 = vunpack.c.l.b16 %v1116
    %v1253 = vunpack.c.l.b16 %v1117
    %v1254 = vunpack.c.l.b16 %v1118
    %v1255 = vunpack.c.l.b16 %v1119
    %v1256 = vunpack.c.l.b16 %v1120
    %v1257 = vunpack.c.l.b16 %v1121
    %v1258 = vunpack.c.l.b16 %v1122
    %v1259 = vunpack.c.l.b16 %v1123
    %v1260 = vunpack.c.l.b16 %v1124
    %v1261 = vunpack.c.l.b16 %v1125
    %v1262 = vunpack.c.l.b16 %v1126
    %v1263 = vunpack.c.l.b16 %v1127
    %v1264 = vunpack.c.l.b16 %v1128
    %v1265 = vunpack.c.l.b16 %v1129
    %v1266 = vunpack.c.l.b16 %v1130
    %v1267 = vunpack.c.l.b16 %v1131
    %v1268 = vunpack.c.l.b16 %v1132
    %v1269 = vunpack.c.l.b16 %v1133
    %v1270 = vunpack.c.l.b16 %v1134
    %v1271 = vunpack.c.l.b16 %v1135
    %v1272 = vunpack.c.l.b16 %v1136
    %v1273 = vunpack.c.l.b16 %v1137
    %v1274 = vunpack.c.l.b16 %v1138
    %v1275 = vunpack.c.l.b16 %v1139
    %v1276 = vunpack.c.l.b16 %v1140
    %v1277 = vunpack.c.l.b16 %v1141
    %v1278 = vunpack.c.l.b16 %v1142
    %v1279 = vunpack.c.l.b16 %v1143
    %v1280 = vpack.c.b16 %v1231, %v1230
    %v1281 = vpack.c.b16 %v1233, %v1232
    %v1282 = vpack.c.b16 %v1235, %v1234
    %v1283 = vpack.c.b16 %v1237, %v1236
    %v1284 = vpack.c.b16 %v1239, %v1238
    %v1285 = vpack.c.b16 %v1241, %v1240
    %v1286 = vpack.c.b16 %v1243, %v1242
    %v1287 = vpack.c.b16 %v1245, %v1244
    %v1288 = vpack.c.b16 %v1247, %v1246
    %v1289 = vpack.c.b16 %v1249, %v1248
    %v1290 = vpack.c.b16 %v1251, %v1250
    %v1291 = vpack.c.b16 %v1253, %v1252
    %v1292 = vpack.c.b16 %v1255, %v1254
    %v1293 = vpack.c.b16 %v1257, %v1256
    %v1294 = vpack.c.b16 %v1259, %v1258
    %v1295 = vpack.c.b16 %v1261, %v1260
    %v1296 = vpack.c.b16 %v1263, %v1262
    %v1297 = vpack.c.b16 %v1265, %v1264
    %v1298 = vpack.c.b16 %v1267, %v1266
    %v1299 = vpack.c.b16 %v1269, %v1268
    %v1300 = vpack.c.b16 %v1271, %v1270
    %v1301 = vpack.c.b16 %v1273, %v1272
    %v1302 = vpack.c.b16 %v1275, %v1274
    %v1303 = vpack.c.b16 %v1277, %v1276
    %v1304 = vpack.c.b16 %v1279, %v1278
    %v1331 = vsel %vm264, %v1176, 0
    %1333 = vmatprep.subr.bf16.mxu0 0
    %1334 = vmatpush1.bf16.msra.mxu0 %v1280
    %1335 = vmatprep.subr.bf16.mxu0 0
    %1336 = vmatpush1.bf16.msra.mxu0 %v1281
    %1337 = vmatprep.subr.bf16.mxu0 0
    %1338 = vmatpush1.bf16.msra.mxu0 %v1282
    %1339 = vmatprep.subr.bf16.mxu0 0
    %1340 = vmatpush1.bf16.msra.mxu0 %v1283
    %1341 = vmatprep.subr.bf16.mxu0 0
    %1342 = vmatpush1.bf16.msra.mxu0 %v1284
    %1343 = vmatprep.subr.bf16.mxu0 0
    %1344 = vmatpush1.bf16.msra.mxu0 %v1285
    %1345 = vmatprep.subr.bf16.mxu0 0
    %1346 = vmatpush1.bf16.msra.mxu0 %v1286
    %1347 = vmatprep.subr.bf16.mxu0 0
    %1348 = vmatpush1.bf16.msra.mxu0 %v1287
    %1349 = vmatprep.subr.bf16.mxu0 0
    %1350 = vmatpush1.bf16.msra.mxu0 %v1288
    %1351 = vmatprep.subr.bf16.mxu0 0
    %1352 = vmatpush1.bf16.msra.mxu0 %v1289
    %1353 = vmatprep.subr.bf16.mxu0 0
    %1354 = vmatpush1.bf16.msra.mxu0 %v1290
    %1355 = vmatprep.subr.bf16.mxu0 0
    %1356 = vmatpush1.bf16.msra.mxu0 %v1291
    %1357 = vmatprep.subr.bf16.mxu0 0
    %1358 = vmatpush1.bf16.msra.mxu0 %v1292
    %1359 = vmatprep.subr.bf16.mxu0 0
    %1360 = vmatpush1.bf16.msra.mxu0 %v1293
    %1361 = vmatprep.subr.bf16.mxu0 0
    %1362 = vmatpush1.bf16.msra.mxu0 %v1294
    %1363 = vmatprep.subr.bf16.mxu0 0
    %1364 = vmatpush1.bf16.msra.mxu0 %v1295
    %1365 = vmatprep.mubr.bf16.mxu0 %v1174
    %1366 = vmatmul.mubr.bf16.gmra.mrb[0].mxu0 %v1167
    %v1367 = vpop.f32.mrb[0].mxu0
    %v1368 = vadd.f32 %v1150, %v1367
    %v1369 = vpop.f32.mrb[0].mxu0
    %v1370 = vpop.f32.mrb[0].mxu0
    %v1371 = vpop.f32.mrb[0].mxu0
    %1372 = vdwg.mxu0
    %1373 = vmatprep.subr.bf16.mxu0 0
    %1374 = vmatpush1.bf16.msra.mxu0 %v1296
    %1375 = vmatprep.subr.bf16.mxu0 0
    %1376 = vmatpush1.bf16.msra.mxu0 %v1297
    %1377 = vmatprep.subr.bf16.mxu0 0
    %1378 = vmatpush1.bf16.msra.mxu0 %v1298
    %1379 = vmatprep.subr.bf16.mxu0 0
    %1380 = vmatpush1.bf16.msra.mxu0 %v1299
    %1381 = vmatprep.subr.bf16.mxu0 0
    %1382 = vmatpush1.bf16.msra.mxu0 %v1300
    %1383 = vmatprep.subr.bf16.mxu0 0
    %1384 = vmatpush1.bf16.msra.mxu0 %v1301
    %1385 = vmatprep.subr.bf16.mxu0 0
    %1386 = vmatpush1.bf16.msra.mxu0 %v1302
    %1387 = vmatprep.subr.bf16.mxu0 0
    %1388 = vmatpush1.bf16.msra.mxu0 %v1303
    %1389 = vmatprep.subr.bf16.mxu0 0
    %1390 = vmatpush1.bf16.msra.mxu0 %v1304
    %1391 = vmatprep.subr.bf16.mxu0 0
    %1392 = vmatpush1.bf16.msra.mxu0 0
    %1393 = vmatprep.subr.bf16.mxu0 0
    %1394 = vmatpush1.bf16.msra.mxu0 0
    %1395 = vmatprep.subr.bf16.mxu0 0
    %1396 = vmatpush1.bf16.msra.mxu0 0
    %1397 = vmatprep.subr.bf16.mxu0 0
    %1398 = vmatpush1.bf16.msra.mxu0 0
    %1399 = vmatprep.subr.bf16.mxu0 0
    %1400 = vmatpush1.bf16.msra.mxu0 0
    %1401 = vmatprep.subr.bf16.mxu0 0
    %1402 = vmatpush1.bf16.msra.mxu0 0
    %1403 = vmatprep.subr.bf16.mxu0 0
    %1404 = vmatpush1.bf16.msra.mxu0 0
    %1405 = vmatprep.mubr.bf16.mxu0 %v1331
    %1406 = vmatmul.mubr.bf16.gmra.mrb[0].mxu0 %v1175
    %v1407 = vpop.f32.mrb[0].mxu0
    %v1408 = vadd.f32 %v1368, %v1407
    %v1409 = vpop.f32.mrb[0].mxu0
    %v1410 = vpop.f32.mrb[0].mxu0
    %v1411 = vpop.f32.mrb[0].mxu0
    %1412 = vdwg.mxu0
    %v1413 = vmax.f32 %v1408, 0.0
    %v1414 = vpack.c.bf16 %v1413, %v1413
    %s1415 = scalar_lea.vmem %s3, 120
    %v1416 = vld [vmem:[%s1415] sm:$0xf]
    %v1417 = vld [vmem:[%s1415 + $0x4] sm:$0xf]
    %v1418 = vld [vmem:[%s1415 + $0x8] sm:$0xf]
    %v1419 = vld [vmem:[%s1415 + $0xc] sm:$0xf]
    %v1420 = vld [vmem:[%s1415 + $0x10] sm:$0xf]
    %v1421 = vld [vmem:[%s1415 + $0x14] sm:$0xf]
    %v1422 = vld [vmem:[%s1415 + $0x18] sm:$0xf]
    %v1423 = vld [vmem:[%s1415 + $0x1c] sm:$0xf]
    %v1424 = vld [vmem:[%s1415 + $0x20] sm:$0xf]
    %v1425 = vld [vmem:[%s1415 + $0x24] sm:$0xf]
    %v1426 = vld [vmem:[%s1415 + $0x28] sm:$0xf]
    %v1427 = vld [vmem:[%s1415 + $0x2c] sm:$0xf]
    %v1428 = vld [vmem:[%s1415 + $0x30] sm:$0xf]
    %v1429 = vld [vmem:[%s1415 + $0x34] sm:$0xf]
    %v1430 = vld [vmem:[%s1415 + $0x38] sm:$0xf]
    %s1431 = scalar_lea.vmem %s4, 2
    %v1432 = vld [vmem:[%s1431] sm:$0x1]
    %v1434 = vlaneseq
    %v1435 = vshrl.u32 %v1434, 7
    %v1436 = vsub.s32 0, %v1435
    %v1437 = vrot.slane %v1432, %v1436
    %v1454 = vunpack.c.l.b16 %v1416
    %v1455 = vunpack.c.l.b16 %v1417
    %v1456 = vunpack.c.l.b16 %v1418
    %v1457 = vunpack.c.l.b16 %v1419
    %v1458 = vunpack.c.l.b16 %v1420
    %v1459 = vunpack.c.l.b16 %v1421
    %v1460 = vunpack.c.l.b16 %v1422
    %v1461 = vunpack.c.l.b16 %v1423
    %v1462 = vunpack.c.l.b16 %v1424
    %v1463 = vunpack.c.l.b16 %v1425
    %v1464 = vunpack.c.l.b16 %v1426
    %v1465 = vunpack.c.l.b16 %v1427
    %v1466 = vunpack.c.l.b16 %v1428
    %v1467 = vunpack.c.l.b16 %v1429
    %v1468 = vunpack.c.l.b16 %v1430
    %v1469 = vpack.c.b16 %v1455, %v1454
    %v1470 = vpack.c.b16 %v1457, %v1456
    %v1471 = vpack.c.b16 %v1459, %v1458
    %v1472 = vpack.c.b16 %v1461, %v1460
    %v1473 = vpack.c.b16 %v1463, %v1462
    %v1474 = vpack.c.b16 %v1465, %v1464
    %v1475 = vpack.c.b16 %v1467, %v1466
    %v1476 = vpack.c.b16 %v1468, %v1468
    %v1485 = vsel %vm417, %v1414, 0
    %v1488 = vsel %vm421, %v1476, 0
    %1490 = vmatprep.subr.bf16.mxu0 0
    %1491 = vmatpush1.bf16.msra.mxu0 %v1469
    %1492 = vmatprep.subr.bf16.mxu0 0
    %1493 = vmatpush1.bf16.msra.mxu0 %v1470
    %1494 = vmatprep.subr.bf16.mxu0 0
    %1495 = vmatpush1.bf16.msra.mxu0 %v1471
    %1496 = vmatprep.subr.bf16.mxu0 0
    %1497 = vmatpush1.bf16.msra.mxu0 %v1472
    %1498 = vmatprep.subr.bf16.mxu0 0
    %1499 = vmatpush1.bf16.msra.mxu0 %v1473
    %1500 = vmatprep.subr.bf16.mxu0 0
    %1501 = vmatpush1.bf16.msra.mxu0 %v1474
    %1502 = vmatprep.subr.bf16.mxu0 0
    %1503 = vmatpush1.bf16.msra.mxu0 %v1475
    %1504 = vmatprep.subr.bf16.mxu0 0
    %1505 = vmatpush1.bf16.msra.mxu0 %v1488
    %1506 = vmatprep.subr.bf16.mxu0 0
    %1507 = vmatpush1.bf16.msra.mxu0 0
    %1508 = vmatprep.subr.bf16.mxu0 0
    %1509 = vmatpush1.bf16.msra.mxu0 0
    %1510 = vmatprep.subr.bf16.mxu0 0
    %1511 = vmatpush1.bf16.msra.mxu0 0
    %1512 = vmatprep.subr.bf16.mxu0 0
    %1513 = vmatpush1.bf16.msra.mxu0 0
    %1514 = vmatprep.subr.bf16.mxu0 0
    %1515 = vmatpush1.bf16.msra.mxu0 0
    %1516 = vmatprep.subr.bf16.mxu0 0
    %1517 = vmatpush1.bf16.msra.mxu0 0
    %1518 = vmatprep.subr.bf16.mxu0 0
    %1519 = vmatpush1.bf16.msra.mxu0 0
    %1520 = vmatprep.subr.bf16.mxu0 0
    %1521 = vmatpush1.bf16.msra.mxu0 0
    %1522 = vmatprep.mubr.bf16.mxu0 0
    %1523 = vmatmul.mubr.bf16.gmra.mrb[0].mxu0 %v1485
    %v1524 = vpop.f32.mrb[0].mxu0
    %v1525 = vadd.f32 %v1437, %v1524
    %v1526 = vpop.f32.mrb[0].mxu0
    %v1527 = vpop.f32.mrb[0].mxu0
    %v1528 = vpop.f32.mrb[0].mxu0
    %1529 = vdwg.mxu0
    %v1530 = vmax.f32 %v1525, 0.0
    %v1531 = vpack.c.bf16 %v1530, %v1530
    %s1532 = scalar_lea.vmem %s5, 88
    %v1533 = vld [vmem:[%s1532] sm:$0xf]
    %v1534 = vld [vmem:[%s1532 + $0x4] sm:$0xf]
    %v1535 = vld [vmem:[%s1532 + $0x8] sm:$0xf]
    %v1536 = vld [vmem:[%s1532 + $0xc] sm:$0xf]
    %v1537 = vld [vmem:[%s1532 + $0x10] sm:$0xf]
    %v1538 = vld [vmem:[%s1532 + $0x14] sm:$0xf]
    %v1539 = vld [vmem:[%s1532 + $0x18] sm:$0xf]
    %v1540 = vld [vmem:[%s1532 + $0x1c] sm:$0xf]
    %v1541 = vld [vmem:[%s1532 + $0x20] sm:$0xf]
    %v1542 = vld [vmem:[%s1532 + $0x24] sm:$0xf]
    %v1543 = vld [vmem:[%s1532 + $0x28] sm:$0x3]
    %v1555 = vunpack.c.l.b16 %v1533
    %v1556 = vunpack.c.l.b16 %v1534
    %v1557 = vunpack.c.l.b16 %v1535
    %v1558 = vunpack.c.l.b16 %v1536
    %v1559 = vunpack.c.l.b16 %v1537
    %v1560 = vunpack.c.l.b16 %v1538
    %v1561 = vunpack.c.l.b16 %v1539
    %v1562 = vunpack.c.l.b16 %v1540
    %v1563 = vunpack.c.l.b16 %v1541
    %v1564 = vunpack.c.l.b16 %v1542
    %v1565 = vunpack.c.l.b16 %v1543
    %v1566 = vpack.c.b16 %v1556, %v1555
    %v1567 = vpack.c.b16 %v1558, %v1557
    %v1568 = vpack.c.b16 %v1560, %v1559
    %v1569 = vpack.c.b16 %v1562, %v1561
    %v1570 = vpack.c.b16 %v1564, %v1563
    %v1571 = vpack.c.b16 %v1565, %v1565
    %v1578 = vsel %vm964, %v1531, 0
    %v1581 = vsel %vm968, %v1571, 0
    %1583 = vmatprep.subr.bf16.mxu0 0
    %1584 = vmatpush1.bf16.msra.mxu0 %v1566
    %1585 = vmatprep.subr.bf16.mxu0 0
    %1586 = vmatpush1.bf16.msra.mxu0 %v1567
    %1587 = vmatprep.subr.bf16.mxu0 0
    %1588 = vmatpush1.bf16.msra.mxu0 %v1568
    %1589 = vmatprep.subr.bf16.mxu0 0
    %1590 = vmatpush1.bf16.msra.mxu0 %v1569
    %1591 = vmatprep.subr.bf16.mxu0 0
    %1592 = vmatpush1.bf16.msra.mxu0 %v1570
    %1593 = vmatprep.subr.bf16.mxu0 0
    %1594 = vmatpush1.bf16.msra.mxu0 %v1581
    %1595 = vmatprep.subr.bf16.mxu0 0
    %1596 = vmatpush1.bf16.msra.mxu0 0
    %1597 = vmatprep.subr.bf16.mxu0 0
    %1598 = vmatpush1.bf16.msra.mxu0 0
    %1599 = vmatprep.subr.bf16.mxu0 0
    %1600 = vmatpush1.bf16.msra.mxu0 0
    %1601 = vmatprep.subr.bf16.mxu0 0
    %1602 = vmatpush1.bf16.msra.mxu0 0
    %1603 = vmatprep.subr.bf16.mxu0 0
    %1604 = vmatpush1.bf16.msra.mxu0 0
    %1605 = vmatprep.subr.bf16.mxu0 0
    %1606 = vmatpush1.bf16.msra.mxu0 0
    %1607 = vmatprep.subr.bf16.mxu0 0
    %1608 = vmatpush1.bf16.msra.mxu0 0
    %1609 = vmatprep.subr.bf16.mxu0 0
    %1610 = vmatpush1.bf16.msra.mxu0 0
    %1611 = vmatprep.subr.bf16.mxu0 0
    %1612 = vmatpush1.bf16.msra.mxu0 0
    %1613 = vmatprep.subr.bf16.mxu0 0
    %1614 = vmatpush1.bf16.msra.mxu0 0
    %1615 = vmatprep.mubr.bf16.mxu0 0
    %1616 = vmatmul.mubr.bf16.gmra.mrb[0].mxu0 %v1578
    %v1617 = vpop.f32.mrb[0].mxu0
    %v1618 = vadd.f32 0.0, %v1617
    %v1619 = vpop.f32.mrb[0].mxu0
    %v1620 = vpop.f32.mrb[0].mxu0
    %v1621 = vpop.f32.mrb[0].mxu0
    %1622 = vdwg.mxu0
    %v1623 = vadd.f32 %v1086, %v1618
    %s1624 = scalar_lea.vmem %s0, 12
    %v1625 = vld [vmem:[%s1624] sm:$0xf]
    %s1626 = scalar_lea.vmem %s1, 600
    %v1627 = vld [vmem:[%s1626] sm:$0xf]
    %v1628 = vld [vmem:[%s1626 + $0x4] sm:$0xf]
    %v1629 = vld [vmem:[%s1626 + $0x8] sm:$0xf]
    %v1630 = vld [vmem:[%s1626 + $0xc] sm:$0xf]
    %v1631 = vld [vmem:[%s1626 + $0x10] sm:$0xf]
    %v1632 = vld [vmem:[%s1626 + $0x14] sm:$0xf]
    %v1633 = vld [vmem:[%s1626 + $0x18] sm:$0xf]
    %v1634 = vld [vmem:[%s1626 + $0x1c] sm:$0xf]
    %v1635 = vld [vmem:[%s1626 + $0x20] sm:$0xf]
    %v1636 = vld [vmem:[%s1626 + $0x24] sm:$0xf]
    %v1637 = vld [vmem:[%s1626 + $0x28] sm:$0xf]
    %v1638 = vld [vmem:[%s1626 + $0x2c] sm:$0xf]
    %v1639 = vld [vmem:[%s1626 + $0x30] sm:$0xf]
    %v1640 = vld [vmem:[%s1626 + $0x34] sm:$0xf]
    %v1641 = vld [vmem:[%s1626 + $0x38] sm:$0xf]
    %v1642 = vld [vmem:[%s1626 + $0x3c] sm:$0xf]
    %v1643 = vld [vmem:[%s1626 + $0x40] sm:$0xf]
    %v1644 = vld [vmem:[%s1626 + $0x44] sm:$0xf]
    %v1645 = vld [vmem:[%s1626 + $0x48] sm:$0xf]
    %v1646 = vld [vmem:[%s1626 + $0x4c] sm:$0xf]
    %v1647 = vld [vmem:[%s1626 + $0x50] sm:$0xf]
    %v1648 = vld [vmem:[%s1626 + $0x54] sm:$0xf]
    %v1649 = vld [vmem:[%s1626 + $0x58] sm:$0xf]
    %v1650 = vld [vmem:[%s1626 + $0x5c] sm:$0xf]
    %v1651 = vld [vmem:[%s1626 + $0x60] sm:$0xf]
    %v1652 = vld [vmem:[%s1626 + $0x64] sm:$0xf]
    %v1653 = vld [vmem:[%s1626 + $0x68] sm:$0xf]
    %v1654 = vld [vmem:[%s1626 + $0x6c] sm:$0xf]
    %v1655 = vld [vmem:[%s1626 + $0x70] sm:$0xf]
    %v1656 = vld [vmem:[%s1626 + $0x74] sm:$0xf]
    %v1657 = vld [vmem:[%s1626 + $0x78] sm:$0xf]
    %v1658 = vld [vmem:[%s1626 + $0x7c] sm:$0xf]
    %v1659 = vld [vmem:[%s1626 + $0x80] sm:$0xf]
    %v1660 = vld [vmem:[%s1626 + $0x84] sm:$0xf]
    %v1661 = vld [vmem:[%s1626 + $0x88] sm:$0xf]
    %v1662 = vld [vmem:[%s1626 + $0x8c] sm:$0xf]
    %v1663 = vld [vmem:[%s1626 + $0x90] sm:$0xf]
    %v1664 = vld [vmem:[%s1626 + $0x94] sm:$0xf]
    %v1665 = vld [vmem:[%s1626 + $0x98] sm:$0xf]
    %v1666 = vld [vmem:[%s1626 + $0x9c] sm:$0xf]
    %v1667 = vld [vmem:[%s1626 + $0xa0] sm:$0xf]
    %v1668 = vld [vmem:[%s1626 + $0xa4] sm:$0xf]
    %v1669 = vld [vmem:[%s1626 + $0xa8] sm:$0xf]
    %v1670 = vld [vmem:[%s1626 + $0xac] sm:$0xf]
    %v1671 = vld [vmem:[%s1626 + $0xb0] sm:$0xf]
    %v1672 = vld [vmem:[%s1626 + $0xb4] sm:$0xf]
    %v1673 = vld [vmem:[%s1626 + $0xb8] sm:$0xf]
    %v1674 = vld [vmem:[%s1626 + $0xbc] sm:$0xf]
    %v1675 = vld [vmem:[%s1626 + $0xc0] sm:$0xf]
    %v1676 = vld [vmem:[%s1626 + $0xc4] sm:$0xf]
    %s1677 = scalar_lea.vmem %s2, 3
    %v1678 = vld [vmem:[%s1677] sm:$0x1]
    %v1680 = vlaneseq
    %v1681 = vshrl.u32 %v1680, 7
    %v1682 = vsub.s32 0, %v1681
    %v1683 = vrot.slane %v1678, %v1682
    %v1687 = vunpack.c.l.s4 1966171168
    %v1688 = vunpack.c.0.s8 %v1687
    %v1689 = vlaneseq
    %v1690 = vshrl.u32 %v1689, 7
    %v1691 = vsub.s32 %v1688, %v1690
    %v1692 = vrot.slane %v1625, %v1691
    %v1693 = vcombine.high %v1692, %v1692
    %v1695 = vunpack.c.l.s4 1966171168
    %v1696 = vunpack.c.0.s8 %v1695
    %v1697 = vlaneseq
    %v1698 = vshrl.u32 %v1697, 7
    %v1699 = vsub.s32 %v1696, %v1698
    %v1700 = vrot.slane %v1692, %v1699
    %v1702 = vunpack.c.l.s4 1966171168
    %v1703 = vunpack.c.0.s8 %v1702
    %v1704 = vlaneseq
    %v1705 = vshrl.u32 %v1704, 7
    %v1706 = vsub.s32 %v1703, %v1705
    %v1707 = vrot.slane %v1693, %v1706
    %v1708 = vcombine.high %v1700, %v1700
    %v1709 = vcombine.high %v1707, %v1707
    %v1763 = vunpack.c.l.b16 %v1627
    %v1764 = vunpack.c.l.b16 %v1628
    %v1765 = vunpack.c.l.b16 %v1629
    %v1766 = vunpack.c.l.b16 %v1630
    %v1767 = vunpack.c.l.b16 %v1631
    %v1768 = vunpack.c.l.b16 %v1632
    %v1769 = vunpack.c.l.b16 %v1633
    %v1770 = vunpack.c.l.b16 %v1634
    %v1771 = vunpack.c.l.b16 %v1635
    %v1772 = vunpack.c.l.b16 %v1636
    %v1773 = vunpack.c.l.b16 %v1637
    %v1774 = vunpack.c.l.b16 %v1638
    %v1775 = vunpack.c.l.b16 %v1639
    %v1776 = vunpack.c.l.b16 %v1640
    %v1777 = vunpack.c.l.b16 %v1641
    %v1778 = vunpack.c.l.b16 %v1642
    %v1779 = vunpack.c.l.b16 %v1643
    %v1780 = vunpack.c.l.b16 %v1644
    %v1781 = vunpack.c.l.b16 %v1645
    %v1782 = vunpack.c.l.b16 %v1646
    %v1783 = vunpack.c.l.b16 %v1647
    %v1784 = vunpack.c.l.b16 %v1648
    %v1785 = vunpack.c.l.b16 %v1649
    %v1786 = vunpack.c.l.b16 %v1650
    %v1787 = vunpack.c.l.b16 %v1651
    %v1788 = vunpack.c.l.b16 %v1652
    %v1789 = vunpack.c.l.b16 %v1653
    %v1790 = vunpack.c.l.b16 %v1654
    %v1791 = vunpack.c.l.b16 %v1655
    %v1792 = vunpack.c.l.b16 %v1656
    %v1793 = vunpack.c.l.b16 %v1657
    %v1794 = vunpack.c.l.b16 %v1658
    %v1795 = vunpack.c.l.b16 %v1659
    %v1796 = vunpack.c.l.b16 %v1660
    %v1797 = vunpack.c.l.b16 %v1661
    %v1798 = vunpack.c.l.b16 %v1662
    %v1799 = vunpack.c.l.b16 %v1663
    %v1800 = vunpack.c.l.b16 %v1664
    %v1801 = vunpack.c.l.b16 %v1665
    %v1802 = vunpack.c.l.b16 %v1666
    %v1803 = vunpack.c.l.b16 %v1667
    %v1804 = vunpack.c.l.b16 %v1668
    %v1805 = vunpack.c.l.b16 %v1669
    %v1806 = vunpack.c.l.b16 %v1670
    %v1807 = vunpack.c.l.b16 %v1671
    %v1808 = vunpack.c.l.b16 %v1672
    %v1809 = vunpack.c.l.b16 %v1673
    %v1810 = vunpack.c.l.b16 %v1674
    %v1811 = vunpack.c.l.b16 %v1675
    %v1812 = vunpack.c.l.b16 %v1676
    %v1813 = vpack.c.b16 %v1764, %v1763
    %v1814 = vpack.c.b16 %v1766, %v1765
    %v1815 = vpack.c.b16 %v1768, %v1767
    %v1816 = vpack.c.b16 %v1770, %v1769
    %v1817 = vpack.c.b16 %v1772, %v1771
    %v1818 = vpack.c.b16 %v1774, %v1773
    %v1819 = vpack.c.b16 %v1776, %v1775
    %v1820 = vpack.c.b16 %v1778, %v1777
    %v1821 = vpack.c.b16 %v1780, %v1779
    %v1822 = vpack.c.b16 %v1782, %v1781
    %v1823 = vpack.c.b16 %v1784, %v1783
    %v1824 = vpack.c.b16 %v1786, %v1785
    %v1825 = vpack.c.b16 %v1788, %v1787
    %v1826 = vpack.c.b16 %v1790, %v1789
    %v1827 = vpack.c.b16 %v1792, %v1791
    %v1828 = vpack.c.b16 %v1794, %v1793
    %v1829 = vpack.c.b16 %v1796, %v1795
    %v1830 = vpack.c.b16 %v1798, %v1797
    %v1831 = vpack.c.b16 %v1800, %v1799
    %v1832 = vpack.c.b16 %v1802, %v1801
    %v1833 = vpack.c.b16 %v1804, %v1803
    %v1834 = vpack.c.b16 %v1806, %v1805
    %v1835 = vpack.c.b16 %v1808, %v1807
    %v1836 = vpack.c.b16 %v1810, %v1809
    %v1837 = vpack.c.b16 %v1812, %v1811
    %v1864 = vsel %vm264, %v1709, 0
    %1866 = vmatprep.subr.bf16.mxu0 0
    %1867 = vmatpush1.bf16.msra.mxu0 %v1813
    %1868 = vmatprep.subr.bf16.mxu0 0
    %1869 = vmatpush1.bf16.msra.mxu0 %v1814
    %1870 = vmatprep.subr.bf16.mxu0 0
    %1871 = vmatpush1.bf16.msra.mxu0 %v1815
    %1872 = vmatprep.subr.bf16.mxu0 0
    %1873 = vmatpush1.bf16.msra.mxu0 %v1816
    %1874 = vmatprep.subr.bf16.mxu0 0
    %1875 = vmatpush1.bf16.msra.mxu0 %v1817
    %1876 = vmatprep.subr.bf16.mxu0 0
    %1877 = vmatpush1.bf16.msra.mxu0 %v1818
    %1878 = vmatprep.subr.bf16.mxu0 0
    %1879 = vmatpush1.bf16.msra.mxu0 %v1819
    %1880 = vmatprep.subr.bf16.mxu0 0
    %1881 = vmatpush1.bf16.msra.mxu0 %v1820
    %1882 = vmatprep.subr.bf16.mxu0 0
    %1883 = vmatpush1.bf16.msra.mxu0 %v1821
    %1884 = vmatprep.subr.bf16.mxu0 0
    %1885 = vmatpush1.bf16.msra.mxu0 %v1822
    %1886 = vmatprep.subr.bf16.mxu0 0
    %1887 = vmatpush1.bf16.msra.mxu0 %v1823
    %1888 = vmatprep.subr.bf16.mxu0 0
    %1889 = vmatpush1.bf16.msra.mxu0 %v1824
    %1890 = vmatprep.subr.bf16.mxu0 0
    %1891 = vmatpush1.bf16.msra.mxu0 %v1825
    %1892 = vmatprep.subr.bf16.mxu0 0
    %1893 = vmatpush1.bf16.msra.mxu0 %v1826
    %1894 = vmatprep.subr.bf16.mxu0 0
    %1895 = vmatpush1.bf16.msra.mxu0 %v1827
    %1896 = vmatprep.subr.bf16.mxu0 0
    %1897 = vmatpush1.bf16.msra.mxu0 %v1828
    %1898 = vmatprep.mubr.bf16.mxu0 %v1707
    %1899 = vmatmul.mubr.bf16.gmra.mrb[0].mxu0 %v1700
    %v1900 = vpop.f32.mrb[0].mxu0
    %v1901 = vadd.f32 %v1683, %v1900
    %v1902 = vpop.f32.mrb[0].mxu0
    %v1903 = vpop.f32.mrb[0].mxu0
    %v1904 = vpop.f32.mrb[0].mxu0
    %1905 = vdwg.mxu0
    %1906 = vmatprep.subr.bf16.mxu0 0
    %1907 = vmatpush1.bf16.msra.mxu0 %v1829
    %1908 = vmatprep.subr.bf16.mxu0 0
    %1909 = vmatpush1.bf16.msra.mxu0 %v1830
    %1910 = vmatprep.subr.bf16.mxu0 0
    %1911 = vmatpush1.bf16.msra.mxu0 %v1831
    %1912 = vmatprep.subr.bf16.mxu0 0
    %1913 = vmatpush1.bf16.msra.mxu0 %v1832
    %1914 = vmatprep.subr.bf16.mxu0 0
    %1915 = vmatpush1.bf16.msra.mxu0 %v1833
    %1916 = vmatprep.subr.bf16.mxu0 0
    %1917 = vmatpush1.bf16.msra.mxu0 %v1834
    %1918 = vmatprep.subr.bf16.mxu0 0
    %1919 = vmatpush1.bf16.msra.mxu0 %v1835
    %1920 = vmatprep.subr.bf16.mxu0 0
    %1921 = vmatpush1.bf16.msra.mxu0 %v1836
    %1922 = vmatprep.subr.bf16.mxu0 0
    %1923 = vmatpush1.bf16.msra.mxu0 %v1837
    %1924 = vmatprep.subr.bf16.mxu0 0
    %1925 = vmatpush1.bf16.msra.mxu0 0
    %1926 = vmatprep.subr.bf16.mxu0 0
    %1927 = vmatpush1.bf16.msra.mxu0 0
    %1928 = vmatprep.subr.bf16.mxu0 0
    %1929 = vmatpush1.bf16.msra.mxu0 0
    %1930 = vmatprep.subr.bf16.mxu0 0
    %1931 = vmatpush1.bf16.msra.mxu0 0
    %1932 = vmatprep.subr.bf16.mxu0 0
    %1933 = vmatpush1.bf16.msra.mxu0 0
    %1934 = vmatprep.subr.bf16.mxu0 0
    %1935 = vmatpush1.bf16.msra.mxu0 0
    %1936 = vmatprep.subr.bf16.mxu0 0
    %1937 = vmatpush1.bf16.msra.mxu0 0
    %1938 = vmatprep.mubr.bf16.mxu0 %v1864
    %1939 = vmatmul.mubr.bf16.gmra.mrb[0].mxu0 %v1708
    %v1940 = vpop.f32.mrb[0].mxu0
    %v1941 = vadd.f32 %v1901, %v1940
    %v1942 = vpop.f32.mrb[0].mxu0
    %v1943 = vpop.f32.mrb[0].mxu0
    %v1944 = vpop.f32.mrb[0].mxu0
    %1945 = vdwg.mxu0
    %v1946 = vmax.f32 %v1941, 0.0
    %v1947 = vpack.c.bf16 %v1946, %v1946
    %s1948 = scalar_lea.vmem %s3, 180
    %v1949 = vld [vmem:[%s1948] sm:$0xf]
    %v1950 = vld [vmem:[%s1948 + $0x4] sm:$0xf]
    %v1951 = vld [vmem:[%s1948 + $0x8] sm:$0xf]
    %v1952 = vld [vmem:[%s1948 + $0xc] sm:$0xf]
    %v1953 = vld [vmem:[%s1948 + $0x10] sm:$0xf]
    %v1954 = vld [vmem:[%s1948 + $0x14] sm:$0xf]
    %v1955 = vld [vmem:[%s1948 + $0x18] sm:$0xf]
    %v1956 = vld [vmem:[%s1948 + $0x1c] sm:$0xf]
    %v1957 = vld [vmem:[%s1948 + $0x20] sm:$0xf]
    %v1958 = vld [vmem:[%s1948 + $0x24] sm:$0xf]
    %v1959 = vld [vmem:[%s1948 + $0x28] sm:$0xf]
    %v1960 = vld [vmem:[%s1948 + $0x2c] sm:$0xf]
    %v1961 = vld [vmem:[%s1948 + $0x30] sm:$0xf]
    %v1962 = vld [vmem:[%s1948 + $0x34] sm:$0xf]
    %v1963 = vld [vmem:[%s1948 + $0x38] sm:$0xf]
    %s1964 = scalar_lea.vmem %s4, 3
    %v1965 = vld [vmem:[%s1964] sm:$0x1]
    %v1967 = vlaneseq
    %v1968 = vshrl.u32 %v1967, 7
    %v1969 = vsub.s32 0, %v1968
    %v1970 = vrot.slane %v1965, %v1969
    %v1987 = vunpack.c.l.b16 %v1949
    %v1988 = vunpack.c.l.b16 %v1950
    %v1989 = vunpack.c.l.b16 %v1951
    %v1990 = vunpack.c.l.b16 %v1952
    %v1991 = vunpack.c.l.b16 %v1953
    %v1992 = vunpack.c.l.b16 %v1954
    %v1993 = vunpack.c.l.b16 %v1955
    %v1994 = vunpack.c.l.b16 %v1956
    %v1995 = vunpack.c.l.b16 %v1957
    %v1996 = vunpack.c.l.b16 %v1958
    %v1997 = vunpack.c.l.b16 %v1959
    %v1998 = vunpack.c.l.b16 %v1960
    %v1999 = vunpack.c.l.b16 %v1961
    %v2000 = vunpack.c.l.b16 %v1962
    %v2001 = vunpack.c.l.b16 %v1963
    %v2002 = vpack.c.b16 %v1988, %v1987
    %v2003 = vpack.c.b16 %v1990, %v1989
    %v2004 = vpack.c.b16 %v1992, %v1991
    %v2005 = vpack.c.b16 %v1994, %v1993
    %v2006 = vpack.c.b16 %v1996, %v1995
    %v2007 = vpack.c.b16 %v1998, %v1997
    %v2008 = vpack.c.b16 %v2000, %v1999
    %v2009 = vpack.c.b16 %v2001, %v2001
    %v2018 = vsel %vm417, %v1947, 0
    %v2021 = vsel %vm421, %v2009, 0
    %2023 = vmatprep.subr.bf16.mxu0 0
    %2024 = vmatpush1.bf16.msra.mxu0 %v2002
    %2025 = vmatprep.subr.bf16.mxu0 0
    %2026 = vmatpush1.bf16.msra.mxu0 %v2003
    %2027 = vmatprep.subr.bf16.mxu0 0
    %2028 = vmatpush1.bf16.msra.mxu0 %v2004
    %2029 = vmatprep.subr.bf16.mxu0 0
    %2030 = vmatpush1.bf16.msra.mxu0 %v2005
    %2031 = vmatprep.subr.bf16.mxu0 0
    %2032 = vmatpush1.bf16.msra.mxu0 %v2006
    %2033 = vmatprep.subr.bf16.mxu0 0
    %2034 = vmatpush1.bf16.msra.mxu0 %v2007
    %2035 = vmatprep.subr.bf16.mxu0 0
    %2036 = vmatpush1.bf16.msra.mxu0 %v2008
    %2037 = vmatprep.subr.bf16.mxu0 0
    %2038 = vmatpush1.bf16.msra.mxu0 %v2021
    %2039 = vmatprep.subr.bf16.mxu0 0
    %2040 = vmatpush1.bf16.msra.mxu0 0
    %2041 = vmatprep.subr.bf16.mxu0 0
    %2042 = vmatpush1.bf16.msra.mxu0 0
    %2043 = vmatprep.subr.bf16.mxu0 0
    %2044 = vmatpush1.bf16.msra.mxu0 0
    %2045 = vmatprep.subr.bf16.mxu0 0
    %2046 = vmatpush1.bf16.msra.mxu0 0
    %2047 = vmatprep.subr.bf16.mxu0 0
    %2048 = vmatpush1.bf16.msra.mxu0 0
    %2049 = vmatprep.subr.bf16.mxu0 0
    %2050 = vmatpush1.bf16.msra.mxu0 0
    %2051 = vmatprep.subr.bf16.mxu0 0
    %2052 = vmatpush1.bf16.msra.mxu0 0
    %2053 = vmatprep.subr.bf16.mxu0 0
    %2054 = vmatpush1.bf16.msra.mxu0 0
    %2055 = vmatprep.mubr.bf16.mxu0 0
    %2056 = vmatmul.mubr.bf16.gmra.mrb[0].mxu0 %v2018
    %v2057 = vpop.f32.mrb[0].mxu0
    %v2058 = vadd.f32 %v1970, %v2057
    %v2059 = vpop.f32.mrb[0].mxu0
    %v2060 = vpop.f32.mrb[0].mxu0
    %v2061 = vpop.f32.mrb[0].mxu0
    %2062 = vdwg.mxu0
    %v2063 = vmax.f32 %v2058, 0.0
    %v2064 = vpack.c.bf16 %v2063, %v2063
    %s2065 = scalar_lea.vmem %s5, 132
    %v2066 = vld [vmem:[%s2065] sm:$0xf]
    %v2067 = vld [vmem:[%s2065 + $0x4] sm:$0xf]
    %v2068 = vld [vmem:[%s2065 + $0x8] sm:$0xf]
    %v2069 = vld [vmem:[%s2065 + $0xc] sm:$0xf]
    %v2070 = vld [vmem:[%s2065 + $0x10] sm:$0xf]
    %v2071 = vld [vmem:[%s2065 + $0x14] sm:$0xf]
    %v2072 = vld [vmem:[%s2065 + $0x18] sm:$0xf]
    %v2073 = vld [vmem:[%s2065 + $0x1c] sm:$0xf]
    %v2074 = vld [vmem:[%s2065 + $0x20] sm:$0xf]
    %v2075 = vld [vmem:[%s2065 + $0x24] sm:$0xf]
    %v2076 = vld [vmem:[%s2065 + $0x28] sm:$0x3]
    %v2088 = vunpack.c.l.b16 %v2066
    %v2089 = vunpack.c.l.b16 %v2067
    %v2090 = vunpack.c.l.b16 %v2068
    %v2091 = vunpack.c.l.b16 %v2069
    %v2092 = vunpack.c.l.b16 %v2070
    %v2093 = vunpack.c.l.b16 %v2071
    %v2094 = vunpack.c.l.b16 %v2072
    %v2095 = vunpack.c.l.b16 %v2073
    %v2096 = vunpack.c.l.b16 %v2074
    %v2097 = vunpack.c.l.b16 %v2075
    %v2098 = vunpack.c.l.b16 %v2076
    %v2099 = vpack.c.b16 %v2089, %v2088
    %v2100 = vpack.c.b16 %v2091, %v2090
    %v2101 = vpack.c.b16 %v2093, %v2092
    %v2102 = vpack.c.b16 %v2095, %v2094
    %v2103 = vpack.c.b16 %v2097, %v2096
    %v2104 = vpack.c.b16 %v2098, %v2098
    %v2111 = vsel %vm964, %v2064, 0
    %v2114 = vsel %vm968, %v2104, 0
    %2116 = vmatprep.subr.bf16.mxu0 0
    %2117 = vmatpush1.bf16.msra.mxu0 %v2099
    %2118 = vmatprep.subr.bf16.mxu0 0
    %2119 = vmatpush1.bf16.msra.mxu0 %v2100
    %2120 = vmatprep.subr.bf16.mxu0 0
    %2121 = vmatpush1.bf16.msra.mxu0 %v2101
    %2122 = vmatprep.subr.bf16.mxu0 0
    %2123 = vmatpush1.bf16.msra.mxu0 %v2102
    %2124 = vmatprep.subr.bf16.mxu0 0
    %2125 = vmatpush1.bf16.msra.mxu0 %v2103
    %2126 = vmatprep.subr.bf16.mxu0 0
    %2127 = vmatpush1.bf16.msra.mxu0 %v2114
    %2128 = vmatprep.subr.bf16.mxu0 0
    %2129 = vmatpush1.bf16.msra.mxu0 0
    %2130 = vmatprep.subr.bf16.mxu0 0
    %2131 = vmatpush1.bf16.msra.mxu0 0
    %2132 = vmatprep.subr.bf16.mxu0 0
    %2133 = vmatpush1.bf16.msra.mxu0 0
    %2134 = vmatprep.subr.bf16.mxu0 0
    %2135 = vmatpush1.bf16.msra.mxu0 0
    %2136 = vmatprep.subr.bf16.mxu0 0
    %2137 = vmatpush1.bf16.msra.mxu0 0
    %2138 = vmatprep.subr.bf16.mxu0 0
    %2139 = vmatpush1.bf16.msra.mxu0 0
    %2140 = vmatprep.subr.bf16.mxu0 0
    %2141 = vmatpush1.bf16.msra.mxu0 0
    %2142 = vmatprep.subr.bf16.mxu0 0
    %2143 = vmatpush1.bf16.msra.mxu0 0
    %2144 = vmatprep.subr.bf16.mxu0 0
    %2145 = vmatpush1.bf16.msra.mxu0 0
    %2146 = vmatprep.subr.bf16.mxu0 0
    %2147 = vmatpush1.bf16.msra.mxu0 0
    %2148 = vmatprep.mubr.bf16.mxu0 0
    %2149 = vmatmul.mubr.bf16.gmra.mrb[0].mxu0 %v2111
    %v2150 = vpop.f32.mrb[0].mxu0
    %v2151 = vadd.f32 0.0, %v2150
    %v2152 = vpop.f32.mrb[0].mxu0
    %v2153 = vpop.f32.mrb[0].mxu0
    %v2154 = vpop.f32.mrb[0].mxu0
    %2155 = vdwg.mxu0
    %v2156 = vadd.f32 %v1623, %v2151
    %s2157 = scalar_lea.vmem %s0, 16
    %v2158 = vld [vmem:[%s2157] sm:$0xf]
    %s2159 = scalar_lea.vmem %s1, 800
    %v2160 = vld [vmem:[%s2159] sm:$0xf]
    %v2161 = vld [vmem:[%s2159 + $0x4] sm:$0xf]
    %v2162 = vld [vmem:[%s2159 + $0x8] sm:$0xf]
    %v2163 = vld [vmem:[%s2159 + $0xc] sm:$0xf]
    %v2164 = vld [vmem:[%s2159 + $0x10] sm:$0xf]
    %v2165 = vld [vmem:[%s2159 + $0x14] sm:$0xf]
    %v2166 = vld [vmem:[%s2159 + $0x18] sm:$0xf]
    %v2167 = vld [vmem:[%s2159 + $0x1c] sm:$0xf]
    %v2168 = vld [vmem:[%s2159 + $0x20] sm:$0xf]
    %v2169 = vld [vmem:[%s2159 + $0x24] sm:$0xf]
    %v2170 = vld [vmem:[%s2159 + $0x28] sm:$0xf]
    %v2171 = vld [vmem:[%s2159 + $0x2c] sm:$0xf]
    %v2172 = vld [vmem:[%s2159 + $0x30] sm:$0xf]
    %v2173 = vld [vmem:[%s2159 + $0x34] sm:$0xf]
    %v2174 = vld [vmem:[%s2159 + $0x38] sm:$0xf]
    %v2175 = vld [vmem:[%s2159 + $0x3c] sm:$0xf]
    %v2176 = vld [vmem:[%s2159 + $0x40] sm:$0xf]
    %v2177 = vld [vmem:[%s2159 + $0x44] sm:$0xf]
    %v2178 = vld [vmem:[%s2159 + $0x48] sm:$0xf]
    %v2179 = vld [vmem:[%s2159 + $0x4c] sm:$0xf]
    %v2180 = vld [vmem:[%s2159 + $0x50] sm:$0xf]
    %v2181 = vld [vmem:[%s2159 + $0x54] sm:$0xf]
    %v2182 = vld [vmem:[%s2159 + $0x58] sm:$0xf]
    %v2183 = vld [vmem:[%s2159 + $0x5c] sm:$0xf]
    %v2184 = vld [vmem:[%s2159 + $0x60] sm:$0xf]
    %v2185 = vld [vmem:[%s2159 + $0x64] sm:$0xf]
    %v2186 = vld [vmem:[%s2159 + $0x68] sm:$0xf]
    %v2187 = vld [vmem:[%s2159 + $0x6c] sm:$0xf]
    %v2188 = vld [vmem:[%s2159 + $0x70] sm:$0xf]
    %v2189 = vld [vmem:[%s2159 + $0x74] sm:$0xf]
    %v2190 = vld [vmem:[%s2159 + $0x78] sm:$0xf]
    %v2191 = vld [vmem:[%s2159 + $0x7c] sm:$0xf]
    %v2192 = vld [vmem:[%s2159 + $0x80] sm:$0xf]
    %v2193 = vld [vmem:[%s2159 + $0x84] sm:$0xf]
    %v2194 = vld [vmem:[%s2159 + $0x88] sm:$0xf]
    %v2195 = vld [vmem:[%s2159 + $0x8c] sm:$0xf]
    %v2196 = vld [vmem:[%s2159 + $0x90] sm:$0xf]
    %v2197 = vld [vmem:[%s2159 + $0x94] sm:$0xf]
    %v2198 = vld [vmem:[%s2159 + $0x98] sm:$0xf]
    %v2199 = vld [vmem:[%s2159 + $0x9c] sm:$0xf]
    %v2200 = vld [vmem:[%s2159 + $0xa0] sm:$0xf]
    %v2201 = vld [vmem:[%s2159 + $0xa4] sm:$0xf]
    %v2202 = vld [vmem:[%s2159 + $0xa8] sm:$0xf]
    %v2203 = vld [vmem:[%s2159 + $0xac] sm:$0xf]
    %v2204 = vld [vmem:[%s2159 + $0xb0] sm:$0xf]
    %v2205 = vld [vmem:[%s2159 + $0xb4] sm:$0xf]
    %v2206 = vld [vmem:[%s2159 + $0xb8] sm:$0xf]
    %v2207 = vld [vmem:[%s2159 + $0xbc] sm:$0xf]
    %v2208 = vld [vmem:[%s2159 + $0xc0] sm:$0xf]
    %v2209 = vld [vmem:[%s2159 + $0xc4] sm:$0xf]
    %s2210 = scalar_lea.vmem %s2, 4
    %v2211 = vld [vmem:[%s2210] sm:$0x1]
    %v2213 = vlaneseq
    %v2214 = vshrl.u32 %v2213, 7
    %v2215 = vsub.s32 0, %v2214
    %v2216 = vrot.slane %v2211, %v2215
    %v2220 = vunpack.c.l.s4 1966171168
    %v2221 = vunpack.c.0.s8 %v2220
    %v2222 = vlaneseq
    %v2223 = vshrl.u32 %v2222, 7
    %v2224 = vsub.s32 %v2221, %v2223
    %v2225 = vrot.slane %v2158, %v2224
    %v2226 = vcombine.high %v2225, %v2225
    %v2228 = vunpack.c.l.s4 1966171168
    %v2229 = vunpack.c.0.s8 %v2228
    %v2230 = vlaneseq
    %v2231 = vshrl.u32 %v2230, 7
    %v2232 = vsub.s32 %v2229, %v2231
    %v2233 = vrot.slane %v2225, %v2232
    %v2235 = vunpack.c.l.s4 1966171168
    %v2236 = vunpack.c.0.s8 %v2235
    %v2237 = vlaneseq
    %v2238 = vshrl.u32 %v2237, 7
    %v2239 = vsub.s32 %v2236, %v2238
    %v2240 = vrot.slane %v2226, %v2239
    %v2241 = vcombine.high %v2233, %v2233
    %v2242 = vcombine.high %v2240, %v2240
    %v2296 = vunpack.c.l.b16 %v2160
    %v2297 = vunpack.c.l.b16 %v2161
    %v2298 = vunpack.c.l.b16 %v2162
    %v2299 = vunpack.c.l.b16 %v2163
    %v2300 = vunpack.c.l.b16 %v2164
    %v2301 = vunpack.c.l.b16 %v2165
    %v2302 = vunpack.c.l.b16 %v2166
    %v2303 = vunpack.c.l.b16 %v2167
    %v2304 = vunpack.c.l.b16 %v2168
    %v2305 = vunpack.c.l.b16 %v2169
    %v2306 = vunpack.c.l.b16 %v2170
    %v2307 = vunpack.c.l.b16 %v2171
    %v2308 = vunpack.c.l.b16 %v2172
    %v2309 = vunpack.c.l.b16 %v2173
    %v2310 = vunpack.c.l.b16 %v2174
    %v2311 = vunpack.c.l.b16 %v2175
    %v2312 = vunpack.c.l.b16 %v2176
    %v2313 = vunpack.c.l.b16 %v2177
    %v2314 = vunpack.c.l.b16 %v2178
    %v2315 = vunpack.c.l.b16 %v2179
    %v2316 = vunpack.c.l.b16 %v2180
    %v2317 = vunpack.c.l.b16 %v2181
    %v2318 = vunpack.c.l.b16 %v2182
    %v2319 = vunpack.c.l.b16 %v2183
    %v2320 = vunpack.c.l.b16 %v2184
    %v2321 = vunpack.c.l.b16 %v2185
    %v2322 = vunpack.c.l.b16 %v2186
    %v2323 = vunpack.c.l.b16 %v2187
    %v2324 = vunpack.c.l.b16 %v2188
    %v2325 = vunpack.c.l.b16 %v2189
    %v2326 = vunpack.c.l.b16 %v2190
    %v2327 = vunpack.c.l.b16 %v2191
    %v2328 = vunpack.c.l.b16 %v2192
    %v2329 = vunpack.c.l.b16 %v2193
    %v2330 = vunpack.c.l.b16 %v2194
    %v2331 = vunpack.c.l.b16 %v2195
    %v2332 = vunpack.c.l.b16 %v2196
    %v2333 = vunpack.c.l.b16 %v2197
    %v2334 = vunpack.c.l.b16 %v2198
    %v2335 = vunpack.c.l.b16 %v2199
    %v2336 = vunpack.c.l.b16 %v2200
    %v2337 = vunpack.c.l.b16 %v2201
    %v2338 = vunpack.c.l.b16 %v2202
    %v2339 = vunpack.c.l.b16 %v2203
    %v2340 = vunpack.c.l.b16 %v2204
    %v2341 = vunpack.c.l.b16 %v2205
    %v2342 = vunpack.c.l.b16 %v2206
    %v2343 = vunpack.c.l.b16 %v2207
    %v2344 = vunpack.c.l.b16 %v2208
    %v2345 = vunpack.c.l.b16 %v2209
    %v2346 = vpack.c.b16 %v2297, %v2296
    %v2347 = vpack.c.b16 %v2299, %v2298
    %v2348 = vpack.c.b16 %v2301, %v2300
    %v2349 = vpack.c.b16 %v2303, %v2302
    %v2350 = vpack.c.b16 %v2305, %v2304
    %v2351 = vpack.c.b16 %v2307, %v2306
    %v2352 = vpack.c.b16 %v2309, %v2308
    %v2353 = vpack.c.b16 %v2311, %v2310
    %v2354 = vpack.c.b16 %v2313, %v2312
    %v2355 = vpack.c.b16 %v2315, %v2314
    %v2356 = vpack.c.b16 %v2317, %v2316
    %v2357 = vpack.c.b16 %v2319, %v2318
    %v2358 = vpack.c.b16 %v2321, %v2320
    %v2359 = vpack.c.b16 %v2323, %v2322
    %v2360 = vpack.c.b16 %v2325, %v2324
    %v2361 = vpack.c.b16 %v2327, %v2326
    %v2362 = vpack.c.b16 %v2329, %v2328
    %v2363 = vpack.c.b16 %v2331, %v2330
    %v2364 = vpack.c.b16 %v2333, %v2332
    %v2365 = vpack.c.b16 %v2335, %v2334
    %v2366 = vpack.c.b16 %v2337, %v2336
    %v2367 = vpack.c.b16 %v2339, %v2338
    %v2368 = vpack.c.b16 %v2341, %v2340
    %v2369 = vpack.c.b16 %v2343, %v2342
    %v2370 = vpack.c.b16 %v2345, %v2344
    %v2397 = vsel %vm264, %v2242, 0
    %2399 = vmatprep.subr.bf16.mxu0 0
    %2400 = vmatpush1.bf16.msra.mxu0 %v2346
    %2401 = vmatprep.subr.bf16.mxu0 0
    %2402 = vmatpush1.bf16.msra.mxu0 %v2347
    %2403 = vmatprep.subr.bf16.mxu0 0
    %2404 = vmatpush1.bf16.msra.mxu0 %v2348
    %2405 = vmatprep.subr.bf16.mxu0 0
    %2406 = vmatpush1.bf16.msra.mxu0 %v2349
    %2407 = vmatprep.subr.bf16.mxu0 0
    %2408 = vmatpush1.bf16.msra.mxu0 %v2350
    %2409 = vmatprep.subr.bf16.mxu0 0
    %2410 = vmatpush1.bf16.msra.mxu0 %v2351
    %2411 = vmatprep.subr.bf16.mxu0 0
    %2412 = vmatpush1.bf16.msra.mxu0 %v2352
    %2413 = vmatprep.subr.bf16.mxu0 0
    %2414 = vmatpush1.bf16.msra.mxu0 %v2353
    %2415 = vmatprep.subr.bf16.mxu0 0
    %2416 = vmatpush1.bf16.msra.mxu0 %v2354
    %2417 = vmatprep.subr.bf16.mxu0 0
    %2418 = vmatpush1.bf16.msra.mxu0 %v2355
    %2419 = vmatprep.subr.bf16.mxu0 0
    %2420 = vmatpush1.bf16.msra.mxu0 %v2356
    %2421 = vmatprep.subr.bf16.mxu0 0
    %2422 = vmatpush1.bf16.msra.mxu0 %v2357
    %2423 = vmatprep.subr.bf16.mxu0 0
    %2424 = vmatpush1.bf16.msra.mxu0 %v2358
    %2425 = vmatprep.subr.bf16.mxu0 0
    %2426 = vmatpush1.bf16.msra.mxu0 %v2359
    %2427 = vmatprep.subr.bf16.mxu0 0
    %2428 = vmatpush1.bf16.msra.mxu0 %v2360
    %2429 = vmatprep.subr.bf16.mxu0 0
    %2430 = vmatpush1.bf16.msra.mxu0 %v2361
    %2431 = vmatprep.mubr.bf16.mxu0 %v2240
    %2432 = vmatmul.mubr.bf16.gmra.mrb[0].mxu0 %v2233
    %v2433 = vpop.f32.mrb[0].mxu0
    %v2434 = vadd.f32 %v2216, %v2433
    %v2435 = vpop.f32.mrb[0].mxu0
    %v2436 = vpop.f32.mrb[0].mxu0
    %v2437 = vpop.f32.mrb[0].mxu0
    %2438 = vdwg.mxu0
    %2439 = vmatprep.subr.bf16.mxu0 0
    %2440 = vmatpush1.bf16.msra.mxu0 %v2362
    %2441 = vmatprep.subr.bf16.mxu0 0
    %2442 = vmatpush1.bf16.msra.mxu0 %v2363
    %2443 = vmatprep.subr.bf16.mxu0 0
    %2444 = vmatpush1.bf16.msra.mxu0 %v2364
    %2445 = vmatprep.subr.bf16.mxu0 0
    %2446 = vmatpush1.bf16.msra.mxu0 %v2365
    %2447 = vmatprep.subr.bf16.mxu0 0
    %2448 = vmatpush1.bf16.msra.mxu0 %v2366
    %2449 = vmatprep.subr.bf16.mxu0 0
    %2450 = vmatpush1.bf16.msra.mxu0 %v2367
    %2451 = vmatprep.subr.bf16.mxu0 0
    %2452 = vmatpush1.bf16.msra.mxu0 %v2368
    %2453 = vmatprep.subr.bf16.mxu0 0
    %2454 = vmatpush1.bf16.msra.mxu0 %v2369
    %2455 = vmatprep.subr.bf16.mxu0 0
    %2456 = vmatpush1.bf16.msra.mxu0 %v2370
    %2457 = vmatprep.subr.bf16.mxu0 0
    %2458 = vmatpush1.bf16.msra.mxu0 0
    %2459 = vmatprep.subr.bf16.mxu0 0
    %2460 = vmatpush1.bf16.msra.mxu0 0
    %2461 = vmatprep.subr.bf16.mxu0 0
    %2462 = vmatpush1.bf16.msra.mxu0 0
    %2463 = vmatprep.subr.bf16.mxu0 0
    %2464 = vmatpush1.bf16.msra.mxu0 0
    %2465 = vmatprep.subr.bf16.mxu0 0
    %2466 = vmatpush1.bf16.msra.mxu0 0
    %2467 = vmatprep.subr.bf16.mxu0 0
    %2468 = vmatpush1.bf16.msra.mxu0 0
    %2469 = vmatprep.subr.bf16.mxu0 0
    %2470 = vmatpush1.bf16.msra.mxu0 0
    %2471 = vmatprep.mubr.bf16.mxu0 %v2397
    %2472 = vmatmul.mubr.bf16.gmra.mrb[0].mxu0 %v2241
    %v2473 = vpop.f32.mrb[0].mxu0
    %v2474 = vadd.f32 %v2434, %v2473
    %v2475 = vpop.f32.mrb[0].mxu0
    %v2476 = vpop.f32.mrb[0].mxu0
    %v2477 = vpop.f32.mrb[0].mxu0
    %2478 = vdwg.mxu0
    %v2479 = vmax.f32 %v2474, 0.0
    %v2480 = vpack.c.bf16 %v2479, %v2479
    %s2481 = scalar_lea.vmem %s3, 240
    %v2482 = vld [vmem:[%s2481] sm:$0xf]
    %v2483 = vld [vmem:[%s2481 + $0x4] sm:$0xf]
    %v2484 = vld [vmem:[%s2481 + $0x8] sm:$0xf]
    %v2485 = vld [vmem:[%s2481 + $0xc] sm:$0xf]
    %v2486 = vld [vmem:[%s2481 + $0x10] sm:$0xf]
    %v2487 = vld [vmem:[%s2481 + $0x14] sm:$0xf]
    %v2488 = vld [vmem:[%s2481 + $0x18] sm:$0xf]
    %v2489 = vld [vmem:[%s2481 + $0x1c] sm:$0xf]
    %v2490 = vld [vmem:[%s2481 + $0x20] sm:$0xf]
    %v2491 = vld [vmem:[%s2481 + $0x24] sm:$0xf]
    %v2492 = vld [vmem:[%s2481 + $0x28] sm:$0xf]
    %v2493 = vld [vmem:[%s2481 + $0x2c] sm:$0xf]
    %v2494 = vld [vmem:[%s2481 + $0x30] sm:$0xf]
    %v2495 = vld [vmem:[%s2481 + $0x34] sm:$0xf]
    %v2496 = vld [vmem:[%s2481 + $0x38] sm:$0xf]
    %s2497 = scalar_lea.vmem %s4, 4
    %v2498 = vld [vmem:[%s2497] sm:$0x1]
    %v2500 = vlaneseq
    %v2501 = vshrl.u32 %v2500, 7
    %v2502 = vsub.s32 0, %v2501
    %v2503 = vrot.slane %v2498, %v2502
    %v2520 = vunpack.c.l.b16 %v2482
    %v2521 = vunpack.c.l.b16 %v2483
    %v2522 = vunpack.c.l.b16 %v2484
    %v2523 = vunpack.c.l.b16 %v2485
    %v2524 = vunpack.c.l.b16 %v2486
    %v2525 = vunpack.c.l.b16 %v2487
    %v2526 = vunpack.c.l.b16 %v2488
    %v2527 = vunpack.c.l.b16 %v2489
    %v2528 = vunpack.c.l.b16 %v2490
    %v2529 = vunpack.c.l.b16 %v2491
    %v2530 = vunpack.c.l.b16 %v2492
    %v2531 = vunpack.c.l.b16 %v2493
    %v2532 = vunpack.c.l.b16 %v2494
    %v2533 = vunpack.c.l.b16 %v2495
    %v2534 = vunpack.c.l.b16 %v2496
    %v2535 = vpack.c.b16 %v2521, %v2520
    %v2536 = vpack.c.b16 %v2523, %v2522
    %v2537 = vpack.c.b16 %v2525, %v2524
    %v2538 = vpack.c.b16 %v2527, %v2526
    %v2539 = vpack.c.b16 %v2529, %v2528
    %v2540 = vpack.c.b16 %v2531, %v2530
    %v2541 = vpack.c.b16 %v2533, %v2532
    %v2542 = vpack.c.b16 %v2534, %v2534
    %v2551 = vsel %vm417, %v2480, 0
    %v2554 = vsel %vm421, %v2542, 0
    %2556 = vmatprep.subr.bf16.mxu0 0
    %2557 = vmatpush1.bf16.msra.mxu0 %v2535
    %2558 = vmatprep.subr.bf16.mxu0 0
    %2559 = vmatpush1.bf16.msra.mxu0 %v2536
    %2560 = vmatprep.subr.bf16.mxu0 0
    %2561 = vmatpush1.bf16.msra.mxu0 %v2537
    %2562 = vmatprep.subr.bf16.mxu0 0
    %2563 = vmatpush1.bf16.msra.mxu0 %v2538
    %2564 = vmatprep.subr.bf16.mxu0 0
    %2565 = vmatpush1.bf16.msra.mxu0 %v2539
    %2566 = vmatprep.subr.bf16.mxu0 0
    %2567 = vmatpush1.bf16.msra.mxu0 %v2540
    %2568 = vmatprep.subr.bf16.mxu0 0
    %2569 = vmatpush1.bf16.msra.mxu0 %v2541
    %2570 = vmatprep.subr.bf16.mxu0 0
    %2571 = vmatpush1.bf16.msra.mxu0 %v2554
    %2572 = vmatprep.subr.bf16.mxu0 0
    %2573 = vmatpush1.bf16.msra.mxu0 0
    %2574 = vmatprep.subr.bf16.mxu0 0
    %2575 = vmatpush1.bf16.msra.mxu0 0
    %2576 = vmatprep.subr.bf16.mxu0 0
    %2577 = vmatpush1.bf16.msra.mxu0 0
    %2578 = vmatprep.subr.bf16.mxu0 0
    %2579 = vmatpush1.bf16.msra.mxu0 0
    %2580 = vmatprep.subr.bf16.mxu0 0
    %2581 = vmatpush1.bf16.msra.mxu0 0
    %2582 = vmatprep.subr.bf16.mxu0 0
    %2583 = vmatpush1.bf16.msra.mxu0 0
    %2584 = vmatprep.subr.bf16.mxu0 0
    %2585 = vmatpush1.bf16.msra.mxu0 0
    %2586 = vmatprep.subr.bf16.mxu0 0
    %2587 = vmatpush1.bf16.msra.mxu0 0
    %2588 = vmatprep.mubr.bf16.mxu0 0
    %2589 = vmatmul.mubr.bf16.gmra.mrb[0].mxu0 %v2551
    %v2590 = vpop.f32.mrb[0].mxu0
    %v2591 = vadd.f32 %v2503, %v2590
    %v2592 = vpop.f32.mrb[0].mxu0
    %v2593 = vpop.f32.mrb[0].mxu0
    %v2594 = vpop.f32.mrb[0].mxu0
    %2595 = vdwg.mxu0
    %v2596 = vmax.f32 %v2591, 0.0
    %v2597 = vpack.c.bf16 %v2596, %v2596
    %s2598 = scalar_lea.vmem %s5, 176
    %v2599 = vld [vmem:[%s2598] sm:$0xf]
    %v2600 = vld [vmem:[%s2598 + $0x4] sm:$0xf]
    %v2601 = vld [vmem:[%s2598 + $0x8] sm:$0xf]
    %v2602 = vld [vmem:[%s2598 + $0xc] sm:$0xf]
    %v2603 = vld [vmem:[%s2598 + $0x10] sm:$0xf]
    %v2604 = vld [vmem:[%s2598 + $0x14] sm:$0xf]
    %v2605 = vld [vmem:[%s2598 + $0x18] sm:$0xf]
    %v2606 = vld [vmem:[%s2598 + $0x1c] sm:$0xf]
    %v2607 = vld [vmem:[%s2598 + $0x20] sm:$0xf]
    %v2608 = vld [vmem:[%s2598 + $0x24] sm:$0xf]
    %v2609 = vld [vmem:[%s2598 + $0x28] sm:$0x3]
    %v2621 = vunpack.c.l.b16 %v2599
    %v2622 = vunpack.c.l.b16 %v2600
    %v2623 = vunpack.c.l.b16 %v2601
    %v2624 = vunpack.c.l.b16 %v2602
    %v2625 = vunpack.c.l.b16 %v2603
    %v2626 = vunpack.c.l.b16 %v2604
    %v2627 = vunpack.c.l.b16 %v2605
    %v2628 = vunpack.c.l.b16 %v2606
    %v2629 = vunpack.c.l.b16 %v2607
    %v2630 = vunpack.c.l.b16 %v2608
    %v2631 = vunpack.c.l.b16 %v2609
    %v2632 = vpack.c.b16 %v2622, %v2621
    %v2633 = vpack.c.b16 %v2624, %v2623
    %v2634 = vpack.c.b16 %v2626, %v2625
    %v2635 = vpack.c.b16 %v2628, %v2627
    %v2636 = vpack.c.b16 %v2630, %v2629
    %v2637 = vpack.c.b16 %v2631, %v2631
    %v2644 = vsel %vm964, %v2597, 0
    %v2647 = vsel %vm968, %v2637, 0
    %2649 = vmatprep.subr.bf16.mxu0 0
    %2650 = vmatpush1.bf16.msra.mxu0 %v2632
    %2651 = vmatprep.subr.bf16.mxu0 0
    %2652 = vmatpush1.bf16.msra.mxu0 %v2633
    %2653 = vmatprep.subr.bf16.mxu0 0
    %2654 = vmatpush1.bf16.msra.mxu0 %v2634
    %2655 = vmatprep.subr.bf16.mxu0 0
    %2656 = vmatpush1.bf16.msra.mxu0 %v2635
    %2657 = vmatprep.subr.bf16.mxu0 0
    %2658 = vmatpush1.bf16.msra.mxu0 %v2636
    %2659 = vmatprep.subr.bf16.mxu0 0
    %2660 = vmatpush1.bf16.msra.mxu0 %v2647
    %2661 = vmatprep.subr.bf16.mxu0 0
    %2662 = vmatpush1.bf16.msra.mxu0 0
    %2663 = vmatprep.subr.bf16.mxu0 0
    %2664 = vmatpush1.bf16.msra.mxu0 0
    %2665 = vmatprep.subr.bf16.mxu0 0
    %2666 = vmatpush1.bf16.msra.mxu0 0
    %2667 = vmatprep.subr.bf16.mxu0 0
    %2668 = vmatpush1.bf16.msra.mxu0 0
    %2669 = vmatprep.subr.bf16.mxu0 0
    %2670 = vmatpush1.bf16.msra.mxu0 0
    %2671 = vmatprep.subr.bf16.mxu0 0
    %2672 = vmatpush1.bf16.msra.mxu0 0
    %2673 = vmatprep.subr.bf16.mxu0 0
    %2674 = vmatpush1.bf16.msra.mxu0 0
    %2675 = vmatprep.subr.bf16.mxu0 0
    %2676 = vmatpush1.bf16.msra.mxu0 0
    %2677 = vmatprep.subr.bf16.mxu0 0
    %2678 = vmatpush1.bf16.msra.mxu0 0
    %2679 = vmatprep.subr.bf16.mxu0 0
    %2680 = vmatpush1.bf16.msra.mxu0 0
    %2681 = vmatprep.mubr.bf16.mxu0 0
    %2682 = vmatmul.mubr.bf16.gmra.mrb[0].mxu0 %v2644
    %v2683 = vpop.f32.mrb[0].mxu0
    %v2684 = vadd.f32 0.0, %v2683
    %v2685 = vpop.f32.mrb[0].mxu0
    %v2686 = vpop.f32.mrb[0].mxu0
    %v2687 = vpop.f32.mrb[0].mxu0
    %2688 = vdwg.mxu0
    %v2689 = vadd.f32 %v2156, %v2684
    %v2690 = vld [vmem:[%s6] sm:$0x1]
    %v2692 = vlaneseq
    %v2693 = vshrl.u32 %v2692, 7
    %v2694 = vsub.s32 0, %v2693
    %v2695 = vrot.slane %v2690, %v2694
    %v2697 = vadd.f32 %v2689, %v2695
    %vm2698 = vcmask 148480
    %2699 = vst.msk [vmem:[#allocation2] sm:$0x3] %vm2698, %v2697
    // Predicated region
    $region30: #{mcdnn_forward.5} parent=1 // pred_check
      _
    $region31: #{mcdnn_forward.5} parent=1 // pred_check_branch
      %2701 = sbr.rel (0) target = $region33
    $region32: #{mcdnn_forward.5} parent=1 // pred_region
      %s2703 = ssub.s32 32, 32
      %2704 = vsyncadd [#allocation3], %s2703
      %s2706 = sshll.u32 [#allocation2], 4
      %s2707 = int_to_ptr.vmem [resolvable:$true] %s2706
      %2709 = dma.vmem_to_hbm [thread:$0]  %s2707, 32, %s7, [#allocation3]
    $region33: #{mcdnn_forward.5} parent=1 // pred_fallthru
      _
    // Predicated region
    $region34: #{mcdnn_forward.5} parent=1 // pred_check
      _
    $region35: #{mcdnn_forward.5} parent=1 // pred_check_branch
      %2711 = sbr.rel (0) target = $region37
    $region36: #{mcdnn_forward.5} parent=1 // pred_region
      %2712 = dma.done [#allocation3], 32
    $region37: #{mcdnn_forward.5} parent=1 // pred_fallthru
      _
    %2713 = vsyncpa [#allocation3], 1

</llo_original>
